<compile_context>
chip_gen: v6e
topology: v6e:2x2x1
jax: 0.10.0
libtpu: 0.0.40
codegen_flags: <defaults>
</compile_context>

<pallas_src>
import jax
import jax.numpy as jnp
import numpy as np
from jax.experimental import pallas as pl
from jax.experimental.pallas import tpu as pltpu

D = 64          # model dim
H = 8           # heads
S = 8           # positions (queries / keys) per head
P = H * S * S   # 512 packed valid (head, query, key) triples


def _expansion_constants():
    """Constant 0/1 matrices mapping between the 64-wide and 512-wide layouts."""
    l = np.arange(P)
    m = l // S                    # flat row index m = h*8 + i
    h = l // (S * S)              # head
    j = l % S                     # key position inside the head
    n = np.arange(D)[:, None]
    EQ = (n == m[None, :]).astype(np.float32)               # (64,512): q[m]      -> lane m*8+j
    EK = (n == (h * S + j)[None, :]).astype(np.float32)     # (64,512): k[h*8+j]  -> lane m*8+j
    # Transposed ordering (lane = j*64 + m), used for the exact row max.
    lt = np.arange(P)
    mt = lt % D
    jt = lt // D
    EKT = (n == ((mt // S) * S + jt)[None, :]).astype(np.float32)   # (64,512)
    SEG = EQ.T.copy()                                        # (512,64): sum_j lane m*8+j -> m
    return (jnp.asarray(EQ), jnp.asarray(EK), jnp.asarray(EKT), jnp.asarray(SEG))


def mha_kernel(x_ref, wqkv_ref, bqkv_ref, wo_ref, bo_ref,
               eq_ref, ek_ref, ekt_ref, seg_ref, o_ref):
    x = x_ref[...]                                                        # (TB, 64)

    # Fused Q/K/V projection: single MXU matmul with N=192.
    qkv = jnp.dot(x, wqkv_ref[...], preferred_element_type=jnp.float32) + bqkv_ref[...]
    q = qkv[:, 0 * D:1 * D]
    k = qkv[:, 1 * D:2 * D]
    v = qkv[:, 2 * D:3 * D]

    # Exact per-row max of the head-local scores:
    #   keT[b, j*64+m] = k[b, head(m)*8 + j]  =>  rowmax[b,m] = max_j q[b,m] * keT[b, j*64+m]
    keT = jnp.dot(k, ekt_ref[...], preferred_element_type=jnp.float32)    # (TB, 512)
    rowmax = q * keT[:, 0:D]
    for j in range(1, S):
        rowmax = jnp.maximum(rowmax, q * keT[:, j * D:(j + 1) * D])       # (TB, 64)

    # Packed valid-only scores, lane l = (h*8+i)*8 + j  (lane-dense 512-wide layout).
    qe = jnp.dot(q, eq_ref[...], preferred_element_type=jnp.float32)      # q[b, m]       at lane l
    ke = jnp.dot(k, ek_ref[...], preferred_element_type=jnp.float32)      # k[b, h*8+j]   at lane l
    ve = jnp.dot(v, ek_ref[...], preferred_element_type=jnp.float32)      # v[b, h*8+j]   at lane l
    rme = jnp.dot(rowmax, eq_ref[...], preferred_element_type=jnp.float32)

    # <= 1 everywhere, == 1 at each row's max => denominator >= 1 (always stable).
    e = jnp.exp(qe * ke - rme)                                            # (TB, 512)

    # Segmented (per-8-lane) reductions via a constant matmul; normalize after reducing.
    denom = jnp.dot(e, seg_ref[...], preferred_element_type=jnp.float32)        # (TB, 64)
    numer = jnp.dot(e * ve, seg_ref[...], preferred_element_type=jnp.float32)   # (TB, 64)
    # denom >= 1 so approx=True would be numerically safe; kept exact because the
    # reciprocal is now only (TB,64)-wide (negligible after the 8x exp reduction)
    # and the tight comparison tolerance benefits from the exact divide.
    attn_out = numer * pl.reciprocal(denom, approx=False)

    # Output projection.
    o_ref[...] = jnp.dot(attn_out, wo_ref[...],
                         preferred_element_type=jnp.float32) + bo_ref[...]


def mha_pallas(x, params, *, tile_b=128):
    """x: (B, 64) float32. params: (wq,bq,wk,bk,wv,bv,wo,bo); weights stored (in,out)=W.T."""
    wq, bq, wk, bk, wv, bv, wo, bo = params
    B = x.shape[0]

    wqkv = jnp.concatenate([wq, wk, wv], axis=1)       # (64, 192)
    bqkv = jnp.concatenate([bq, bk, bv], axis=1)       # (1, 192)
    EQ, EK, EKT, SEG = _expansion_constants()

    # Batch tile: multiple of 8, capped at tile_b (<=256 recommended for v7x VMEM).
    TB = max(8, min((int(tile_b) // 8) * 8, ((B + 7) // 8) * 8))
    Bp = pl.cdiv(B, TB) * TB
    xp = x if Bp == B else jnp.pad(x, ((0, Bp - B), (0, 0)))
    grid = (Bp // TB,)

    resident = lambda shape: pl.BlockSpec(shape, lambda i: (0, 0))   # VMEM-resident across steps

    out = pl.pallas_call(
        mha_kernel,
        out_shape=jax.ShapeDtypeStruct((Bp, D), jnp.float32),
        grid=grid,
        in_specs=[
            pl.BlockSpec((TB, D), lambda i: (i, 0)),   # x: streamed per batch tile
            resident((D, 3 * D)),                      # fused W_qkv
            resident((1, 3 * D)),                      # fused b_qkv
            resident((D, D)),                          # W_o
            resident((1, D)),                          # b_o
            resident((D, P)),                          # EQ
            resident((D, P)),                          # EK
            resident((D, P)),                          # EKT
            resident((P, D)),                          # SEG
        ],
        out_specs=pl.BlockSpec((TB, D), lambda i: (i, 0)),
        compiler_params=pltpu.CompilerParams(
            dimension_semantics=("parallel",)),        # megacore-shard the batch axis
    )(xp, wqkv, bqkv, wo, bo, EQ, EK, EKT, SEG)
    return out[:B]


def mha_reference(x, params):
    """Pure-JAX replica of the PyTorch forward (reshape/permute path)."""
    wq, bq, wk, bk, wv, bv, wo, bo = params
    B = x.shape[0]
    q = x @ wq + bq
    k = x @ wk + bk
    v = x @ wv + bv
    # view(B, 1, 8, 8) -> permute(0, 2, 3, 1) => (B, 8, 8, 1)
    q = q.reshape(B, 1, H, S).transpose(0, 2, 3, 1)
    k = k.reshape(B, 1, H, S).transpose(0, 2, 3, 1)
    v = v.reshape(B, 1, H, S).transpose(0, 2, 3, 1)
    attn = jnp.einsum("bhio,bhjo->bhij", q, k)
    attn = jax.nn.softmax(attn, axis=-1)
    o = jnp.einsum("bhij,bhjo->bhio", attn, v)            # (B, 8, 8, 1)
    o = o.transpose(0, 3, 1, 2).reshape(B, D)
    return o @ wo + bo


def make_params(key):
    """Deterministic params. Linear(64,64) PyTorch-style init, stored as W.T."""
    ks = jax.random.split(key, 8)
    bound = 1.0 / jnp.sqrt(jnp.float32(D))
    def lin(kw, kb):
        w = jax.random.uniform(kw, (D, D), jnp.float32, -bound, bound)   # (in, out)
        b = jax.random.uniform(kb, (1, D), jnp.float32, -bound, bound)
        return w, b
    wq, bq = lin(ks[0], ks[1])
    wk, bk = lin(ks[2], ks[3])
    wv, bv = lin(ks[4], ks[5])
    wo, bo = lin(ks[6], ks[7])
    return (wq, bq, wk, bk, wv, bv, wo, bo)


if __name__ == "__main__":
    key = jax.random.PRNGKey(0)
    k_x, k_p = jax.random.split(key)

    B = 192   # small; exercises 2 grid steps at TB=128 plus the batch-padding path
    x = jax.random.normal(k_x, (B, D), jnp.float32)
    params = make_params(k_p)

    out = jax.block_until_ready(mha_pallas(x, params))
    ref = mha_reference(x, params)

    assert out.shape == (B, D)
    err = jnp.max(jnp.abs(out - ref))
    assert jnp.allclose(out, ref, atol=5e-4, rtol=1e-3), f"max abs err = {err}"
    print("KERNEL_OK")
</pallas_src>

<mosaic_0001>
module attributes {stable_mosaic.version = 11 : i64} {
  func.func @mha_kernel(%arg0: i32, %arg1: memref<128x64xf32, #tpu.memory_space<vmem>>, %arg2: memref<64x192xf32, #tpu.memory_space<vmem>>, %arg3: memref<1x192xf32, #tpu.memory_space<vmem>>, %arg4: memref<64x64xf32, #tpu.memory_space<vmem>>, %arg5: memref<1x64xf32, #tpu.memory_space<vmem>>, %arg6: memref<64x512xf32, #tpu.memory_space<vmem>>, %arg7: memref<64x512xf32, #tpu.memory_space<vmem>>, %arg8: memref<64x512xf32, #tpu.memory_space<vmem>>, %arg9: memref<512x64xf32, #tpu.memory_space<vmem>>, %arg10: memref<128x64xf32, #tpu.memory_space<vmem>>) attributes {dimension_semantics = [#tpu.dimension_semantics<parallel>], iteration_bounds = array<i64: 2>, scalar_prefetch = 0 : i64, scratch_operands = 0 : i64, tpu.core_type = #tpu.core_type<tc>, window_params = [{transform_indices = @transform_0, window_bounds = array<i64: 128, 64>}, {pipeline_mode = #tpu.pipeline_mode<synchronous>, transform_indices = @transform_1, window_bounds = array<i64: 64, 192>}, {pipeline_mode = #tpu.pipeline_mode<synchronous>, transform_indices = @transform_2, window_bounds = array<i64: 1, 192>}, {pipeline_mode = #tpu.pipeline_mode<synchronous>, transform_indices = @transform_3, window_bounds = array<i64: 64, 64>}, {pipeline_mode = #tpu.pipeline_mode<synchronous>, transform_indices = @transform_4, window_bounds = array<i64: 1, 64>}, {pipeline_mode = #tpu.pipeline_mode<synchronous>, transform_indices = @transform_5, window_bounds = array<i64: 64, 512>}, {pipeline_mode = #tpu.pipeline_mode<synchronous>, transform_indices = @transform_6, window_bounds = array<i64: 64, 512>}, {pipeline_mode = #tpu.pipeline_mode<synchronous>, transform_indices = @transform_7, window_bounds = array<i64: 64, 512>}, {pipeline_mode = #tpu.pipeline_mode<synchronous>, transform_indices = @transform_8, window_bounds = array<i64: 512, 64>}, {transform_indices = @transform_9, window_bounds = array<i64: 128, 64>}]} {
    %c0 = arith.constant 0 : index
    %c0_0 = arith.constant 0 : index
    %0 = vector.load %arg1[%c0, %c0_0] : memref<128x64xf32, #tpu.memory_space<vmem>>, vector<128x64xf32>
    %c0_1 = arith.constant 0 : index
    %c0_2 = arith.constant 0 : index
    %1 = vector.load %arg2[%c0_1, %c0_2] : memref<64x192xf32, #tpu.memory_space<vmem>>, vector<64x192xf32>
    %cst = arith.constant dense<0.000000e+00> : vector<128x192xf32>
    %2 = tpu.matmul %0, %1, %cst {dimension_numbers = #tpu.dot_dimension_numbers<[1], [0], [0], [1], [0, 0, 1, 1], [], []>} : vector<128x64xf32>, vector<64x192xf32>, vector<128x192xf32> -> vector<128x192xf32>
    %c0_3 = arith.constant 0 : index
    %c0_4 = arith.constant 0 : index
    %3 = vector.load %arg3[%c0_3, %c0_4] : memref<1x192xf32, #tpu.memory_space<vmem>>, vector<1x192xf32>
    %4 = vector.broadcast %3 : vector<1x192xf32> to vector<128x192xf32>
    %5 = arith.addf %2, %4 : vector<128x192xf32>
    %6 = vector.extract_strided_slice %5 {offsets = [0, 0], sizes = [128, 64], strides = [1, 1]} : vector<128x192xf32> to vector<128x64xf32>
    %7 = vector.extract_strided_slice %5 {offsets = [0, 64], sizes = [128, 64], strides = [1, 1]} : vector<128x192xf32> to vector<128x64xf32>
    %8 = vector.extract_strided_slice %5 {offsets = [0, 128], sizes = [128, 64], strides = [1, 1]} : vector<128x192xf32> to vector<128x64xf32>
    %c0_5 = arith.constant 0 : index
    %c0_6 = arith.constant 0 : index
    %9 = vector.load %arg8[%c0_5, %c0_6] : memref<64x512xf32, #tpu.memory_space<vmem>>, vector<64x512xf32>
    %cst_7 = arith.constant dense<0.000000e+00> : vector<128x512xf32>
    %10 = tpu.matmul %7, %9, %cst_7 {dimension_numbers = #tpu.dot_dimension_numbers<[1], [0], [0], [1], [0, 0, 1, 1], [], []>} : vector<128x64xf32>, vector<64x512xf32>, vector<128x512xf32> -> vector<128x512xf32>
    %11 = vector.extract_strided_slice %10 {offsets = [0, 0], sizes = [128, 64], strides = [1, 1]} : vector<128x512xf32> to vector<128x64xf32>
    %12 = arith.mulf %6, %11 : vector<128x64xf32>
    %13 = vector.extract_strided_slice %10 {offsets = [0, 64], sizes = [128, 64], strides = [1, 1]} : vector<128x512xf32> to vector<128x64xf32>
    %14 = arith.mulf %6, %13 : vector<128x64xf32>
    %15 = arith.maximumf %12, %14 : vector<128x64xf32>
    %16 = vector.extract_strided_slice %10 {offsets = [0, 128], sizes = [128, 64], strides = [1, 1]} : vector<128x512xf32> to vector<128x64xf32>
    %17 = arith.mulf %6, %16 : vector<128x64xf32>
    %18 = arith.maximumf %15, %17 : vector<128x64xf32>
    %19 = vector.extract_strided_slice %10 {offsets = [0, 192], sizes = [128, 64], strides = [1, 1]} : vector<128x512xf32> to vector<128x64xf32>
    %20 = arith.mulf %6, %19 : vector<128x64xf32>
    %21 = arith.maximumf %18, %20 : vector<128x64xf32>
    %22 = vector.extract_strided_slice %10 {offsets = [0, 256], sizes = [128, 64], strides = [1, 1]} : vector<128x512xf32> to vector<128x64xf32>
    %23 = arith.mulf %6, %22 : vector<128x64xf32>
    %24 = arith.maximumf %21, %23 : vector<128x64xf32>
    %25 = vector.extract_strided_slice %10 {offsets = [0, 320], sizes = [128, 64], strides = [1, 1]} : vector<128x512xf32> to vector<128x64xf32>
    %26 = arith.mulf %6, %25 : vector<128x64xf32>
    %27 = arith.maximumf %24, %26 : vector<128x64xf32>
    %28 = vector.extract_strided_slice %10 {offsets = [0, 384], sizes = [128, 64], strides = [1, 1]} : vector<128x512xf32> to vector<128x64xf32>
    %29 = arith.mulf %6, %28 : vector<128x64xf32>
    %30 = arith.maximumf %27, %29 : vector<128x64xf32>
    %31 = vector.extract_strided_slice %10 {offsets = [0, 448], sizes = [128, 64], strides = [1, 1]} : vector<128x512xf32> to vector<128x64xf32>
    %32 = arith.mulf %6, %31 : vector<128x64xf32>
    %33 = arith.maximumf %30, %32 : vector<128x64xf32>
    %c0_8 = arith.constant 0 : index
    %c0_9 = arith.constant 0 : index
    %34 = vector.load %arg6[%c0_8, %c0_9] : memref<64x512xf32, #tpu.memory_space<vmem>>, vector<64x512xf32>
    %cst_10 = arith.constant dense<0.000000e+00> : vector<128x512xf32>
    %35 = tpu.matmul %6, %34, %cst_10 {dimension_numbers = #tpu.dot_dimension_numbers<[1], [0], [0], [1], [0, 0, 1, 1], [], []>} : vector<128x64xf32>, vector<64x512xf32>, vector<128x512xf32> -> vector<128x512xf32>
    %c0_11 = arith.constant 0 : index
    %c0_12 = arith.constant 0 : index
    %36 = vector.load %arg7[%c0_11, %c0_12] : memref<64x512xf32, #tpu.memory_space<vmem>>, vector<64x512xf32>
    %cst_13 = arith.constant dense<0.000000e+00> : vector<128x512xf32>
    %37 = tpu.matmul %7, %36, %cst_13 {dimension_numbers = #tpu.dot_dimension_numbers<[1], [0], [0], [1], [0, 0, 1, 1], [], []>} : vector<128x64xf32>, vector<64x512xf32>, vector<128x512xf32> -> vector<128x512xf32>
    %c0_14 = arith.constant 0 : index
    %c0_15 = arith.constant 0 : index
    %38 = vector.load %arg7[%c0_14, %c0_15] : memref<64x512xf32, #tpu.memory_space<vmem>>, vector<64x512xf32>
    %cst_16 = arith.constant dense<0.000000e+00> : vector<128x512xf32>
    %39 = tpu.matmul %8, %38, %cst_16 {dimension_numbers = #tpu.dot_dimension_numbers<[1], [0], [0], [1], [0, 0, 1, 1], [], []>} : vector<128x64xf32>, vector<64x512xf32>, vector<128x512xf32> -> vector<128x512xf32>
    %c0_17 = arith.constant 0 : index
    %c0_18 = arith.constant 0 : index
    %40 = vector.load %arg6[%c0_17, %c0_18] : memref<64x512xf32, #tpu.memory_space<vmem>>, vector<64x512xf32>
    %cst_19 = arith.constant dense<0.000000e+00> : vector<128x512xf32>
    %41 = tpu.matmul %33, %40, %cst_19 {dimension_numbers = #tpu.dot_dimension_numbers<[1], [0], [0], [1], [0, 0, 1, 1], [], []>} : vector<128x64xf32>, vector<64x512xf32>, vector<128x512xf32> -> vector<128x512xf32>
    %42 = arith.mulf %35, %37 : vector<128x512xf32>
    %43 = arith.subf %42, %41 : vector<128x512xf32>
    %44 = math.exp %43 : vector<128x512xf32>
    %c0_20 = arith.constant 0 : index
    %c0_21 = arith.constant 0 : index
    %45 = vector.load %arg9[%c0_20, %c0_21] : memref<512x64xf32, #tpu.memory_space<vmem>>, vector<512x64xf32>
    %cst_22 = arith.constant dense<0.000000e+00> : vector<128x64xf32>
    %46 = tpu.matmul %44, %45, %cst_22 {dimension_numbers = #tpu.dot_dimension_numbers<[1], [0], [0], [1], [0, 0, 1, 1], [], []>} : vector<128x512xf32>, vector<512x64xf32>, vector<128x64xf32> -> vector<128x64xf32>
    %47 = arith.mulf %44, %39 : vector<128x512xf32>
    %c0_23 = arith.constant 0 : index
    %c0_24 = arith.constant 0 : index
    %48 = vector.load %arg9[%c0_23, %c0_24] : memref<512x64xf32, #tpu.memory_space<vmem>>, vector<512x64xf32>
    %cst_25 = arith.constant dense<0.000000e+00> : vector<128x64xf32>
    %49 = tpu.matmul %47, %48, %cst_25 {dimension_numbers = #tpu.dot_dimension_numbers<[1], [0], [0], [1], [0, 0, 1, 1], [], []>} : vector<128x512xf32>, vector<512x64xf32>, vector<128x64xf32> -> vector<128x64xf32>
    %50 = tpu.reciprocal %46 : vector<128x64xf32> -> vector<128x64xf32>
    %51 = arith.mulf %49, %50 : vector<128x64xf32>
    %c0_26 = arith.constant 0 : index
    %c0_27 = arith.constant 0 : index
    %52 = vector.load %arg4[%c0_26, %c0_27] : memref<64x64xf32, #tpu.memory_space<vmem>>, vector<64x64xf32>
    %cst_28 = arith.constant dense<0.000000e+00> : vector<128x64xf32>
    %53 = tpu.matmul %51, %52, %cst_28 {dimension_numbers = #tpu.dot_dimension_numbers<[1], [0], [0], [1], [0, 0, 1, 1], [], []>} : vector<128x64xf32>, vector<64x64xf32>, vector<128x64xf32> -> vector<128x64xf32>
    %c0_29 = arith.constant 0 : index
    %c0_30 = arith.constant 0 : index
    %54 = vector.load %arg5[%c0_29, %c0_30] : memref<1x64xf32, #tpu.memory_space<vmem>>, vector<1x64xf32>
    %55 = vector.broadcast %54 : vector<1x64xf32> to vector<128x64xf32>
    %56 = arith.addf %53, %55 : vector<128x64xf32>
    %c0_31 = arith.constant 0 : index
    %c0_32 = arith.constant 0 : index
    %57 = vector.load %arg10[%c0_31, %c0_32] : memref<128x64xf32, #tpu.memory_space<vmem>>, vector<128x64xf32>
    tpu.vector_store %arg10[%c0_31, %c0_32], %56 {strides = array<i32>} : memref<128x64xf32, #tpu.memory_space<vmem>>, vector<128x64xf32>,
    return
  }
  func.func @transform_0(%arg0: i32) -> (i32, i32) {
    %c0_i32 = arith.constant 0 : i32
    %c0_i32_0 = arith.constant 0 : i32
    return %arg0, %c0_i32 : i32, i32
  }
  func.func @transform_1(%arg0: i32) -> (i32, i32) {
    %c0_i32 = arith.constant 0 : i32
    %c0_i32_0 = arith.constant 0 : i32
    %c0_i32_1 = arith.constant 0 : i32
    return %c0_i32, %c0_i32_0 : i32, i32
  }
  func.func @transform_2(%arg0: i32) -> (i32, i32) {
    %c0_i32 = arith.constant 0 : i32
    %c0_i32_0 = arith.constant 0 : i32
    %c0_i32_1 = arith.constant 0 : i32
    return %c0_i32, %c0_i32_0 : i32, i32
  }
  func.func @transform_3(%arg0: i32) -> (i32, i32) {
    %c0_i32 = arith.constant 0 : i32
    %c0_i32_0 = arith.constant 0 : i32
    %c0_i32_1 = arith.constant 0 : i32
    return %c0_i32, %c0_i32_0 : i32, i32
  }
  func.func @transform_4(%arg0: i32) -> (i32, i32) {
    %c0_i32 = arith.constant 0 : i32
    %c0_i32_0 = arith.constant 0 : i32
    %c0_i32_1 = arith.constant 0 : i32
    return %c0_i32, %c0_i32_0 : i32, i32
  }
  func.func @transform_5(%arg0: i32) -> (i32, i32) {
    %c0_i32 = arith.constant 0 : i32
    %c0_i32_0 = arith.constant 0 : i32
    %c0_i32_1 = arith.constant 0 : i32
    return %c0_i32, %c0_i32_0 : i32, i32
  }
  func.func @transform_6(%arg0: i32) -> (i32, i32) {
    %c0_i32 = arith.constant 0 : i32
    %c0_i32_0 = arith.constant 0 : i32
    %c0_i32_1 = arith.constant 0 : i32
    return %c0_i32, %c0_i32_0 : i32, i32
  }
  func.func @transform_7(%arg0: i32) -> (i32, i32) {
    %c0_i32 = arith.constant 0 : i32
    %c0_i32_0 = arith.constant 0 : i32
    %c0_i32_1 = arith.constant 0 : i32
    return %c0_i32, %c0_i32_0 : i32, i32
  }
  func.func @transform_8(%arg0: i32) -> (i32, i32) {
    %c0_i32 = arith.constant 0 : i32
    %c0_i32_0 = arith.constant 0 : i32
    %c0_i32_1 = arith.constant 0 : i32
    return %c0_i32, %c0_i32_0 : i32, i32
  }
  func.func @transform_9(%arg0: i32) -> (i32, i32) {
    %c0_i32 = arith.constant 0 : i32
    %c0_i32_0 = arith.constant 0 : i32
    return %arg0, %c0_i32 : i32, i32
  }
}

</mosaic_0001>

<llo_original>
// kernel: tpu_custom_call.1
$region0: #{tpu_custom_call.1}
  #allocation0 [shape = 'u32[]', space=smem, size = 0x4, offset = 0x4, fixed_abs, tag = 'smem constant byte address 0x4 - core index']
  #allocation1 [shape = 'u32[144,128]{1,0:T(1,128)}', space=vmem, size = 0x12000, scoped, tag = 'internal scratch']
  %s0 = inlined_call_operand.vmem [shape: f32[256,64], index: 0, kind: input, shape index: {}]
  %s1 = inlined_call_operand.vmem [shape: f32[64,192], index: 1, kind: input, shape index: {}]
  %s2 = inlined_call_operand.vmem [shape: f32[1,192], index: 2, kind: input, shape index: {}]
  %s3 = inlined_call_operand.hbm [shape: f32[64,64], index: 3, kind: input, shape index: {}]
  %s4 = inlined_call_operand.vmem [shape: f32[1,64], index: 4, kind: input, shape index: {}]
  %s5 = inlined_call_operand.vmem [shape: f32[64,512], index: 5, kind: input, shape index: {}]
  %s6 = inlined_call_operand.vmem [shape: f32[64,512], index: 6, kind: input, shape index: {}]
  %s7 = inlined_call_operand.vmem [shape: f32[64,512], index: 7, kind: input, shape index: {}]
  %s8 = inlined_call_operand.vmem [shape: f32[512,64], index: 8, kind: input, shape index: {}]
  %s9 = inlined_call_operand.vmem [shape: f32[256,64], index: 9, kind: output, shape index: {}]
  %s10 = sld [smem:[#allocation0]]
  $region73: #{tpu_custom_call.1} parent=0
    _
  %s12 = ssub.s32 1, %s10
  %s13 = scalar_select 0, %s12, %s10
  $region1: #{tpu_custom_call.1} parent=0
    #allocation2 [shape = 'u8[32768]{0}', space=vmem, size = 0x8000, scoped, tag = 'input window, operand 3, single buffered']
    #allocation3 [shape = 's32[2]{0}', space=sflag, size = 0x8, scoped, tag = 'scoped memory for tpu_custom_call.1']
    %14 = vsyncpa [#allocation3], 0
    loop: start=0, step=1, limit=4
    $region2: #{tpu_custom_call.1} parent=1 // loop_pre_header
      _
    $region3: #{tpu_custom_call.1} parent=1 // loop_header
      %s16 = sphi 0, %s20
      %p17 = scmp.ge.s32.totalorder %s16, 4
      %s26 = sphi 0, %s28
      %s29 = sphi 0, %s26
      %s30 = sphi 0, %s29
      %s46 = sphi 0, %s30
      %s50 = sphi 0, %s50
      %s52 = sphi 0, %s50
      %s53 = sphi 0, %s52
      %s67 = sphi 0, %s53
      %s71 = sphi 0, %s71
      %s73 = sphi 0, %s71
      %s74 = sphi 0, %s73
      %s88 = sphi 0, %s74
      %s92 = sphi 0, %s92
      %s94 = sphi 0, %s92
      %s95 = sphi 0, %s94
      %s109 = sphi 0, %s95
      %s113 = sphi 0, %s113
      %s115 = sphi 0, %s113
      %s116 = sphi 0, %s115
      %s130 = sphi 0, %s116
      %s134 = sphi 0, %s134
      %s136 = sphi 0, %s134
      %s137 = sphi 0, %s136
      %s151 = sphi 0, %s137
      %s155 = sphi 0, %s155
      %s157 = sphi 0, %s155
      %s158 = sphi 0, %s157
      %s172 = sphi 0, %s158
      %s176 = sphi 0, %s176
      %s178 = sphi 0, %s176
      %s179 = sphi 0, %s178
      %s193 = sphi 0, %s179
      %s197 = sphi 0, %s197
      %s199 = sphi 0, %s197
      %s200 = sphi 0, %s199
      %s214 = sphi 0, %s200
      %s220 = sphi 0, %s222
      %s223 = sphi 0, %s220
      %s224 = sphi 0, %s223
      %s240 = sphi 0, %s224
    $region4: #{tpu_custom_call.1} parent=1 // loop_header_branch
      %19 = sbr.rel (%p17) target = $region8
    $region5: #{tpu_custom_call.1} parent=1 // loop_body
      %s21 = ssub.s32 %s16, 1
      %s22 = ssub.s32 %s16, 2
      %s23 = sadd.s32 %s16, 1
      %s24 = ssub.s32 %s16, %s23
      %p25 = scmp.eq.s32.totalorder %s24, 0
      %s27 = sadd.s32 %s26, 1
      %s28 = scalar_select %p25, %s26, %s27
      %p31 = pneg %p25
      %p32 = scmp.eq.s32.totalorder %s16, 1
      %p33 = por %p31, %p32
      %p34 = scmp.ne.s32.totalorder %s26, %s29
      %p35 = scmp.eq.s32.totalorder %s16, 0
      %p36 = por %p34, %p35
      %p37 = scmp.ne.s32.totalorder %s26, %s29
      %p38 = scmp.eq.s32.totalorder %s21, 1
      %p39 = por %p37, %p38
      %p40 = scmp.ne.s32.totalorder %s29, %s30
      %p41 = scmp.eq.s32.totalorder %s21, 0
      %p42 = por %p40, %p41
      %p43 = scmp.ne.s32.totalorder %s29, %s30
      %p44 = scmp.eq.s32.totalorder %s22, 1
      %p45 = por %p43, %p44
      %p47 = scmp.ne.s32.totalorder %s30, %s46
      %p48 = scmp.eq.s32.totalorder %s22, 0
      %p49 = por %p47, %p48
      %s51 = sadd.s32 %s50, 1
      %p54 = scmp.eq.s32.totalorder %s16, 1
      %p55 = scmp.ne.s32.totalorder %s50, %s52
      %p56 = scmp.eq.s32.totalorder %s16, 0
      %p57 = por %p55, %p56
      %p58 = scmp.ne.s32.totalorder %s50, %s52
      %p59 = scmp.eq.s32.totalorder %s21, 1
      %p60 = por %p58, %p59
      %p61 = scmp.ne.s32.totalorder %s52, %s53
      %p62 = scmp.eq.s32.totalorder %s21, 0
      %p63 = por %p61, %p62
      %p64 = scmp.ne.s32.totalorder %s52, %s53
      %p65 = scmp.eq.s32.totalorder %s22, 1
      %p66 = por %p64, %p65
      %p68 = scmp.ne.s32.totalorder %s53, %s67
      %p69 = scmp.eq.s32.totalorder %s22, 0
      %p70 = por %p68, %p69
      %s72 = sadd.s32 %s71, 1
      %p75 = scmp.eq.s32.totalorder %s16, 1
      %p76 = scmp.ne.s32.totalorder %s71, %s73
      %p77 = scmp.eq.s32.totalorder %s16, 0
      %p78 = por %p76, %p77
      %p79 = scmp.ne.s32.totalorder %s71, %s73
      %p80 = scmp.eq.s32.totalorder %s21, 1
      %p81 = por %p79, %p80
      %p82 = scmp.ne.s32.totalorder %s73, %s74
      %p83 = scmp.eq.s32.totalorder %s21, 0
      %p84 = por %p82, %p83
      %p85 = scmp.ne.s32.totalorder %s73, %s74
      %p86 = scmp.eq.s32.totalorder %s22, 1
      %p87 = por %p85, %p86
      %p89 = scmp.ne.s32.totalorder %s74, %s88
      %p90 = scmp.eq.s32.totalorder %s22, 0
      %p91 = por %p89, %p90
      %s93 = sadd.s32 %s92, 1
      %p96 = scmp.eq.s32.totalorder %s16, 1
      %p97 = scmp.ne.s32.totalorder %s92, %s94
      %p98 = scmp.eq.s32.totalorder %s16, 0
      %p99 = por %p97, %p98
      %p100 = scmp.ne.s32.totalorder %s92, %s94
      %p101 = scmp.eq.s32.totalorder %s21, 1
      %p102 = por %p100, %p101
      %p103 = scmp.ne.s32.totalorder %s94, %s95
      %p104 = scmp.eq.s32.totalorder %s21, 0
      %p105 = por %p103, %p104
      %p106 = scmp.ne.s32.totalorder %s94, %s95
      %p107 = scmp.eq.s32.totalorder %s22, 1
      %p108 = por %p106, %p107
      %p110 = scmp.ne.s32.totalorder %s95, %s109
      %p111 = scmp.eq.s32.totalorder %s22, 0
      %p112 = por %p110, %p111
      %s114 = sadd.s32 %s113, 1
      %p117 = scmp.eq.s32.totalorder %s16, 1
      %p118 = scmp.ne.s32.totalorder %s113, %s115
      %p119 = scmp.eq.s32.totalorder %s16, 0
      %p120 = por %p118, %p119
      %p121 = scmp.ne.s32.totalorder %s113, %s115
      %p122 = scmp.eq.s32.totalorder %s21, 1
      %p123 = por %p121, %p122
      %p124 = scmp.ne.s32.totalorder %s115, %s116
      %p125 = scmp.eq.s32.totalorder %s21, 0
      %p126 = por %p124, %p125
      %p127 = scmp.ne.s32.totalorder %s115, %s116
      %p128 = scmp.eq.s32.totalorder %s22, 1
      %p129 = por %p127, %p128
      %p131 = scmp.ne.s32.totalorder %s116, %s130
      %p132 = scmp.eq.s32.totalorder %s22, 0
      %p133 = por %p131, %p132
      %s135 = sadd.s32 %s134, 1
      %p138 = scmp.eq.s32.totalorder %s16, 1
      %p139 = scmp.ne.s32.totalorder %s134, %s136
      %p140 = scmp.eq.s32.totalorder %s16, 0
      %p141 = por %p139, %p140
      %p142 = scmp.ne.s32.totalorder %s134, %s136
      %p143 = scmp.eq.s32.totalorder %s21, 1
      %p144 = por %p142, %p143
      %p145 = scmp.ne.s32.totalorder %s136, %s137
      %p146 = scmp.eq.s32.totalorder %s21, 0
      %p147 = por %p145, %p146
      %p148 = scmp.ne.s32.totalorder %s136, %s137
      %p149 = scmp.eq.s32.totalorder %s22, 1
      %p150 = por %p148, %p149
      %p152 = scmp.ne.s32.totalorder %s137, %s151
      %p153 = scmp.eq.s32.totalorder %s22, 0
      %p154 = por %p152, %p153
      %s156 = sadd.s32 %s155, 1
      %p159 = scmp.eq.s32.totalorder %s16, 1
      %p160 = scmp.ne.s32.totalorder %s155, %s157
      %p161 = scmp.eq.s32.totalorder %s16, 0
      %p162 = por %p160, %p161
      %p163 = scmp.ne.s32.totalorder %s155, %s157
      %p164 = scmp.eq.s32.totalorder %s21, 1
      %p165 = por %p163, %p164
      %p166 = scmp.ne.s32.totalorder %s157, %s158
      %p167 = scmp.eq.s32.totalorder %s21, 0
      %p168 = por %p166, %p167
      %p169 = scmp.ne.s32.totalorder %s157, %s158
      %p170 = scmp.eq.s32.totalorder %s22, 1
      %p171 = por %p169, %p170
      %p173 = scmp.ne.s32.totalorder %s158, %s172
      %p174 = scmp.eq.s32.totalorder %s22, 0
      %p175 = por %p173, %p174
      %s177 = sadd.s32 %s176, 1
      %p180 = scmp.eq.s32.totalorder %s16, 1
      %p181 = scmp.ne.s32.totalorder %s176, %s178
      %p182 = scmp.eq.s32.totalorder %s16, 0
      %p183 = por %p181, %p182
      %p184 = scmp.ne.s32.totalorder %s176, %s178
      %p185 = scmp.eq.s32.totalorder %s21, 1
      %p186 = por %p184, %p185
      %p187 = scmp.ne.s32.totalorder %s178, %s179
      %p188 = scmp.eq.s32.totalorder %s21, 0
      %p189 = por %p187, %p188
      %p190 = scmp.ne.s32.totalorder %s178, %s179
      %p191 = scmp.eq.s32.totalorder %s22, 1
      %p192 = por %p190, %p191
      %p194 = scmp.ne.s32.totalorder %s179, %s193
      %p195 = scmp.eq.s32.totalorder %s22, 0
      %p196 = por %p194, %p195
      %s198 = sadd.s32 %s197, 1
      %p201 = scmp.eq.s32.totalorder %s16, 1
      %p202 = scmp.ne.s32.totalorder %s197, %s199
      %p203 = scmp.eq.s32.totalorder %s16, 0
      %p204 = por %p202, %p203
      %p205 = scmp.ne.s32.totalorder %s197, %s199
      %p206 = scmp.eq.s32.totalorder %s21, 1
      %p207 = por %p205, %p206
      %p208 = scmp.ne.s32.totalorder %s199, %s200
      %p209 = scmp.eq.s32.totalorder %s21, 0
      %p210 = por %p208, %p209
      %p211 = scmp.ne.s32.totalorder %s199, %s200
      %p212 = scmp.eq.s32.totalorder %s22, 1
      %p213 = por %p211, %p212
      %p215 = scmp.ne.s32.totalorder %s200, %s214
      %p216 = scmp.eq.s32.totalorder %s22, 0
      %p217 = por %p215, %p216
      %s218 = ssub.s32 %s16, %s23
      %p219 = scmp.eq.s32.totalorder %s218, 0
      %s221 = sadd.s32 %s220, 1
      %s222 = scalar_select %p219, %s220, %s221
      %p225 = pneg %p219
      %p226 = scmp.eq.s32.totalorder %s16, 1
      %p227 = por %p225, %p226
      %p228 = scmp.ne.s32.totalorder %s220, %s223
      %p229 = scmp.eq.s32.totalorder %s16, 0
      %p230 = por %p228, %p229
      %p231 = scmp.ne.s32.totalorder %s220, %s223
      %p232 = scmp.eq.s32.totalorder %s21, 1
      %p233 = por %p231, %p232
      %p234 = scmp.ne.s32.totalorder %s223, %s224
      %p235 = scmp.eq.s32.totalorder %s21, 0
      %p236 = por %p234, %p235
      %p237 = scmp.ne.s32.totalorder %s223, %s224
      %p238 = scmp.eq.s32.totalorder %s22, 1
      %p239 = por %p237, %p238
      %p241 = scmp.ne.s32.totalorder %s224, %s240
      %p242 = scmp.eq.s32.totalorder %s22, 0
      %p243 = por %p241, %p242
      %p244 = scmp.le.s32.totalorder 1, %s16
      %p245 = scmp.lt.s32.totalorder %s16, 3
      %p246 = pnand %p244, %p245
      %p247 = pneg %p246
      // Predicated region
      $region9: #{tpu_custom_call.1} parent=5 // pred_check
        _
      $region10: #{tpu_custom_call.1} parent=5 // pred_check_branch
        %249 = sbr.rel (%p246) target = $region12
      $region11: #{tpu_custom_call.1} parent=5 // pred_region
        %s250 = ssub.s32 %s16, 1
        // Predicated region
        $region13: #{tpu_custom_call.1} parent=11 // pred_check
          %p251 = pneg %p63
        $region14: #{tpu_custom_call.1} parent=11 // pred_check_branch
          %253 = sbr.rel (%p251) target = $region16
        $region15: #{tpu_custom_call.1} parent=11 // pred_region
          _
        $region16: #{tpu_custom_call.1} parent=11 // pred_fallthru
          _
        // Predicated region
        $region17: #{tpu_custom_call.1} parent=11 // pred_check
          %p254 = pneg %p84
        $region18: #{tpu_custom_call.1} parent=11 // pred_check_branch
          %256 = sbr.rel (%p254) target = $region20
        $region19: #{tpu_custom_call.1} parent=11 // pred_region
          _
        $region20: #{tpu_custom_call.1} parent=11 // pred_fallthru
          _
        // Predicated region
        $region21: #{tpu_custom_call.1} parent=11 // pred_check
          %p257 = pneg %p105
        $region22: #{tpu_custom_call.1} parent=11 // pred_check_branch
          %259 = sbr.rel (%p257) target = $region24
        $region23: #{tpu_custom_call.1} parent=11 // pred_region
          %s261 = ssub.s32 1024, 1024
          %262 = vsyncadd [#allocation3], %s261
          %s263 = sshll.u32 [#allocation2], 4
          %s264 = int_to_ptr.vmem [resolvable:$true] %s263
          %269 = dma.hbm_to_vmem [thread:$0]  %s3, 1024, %s264, [#allocation3], 128, 128, 8
        $region24: #{tpu_custom_call.1} parent=11 // pred_fallthru
          _
        // Predicated region
        $region25: #{tpu_custom_call.1} parent=11 // pred_check
          %p270 = pneg %p126
        $region26: #{tpu_custom_call.1} parent=11 // pred_check_branch
          %272 = sbr.rel (%p270) target = $region28
        $region27: #{tpu_custom_call.1} parent=11 // pred_region
          _
        $region28: #{tpu_custom_call.1} parent=11 // pred_fallthru
          _
        // Predicated region
        $region29: #{tpu_custom_call.1} parent=11 // pred_check
          %p273 = pneg %p147
        $region30: #{tpu_custom_call.1} parent=11 // pred_check_branch
          %275 = sbr.rel (%p273) target = $region32
        $region31: #{tpu_custom_call.1} parent=11 // pred_region
          _
        $region32: #{tpu_custom_call.1} parent=11 // pred_fallthru
          _
        // Predicated region
        $region33: #{tpu_custom_call.1} parent=11 // pred_check
          %p276 = pneg %p168
        $region34: #{tpu_custom_call.1} parent=11 // pred_check_branch
          %278 = sbr.rel (%p276) target = $region36
        $region35: #{tpu_custom_call.1} parent=11 // pred_region
          _
        $region36: #{tpu_custom_call.1} parent=11 // pred_fallthru
          _
        // Predicated region
        $region37: #{tpu_custom_call.1} parent=11 // pred_check
          %p279 = pneg %p189
        $region38: #{tpu_custom_call.1} parent=11 // pred_check_branch
          %281 = sbr.rel (%p279) target = $region40
        $region39: #{tpu_custom_call.1} parent=11 // pred_region
          _
        $region40: #{tpu_custom_call.1} parent=11 // pred_fallthru
          _
        // Predicated region
        $region41: #{tpu_custom_call.1} parent=11 // pred_check
          %p282 = pneg %p210
        $region42: #{tpu_custom_call.1} parent=11 // pred_check_branch
          %284 = sbr.rel (%p282) target = $region44
        $region43: #{tpu_custom_call.1} parent=11 // pred_region
          _
        $region44: #{tpu_custom_call.1} parent=11 // pred_fallthru
          _
      $region12: #{tpu_custom_call.1} parent=5 // pred_fallthru
        _
      %p285 = scmp.lt.s32.totalorder %s16, 2
      // Predicated region
      $region45: #{tpu_custom_call.1} parent=5 // pred_check
        %p286 = pneg %p285
      $region46: #{tpu_custom_call.1} parent=5 // pred_check_branch
        %288 = sbr.rel (%p286) target = $region48
      $region47: #{tpu_custom_call.1} parent=5 // pred_region
        // Predicated region
        $region49: #{tpu_custom_call.1} parent=47 // pred_check
          %p289 = pneg %p36
        $region50: #{tpu_custom_call.1} parent=47 // pred_check_branch
          %291 = sbr.rel (%p289) target = $region52
        $region51: #{tpu_custom_call.1} parent=47 // pred_region
          %s292 = smul.u32 16, %s16
          %p293 = scmp.lt.s32.totalorder %s292, 31
          %s294 = scalar_select %p293, %s292, 31
          %s295 = smul.addr %s294, 8
          %s296 = scalar_lea.vmem %s0, %s295
          %s297 = smul.u32 16, %s16
        $region52: #{tpu_custom_call.1} parent=47 // pred_fallthru
          _
      $region48: #{tpu_custom_call.1} parent=5 // pred_fallthru
        _
      %p298 = scmp.le.s32.totalorder 1, %s16
      %p299 = scmp.lt.s32.totalorder %s16, 3
      %p300 = pnand %p298, %p299
      %p301 = pneg %p300
      // Predicated region
      $region53: #{tpu_custom_call.1} parent=5 // pred_check
        _
      $region54: #{tpu_custom_call.1} parent=5 // pred_check_branch
        %303 = sbr.rel (%p300) target = $region56
      $region55: #{tpu_custom_call.1} parent=5 // pred_region
        %s304 = ssub.s32 %s16, 1
        // Predicated region
        $region57: #{tpu_custom_call.1} parent=55 // pred_check
          %p305 = pneg %p105
        $region58: #{tpu_custom_call.1} parent=55 // pred_check_branch
          %307 = sbr.rel (%p305) target = $region60
        $region59: #{tpu_custom_call.1} parent=55 // pred_region
          %308 = dma.done [#allocation3], 1024
        $region60: #{tpu_custom_call.1} parent=55 // pred_fallthru
          _
        %s309 = smul.u32 16, %s21
        %p310 = scmp.lt.s32.totalorder %s309, 31
        %s311 = scalar_select %p310, %s309, 31
        %s312 = smul.addr %s311, 8
        %s313 = scalar_lea.vmem %s0, %s312
        %p314 = pneg %p42
        %p315 = pneg %p39
        %p316 = pneg %p63
        %p317 = pneg %p60
        %p318 = pneg %p84
        %p319 = pneg %p81
        %p320 = pneg %p105
        %p321 = pneg %p102
        %p322 = pneg %p126
        %p323 = pneg %p123
        %p324 = pneg %p147
        %p325 = pneg %p144
        %p326 = pneg %p168
        %p327 = pneg %p165
        %p328 = pneg %p189
        %p329 = pneg %p186
        %p330 = pneg %p210
        %p331 = pneg %p207
        %p332 = pneg %p236
        %p333 = pneg %p233
        %s334 = smul.u32 16, %s21
        %p335 = scmp.lt.s32.totalorder %s334, 31
        %s336 = scalar_select %p335, %s334, 31
        %s337 = smul.addr %s336, 8
        %s338 = scalar_lea.vmem %s9, %s337
        %s339 = smul.u32 16, %s21
        %p340 = scmp.lt.s32.totalorder %s339, 31
        %s341 = scalar_select %p340, %s339, 31
        %s342 = smul.addr %s341, 8
        %s343 = scalar_lea.vmem %s0, %s342
        %s344 = smul.u32 16, %s21
        %s345 = smul.u32 16, %s21
        %p346 = scmp.lt.s32.totalorder %s345, 31
        %s347 = scalar_select %p346, %s345, 31
        %s348 = smul.addr %s347, 8
        %s349 = scalar_lea.vmem %s9, %s348
        %s350 = smul.u32 16, %s21
        %v351 = vld [vmem:[%s343] sm:$0xff]
        %v352 = vld [vmem:[%s343 + $0x8] sm:$0xff]
        %v353 = vld [vmem:[%s343 + $0x10] sm:$0xff]
        %v354 = vld [vmem:[%s343 + $0x18] sm:$0xff]
        %v355 = vld [vmem:[%s343 + $0x20] sm:$0xff]
        %v356 = vld [vmem:[%s343 + $0x28] sm:$0xff]
        %v357 = vld [vmem:[%s343 + $0x30] sm:$0xff]
        %v358 = vld [vmem:[%s343 + $0x38] sm:$0xff]
        %v359 = vld [vmem:[%s343 + $0x40] sm:$0xff]
        %v360 = vld [vmem:[%s343 + $0x48] sm:$0xff]
        %v361 = vld [vmem:[%s343 + $0x50] sm:$0xff]
        %v362 = vld [vmem:[%s343 + $0x58] sm:$0xff]
        %v363 = vld [vmem:[%s343 + $0x60] sm:$0xff]
        %v364 = vld [vmem:[%s343 + $0x68] sm:$0xff]
        %v365 = vld [vmem:[%s343 + $0x70] sm:$0xff]
        %v366 = vld [vmem:[%s343 + $0x78] sm:$0xff]
        %v367 = vld [vmem:[%s1] sm:$0xff]
        %v368 = vld [vmem:[%s1 + $0x8] sm:$0xff]
        %v369 = vld [vmem:[%s1 + $0x10] sm:$0xff]
        %v370 = vld [vmem:[%s1 + $0x18] sm:$0xff]
        %v371 = vld [vmem:[%s1 + $0x20] sm:$0xff]
        %v372 = vld [vmem:[%s1 + $0x28] sm:$0xff]
        %v373 = vld [vmem:[%s1 + $0x30] sm:$0xff]
        %v374 = vld [vmem:[%s1 + $0x38] sm:$0xff]
        %v375 = vld [vmem:[%s1 + $0x40] sm:$0xff]
        %v376 = vld [vmem:[%s1 + $0x48] sm:$0xff]
        %v377 = vld [vmem:[%s1 + $0x50] sm:$0xff]
        %v378 = vld [vmem:[%s1 + $0x58] sm:$0xff]
        %v379 = vld [vmem:[%s1 + $0x60] sm:$0xff]
        %v380 = vld [vmem:[%s1 + $0x68] sm:$0xff]
        %v381 = vld [vmem:[%s1 + $0x70] sm:$0xff]
        %v382 = vld [vmem:[%s1 + $0x78] sm:$0xff]
        %v383 = vld [vmem:[%s2] sm:$0x3]
        %v385 = vlaneseq
        %v386 = vshrl.u32 %v385, 7
        %v387 = vsub.s32 0, %v386
        %v388 = vrot.slane %v383, %v387
        %v389 = vlaneseq
        %v390 = vshrl.u32 %v389, 7
        %v391 = vsub.s32 1, %v390
        %v392 = vrot.slane %v383, %v391
        %vm395 = vcmask 523264
        %v397 = vsel %vm395, %v351, 0
        %v400 = vsel %vm395, %v352, 0
        %v403 = vsel %vm395, %v353, 0
        %v406 = vsel %vm395, %v354, 0
        %v409 = vsel %vm395, %v355, 0
        %v412 = vsel %vm395, %v356, 0
        %v415 = vsel %vm395, %v357, 0
        %v418 = vsel %vm395, %v358, 0
        %v421 = vsel %vm395, %v359, 0
        %v424 = vsel %vm395, %v360, 0
        %v427 = vsel %vm395, %v361, 0
        %v430 = vsel %vm395, %v362, 0
        %v433 = vsel %vm395, %v363, 0
        %v436 = vsel %vm395, %v364, 0
        %v439 = vsel %vm395, %v365, 0
        %v442 = vsel %vm395, %v366, 0
        %444 = vmatprep.subr.mxu0 0.0
        %445 = vmatpush1.msra.mxu0 0.0
        %446 = vmatprep.subr.mxu0 0.0
        %447 = vmatpush1.msra.mxu0 0.0
        %448 = vmatprep.subr.mxu0 0.0
        %449 = vmatpush1.msra.mxu0 0.0
        %450 = vmatprep.subr.mxu0 0.0
        %451 = vmatpush1.msra.mxu0 0.0
        %452 = vmatprep.subr.mxu0 0.0
        %453 = vmatpush1.msra.mxu0 0.0
        %454 = vmatprep.subr.mxu0 0.0
        %455 = vmatpush1.msra.mxu0 0.0
        %456 = vmatprep.subr.mxu0 0.0
        %457 = vmatpush1.msra.mxu0 0.0
        %458 = vmatprep.subr.mxu0 0.0
        %459 = vmatpush1.msra.mxu0 0.0
        %460 = vmatprep.subr.mxu0 %v382
        %461 = vmatpush1.msra.mxu0 %v381
        %462 = vmatprep.subr.mxu0 %v380
        %463 = vmatpush1.msra.mxu0 %v379
        %464 = vmatprep.subr.mxu0 %v378
        %465 = vmatpush1.msra.mxu0 %v377
        %466 = vmatprep.subr.mxu0 %v376
        %467 = vmatpush1.msra.mxu0 %v375
        %468 = vmatprep.subr.mxu0 %v374
        %469 = vmatpush1.msra.mxu0 %v373
        %470 = vmatprep.subr.mxu0 %v372
        %471 = vmatpush1.msra.mxu0 %v371
        %472 = vmatprep.subr.mxu0 %v370
        %473 = vmatpush1.msra.mxu0 %v369
        %474 = vmatprep.subr.mxu0 %v368
        %475 = vmatpush1.msra.mxu0 %v367
        %476 = vmatprep.subr.mxu0 0.0
        %477 = vmatpush2.msra.mxu0 0.0
        %478 = vmatprep.subr.mxu0 0.0
        %479 = vmatpush2.msra.mxu0 0.0
        %480 = vmatprep.subr.mxu0 0.0
        %481 = vmatpush2.msra.mxu0 0.0
        %482 = vmatprep.subr.mxu0 0.0
        %483 = vmatpush2.msra.mxu0 0.0
        %484 = vmatprep.subr.mxu0 0.0
        %485 = vmatpush2.msra.mxu0 0.0
        %486 = vmatprep.subr.mxu0 0.0
        %487 = vmatpush2.msra.mxu0 0.0
        %488 = vmatprep.subr.mxu0 0.0
        %489 = vmatpush2.msra.mxu0 0.0
        %490 = vmatprep.subr.mxu0 0.0
        %491 = vmatpush2.msra.mxu0 0.0
        %492 = vmatprep.subr.mxu0 0.0
        %493 = vmatpush2.msra.mxu0 0.0
        %494 = vmatprep.subr.mxu0 0.0
        %495 = vmatpush2.msra.mxu0 0.0
        %496 = vmatprep.subr.mxu0 0.0
        %497 = vmatpush2.msra.mxu0 0.0
        %498 = vmatprep.subr.mxu0 0.0
        %499 = vmatpush2.msra.mxu0 0.0
        %500 = vmatprep.subr.mxu0 0.0
        %501 = vmatpush2.msra.mxu0 0.0
        %502 = vmatprep.subr.mxu0 0.0
        %503 = vmatpush2.msra.mxu0 0.0
        %504 = vmatprep.subr.mxu0 0.0
        %505 = vmatpush2.msra.mxu0 0.0
        %506 = vmatprep.subr.mxu0 0.0
        %507 = vmatpush2.msra.mxu0 0.0
        %508 = vmatprep.mubr.f32.mxu0 0.0
        %509 = vmatmul.mubr.f32.gmra.mxu0 %v397
        %v510 = vpop.f32.mrf.mxu0
        %v511 = vadd.f32 %v388, %v510
        %v512 = vpop.f32.mrf.mxu0
        %v513 = vadd.f32 %v392, %v512
        %514 = vmatprep.mubr.f32.mxu0 0.0
        %515 = vmatmul.mubr.f32.gmra.mxu0 %v400
        %v516 = vpop.f32.mrf.mxu0
        %v517 = vadd.f32 %v388, %v516
        %v518 = vpop.f32.mrf.mxu0
        %v519 = vadd.f32 %v392, %v518
        %520 = vmatprep.mubr.f32.mxu0 0.0
        %521 = vmatmul.mubr.f32.gmra.mxu0 %v403
        %v522 = vpop.f32.mrf.mxu0
        %v523 = vadd.f32 %v388, %v522
        %v524 = vpop.f32.mrf.mxu0
        %v525 = vadd.f32 %v392, %v524
        %526 = vmatprep.mubr.f32.mxu0 0.0
        %527 = vmatmul.mubr.f32.gmra.mxu0 %v406
        %v528 = vpop.f32.mrf.mxu0
        %v529 = vadd.f32 %v388, %v528
        %v530 = vpop.f32.mrf.mxu0
        %v531 = vadd.f32 %v392, %v530
        %532 = vmatprep.mubr.f32.mxu0 0.0
        %533 = vmatmul.mubr.f32.gmra.mxu0 %v409
        %v534 = vpop.f32.mrf.mxu0
        %v535 = vadd.f32 %v388, %v534
        %v536 = vpop.f32.mrf.mxu0
        %v537 = vadd.f32 %v392, %v536
        %538 = vmatprep.mubr.f32.mxu0 0.0
        %539 = vmatmul.mubr.f32.gmra.mxu0 %v412
        %v540 = vpop.f32.mrf.mxu0
        %v541 = vadd.f32 %v388, %v540
        %v542 = vpop.f32.mrf.mxu0
        %v543 = vadd.f32 %v392, %v542
        %544 = vmatprep.mubr.f32.mxu0 0.0
        %545 = vmatmul.mubr.f32.gmra.mxu0 %v415
        %v546 = vpop.f32.mrf.mxu0
        %v547 = vadd.f32 %v388, %v546
        %v548 = vpop.f32.mrf.mxu0
        %v549 = vadd.f32 %v392, %v548
        %550 = vmatprep.mubr.f32.mxu0 0.0
        %551 = vmatmul.mubr.f32.gmra.mxu0 %v418
        %v552 = vpop.f32.mrf.mxu0
        %v553 = vadd.f32 %v388, %v552
        %v554 = vpop.f32.mrf.mxu0
        %v555 = vadd.f32 %v392, %v554
        %556 = vmatprep.mubr.f32.mxu0 0.0
        %557 = vmatmul.mubr.f32.gmra.mxu0 %v421
        %v558 = vpop.f32.mrf.mxu0
        %v559 = vadd.f32 %v388, %v558
        %v560 = vpop.f32.mrf.mxu0
        %v561 = vadd.f32 %v392, %v560
        %562 = vmatprep.mubr.f32.mxu0 0.0
        %563 = vmatmul.mubr.f32.gmra.mxu0 %v424
        %v564 = vpop.f32.mrf.mxu0
        %v565 = vadd.f32 %v388, %v564
        %v566 = vpop.f32.mrf.mxu0
        %v567 = vadd.f32 %v392, %v566
        %568 = vmatprep.mubr.f32.mxu0 0.0
        %569 = vmatmul.mubr.f32.gmra.mxu0 %v427
        %v570 = vpop.f32.mrf.mxu0
        %v571 = vadd.f32 %v388, %v570
        %v572 = vpop.f32.mrf.mxu0
        %v573 = vadd.f32 %v392, %v572
        %574 = vmatprep.mubr.f32.mxu0 0.0
        %575 = vmatmul.mubr.f32.gmra.mxu0 %v430
        %v576 = vpop.f32.mrf.mxu0
        %v577 = vadd.f32 %v388, %v576
        %v578 = vpop.f32.mrf.mxu0
        %v579 = vadd.f32 %v392, %v578
        %580 = vmatprep.mubr.f32.mxu0 0.0
        %581 = vmatmul.mubr.f32.gmra.mxu0 %v433
        %v582 = vpop.f32.mrf.mxu0
        %v583 = vadd.f32 %v388, %v582
        %v584 = vpop.f32.mrf.mxu0
        %v585 = vadd.f32 %v392, %v584
        %586 = vmatprep.mubr.f32.mxu0 0.0
        %587 = vmatmul.mubr.f32.gmra.mxu0 %v436
        %v588 = vpop.f32.mrf.mxu0
        %v589 = vadd.f32 %v388, %v588
        %v590 = vpop.f32.mrf.mxu0
        %v591 = vadd.f32 %v392, %v590
        %592 = vmatprep.mubr.f32.mxu0 0.0
        %593 = vmatmul.mubr.f32.gmra.mxu0 %v439
        %v594 = vpop.f32.mrf.mxu0
        %v595 = vadd.f32 %v388, %v594
        %v596 = vpop.f32.mrf.mxu0
        %v597 = vadd.f32 %v392, %v596
        %598 = vmatprep.mubr.f32.mxu0 0.0
        %599 = vmatmul.mubr.f32.gmra.mxu0 %v442
        %v600 = vpop.f32.mrf.mxu0
        %v601 = vadd.f32 %v388, %v600
        %v602 = vpop.f32.mrf.mxu0
        %v603 = vadd.f32 %v392, %v602
        %604 = vdwg.mxu0
        %v605 = vld [vmem:[%s7] sm:$0xff]
        %v606 = vld [vmem:[%s7 + $0x8] sm:$0xff]
        %v607 = vld [vmem:[%s7 + $0x10] sm:$0xff]
        %v608 = vld [vmem:[%s7 + $0x18] sm:$0xff]
        %v609 = vld [vmem:[%s7 + $0x20] sm:$0xff]
        %v610 = vld [vmem:[%s7 + $0x28] sm:$0xff]
        %v611 = vld [vmem:[%s7 + $0x30] sm:$0xff]
        %v612 = vld [vmem:[%s7 + $0x38] sm:$0xff]
        %v613 = vld [vmem:[%s7 + $0x40] sm:$0xff]
        %v614 = vld [vmem:[%s7 + $0x48] sm:$0xff]
        %v615 = vld [vmem:[%s7 + $0x50] sm:$0xff]
        %v616 = vld [vmem:[%s7 + $0x58] sm:$0xff]
        %v617 = vld [vmem:[%s7 + $0x60] sm:$0xff]
        %v618 = vld [vmem:[%s7 + $0x68] sm:$0xff]
        %v619 = vld [vmem:[%s7 + $0x70] sm:$0xff]
        %v620 = vld [vmem:[%s7 + $0x78] sm:$0xff]
        %v621 = vld [vmem:[%s7 + $0x80] sm:$0xff]
        %v622 = vld [vmem:[%s7 + $0x88] sm:$0xff]
        %v623 = vld [vmem:[%s7 + $0x90] sm:$0xff]
        %v624 = vld [vmem:[%s7 + $0x98] sm:$0xff]
        %v625 = vld [vmem:[%s7 + $0xa0] sm:$0xff]
        %v626 = vld [vmem:[%s7 + $0xa8] sm:$0xff]
        %v627 = vld [vmem:[%s7 + $0xb0] sm:$0xff]
        %v628 = vld [vmem:[%s7 + $0xb8] sm:$0xff]
        %v629 = vld [vmem:[%s7 + $0xc0] sm:$0xff]
        %v630 = vld [vmem:[%s7 + $0xc8] sm:$0xff]
        %v631 = vld [vmem:[%s7 + $0xd0] sm:$0xff]
        %v632 = vld [vmem:[%s7 + $0xd8] sm:$0xff]
        %v633 = vld [vmem:[%s7 + $0xe0] sm:$0xff]
        %v634 = vld [vmem:[%s7 + $0xe8] sm:$0xff]
        %v635 = vld [vmem:[%s7 + $0xf0] sm:$0xff]
        %v636 = vld [vmem:[%s7 + $0xf8] sm:$0xff]
        %653 = vrot.lane.b32.xlu0 %v511, 64
        %v654 = vpop.permute.xlu0 %653
        %655 = vrot.lane.b32.xlu0 %v517, 64
        %v656 = vpop.permute.xlu0 %655
        %657 = vrot.lane.b32.xlu0 %v523, 64
        %v658 = vpop.permute.xlu0 %657
        %659 = vrot.lane.b32.xlu0 %v529, 64
        %v660 = vpop.permute.xlu0 %659
        %661 = vrot.lane.b32.xlu0 %v535, 64
        %v662 = vpop.permute.xlu0 %661
        %663 = vrot.lane.b32.xlu0 %v541, 64
        %v664 = vpop.permute.xlu0 %663
        %665 = vrot.lane.b32.xlu0 %v547, 64
        %v666 = vpop.permute.xlu0 %665
        %667 = vrot.lane.b32.xlu0 %v553, 64
        %v668 = vpop.permute.xlu0 %667
        %669 = vrot.lane.b32.xlu0 %v559, 64
        %v670 = vpop.permute.xlu0 %669
        %671 = vrot.lane.b32.xlu0 %v565, 64
        %v672 = vpop.permute.xlu0 %671
        %673 = vrot.lane.b32.xlu0 %v571, 64
        %v674 = vpop.permute.xlu0 %673
        %675 = vrot.lane.b32.xlu0 %v577, 64
        %v676 = vpop.permute.xlu0 %675
        %677 = vrot.lane.b32.xlu0 %v583, 64
        %v678 = vpop.permute.xlu0 %677
        %679 = vrot.lane.b32.xlu0 %v589, 64
        %v680 = vpop.permute.xlu0 %679
        %681 = vrot.lane.b32.xlu0 %v595, 64
        %v682 = vpop.permute.xlu0 %681
        %683 = vrot.lane.b32.xlu0 %v601, 64
        %v684 = vpop.permute.xlu0 %683
        %v685 = vsel %vm395, %v654, 0
        %v687 = vsel %vm395, %v656, 0
        %v689 = vsel %vm395, %v658, 0
        %v691 = vsel %vm395, %v660, 0
        %v693 = vsel %vm395, %v662, 0
        %v695 = vsel %vm395, %v664, 0
        %v697 = vsel %vm395, %v666, 0
        %v699 = vsel %vm395, %v668, 0
        %v701 = vsel %vm395, %v670, 0
        %v703 = vsel %vm395, %v672, 0
        %v705 = vsel %vm395, %v674, 0
        %v707 = vsel %vm395, %v676, 0
        %v709 = vsel %vm395, %v678, 0
        %v711 = vsel %vm395, %v680, 0
        %v713 = vsel %vm395, %v682, 0
        %v715 = vsel %vm395, %v684, 0
        %717 = vmatprep.subr.mxu0 0.0
        %718 = vmatpush1.msra.mxu0 0.0
        %719 = vmatprep.subr.mxu0 0.0
        %720 = vmatpush1.msra.mxu0 0.0
        %721 = vmatprep.subr.mxu0 0.0
        %722 = vmatpush1.msra.mxu0 0.0
        %723 = vmatprep.subr.mxu0 0.0
        %724 = vmatpush1.msra.mxu0 0.0
        %725 = vmatprep.subr.mxu0 0.0
        %726 = vmatpush1.msra.mxu0 0.0
        %727 = vmatprep.subr.mxu0 0.0
        %728 = vmatpush1.msra.mxu0 0.0
        %729 = vmatprep.subr.mxu0 0.0
        %730 = vmatpush1.msra.mxu0 0.0
        %731 = vmatprep.subr.mxu0 0.0
        %732 = vmatpush1.msra.mxu0 0.0
        %733 = vmatprep.subr.mxu0 %v634
        %734 = vmatpush1.msra.mxu0 %v633
        %735 = vmatprep.subr.mxu0 %v630
        %736 = vmatpush1.msra.mxu0 %v629
        %737 = vmatprep.subr.mxu0 %v626
        %738 = vmatpush1.msra.mxu0 %v625
        %739 = vmatprep.subr.mxu0 %v622
        %740 = vmatpush1.msra.mxu0 %v621
        %741 = vmatprep.subr.mxu0 %v618
        %742 = vmatpush1.msra.mxu0 %v617
        %743 = vmatprep.subr.mxu0 %v614
        %744 = vmatpush1.msra.mxu0 %v613
        %745 = vmatprep.subr.mxu0 %v610
        %746 = vmatpush1.msra.mxu0 %v609
        %747 = vmatprep.subr.mxu0 %v606
        %748 = vmatpush1.msra.mxu0 %v605
        %749 = vmatprep.subr.mxu0 0.0
        %750 = vmatpush2.msra.mxu0 0.0
        %751 = vmatprep.subr.mxu0 0.0
        %752 = vmatpush2.msra.mxu0 0.0
        %753 = vmatprep.subr.mxu0 0.0
        %754 = vmatpush2.msra.mxu0 0.0
        %755 = vmatprep.subr.mxu0 0.0
        %756 = vmatpush2.msra.mxu0 0.0
        %757 = vmatprep.subr.mxu0 0.0
        %758 = vmatpush2.msra.mxu0 0.0
        %759 = vmatprep.subr.mxu0 0.0
        %760 = vmatpush2.msra.mxu0 0.0
        %761 = vmatprep.subr.mxu0 0.0
        %762 = vmatpush2.msra.mxu0 0.0
        %763 = vmatprep.subr.mxu0 0.0
        %764 = vmatpush2.msra.mxu0 0.0
        %765 = vmatprep.subr.mxu0 0.0
        %766 = vmatpush2.msra.mxu0 0.0
        %767 = vmatprep.subr.mxu0 0.0
        %768 = vmatpush2.msra.mxu0 0.0
        %769 = vmatprep.subr.mxu0 0.0
        %770 = vmatpush2.msra.mxu0 0.0
        %771 = vmatprep.subr.mxu0 0.0
        %772 = vmatpush2.msra.mxu0 0.0
        %773 = vmatprep.subr.mxu0 0.0
        %774 = vmatpush2.msra.mxu0 0.0
        %775 = vmatprep.subr.mxu0 0.0
        %776 = vmatpush2.msra.mxu0 0.0
        %777 = vmatprep.subr.mxu0 0.0
        %778 = vmatpush2.msra.mxu0 0.0
        %779 = vmatprep.subr.mxu0 0.0
        %780 = vmatpush2.msra.mxu0 0.0
        %781 = vmatprep.mubr.f32.mxu0 0.0
        %782 = vmatmul.mubr.f32.gmra.mxu0 %v685
        %v783 = vpop.f32.mrf.mxu0
        %v784 = vadd.f32 0.0, %v783
        %v785 = vpop.f32.mrf.mxu0
        %v786 = vadd.f32 0.0, %v785
        %787 = vmatprep.mubr.f32.mxu0 0.0
        %788 = vmatmul.mubr.f32.gmra.mxu0 %v687
        %v789 = vpop.f32.mrf.mxu0
        %v790 = vadd.f32 0.0, %v789
        %v791 = vpop.f32.mrf.mxu0
        %v792 = vadd.f32 0.0, %v791
        %793 = vmatprep.mubr.f32.mxu0 0.0
        %794 = vmatmul.mubr.f32.gmra.mxu0 %v689
        %v795 = vpop.f32.mrf.mxu0
        %v796 = vadd.f32 0.0, %v795
        %v797 = vpop.f32.mrf.mxu0
        %v798 = vadd.f32 0.0, %v797
        %799 = vmatprep.mubr.f32.mxu0 0.0
        %800 = vmatmul.mubr.f32.gmra.mxu0 %v691
        %v801 = vpop.f32.mrf.mxu0
        %v802 = vadd.f32 0.0, %v801
        %v803 = vpop.f32.mrf.mxu0
        %v804 = vadd.f32 0.0, %v803
        %805 = vmatprep.mubr.f32.mxu0 0.0
        %806 = vmatmul.mubr.f32.gmra.mxu0 %v693
        %v807 = vpop.f32.mrf.mxu0
        %v808 = vadd.f32 0.0, %v807
        %v809 = vpop.f32.mrf.mxu0
        %v810 = vadd.f32 0.0, %v809
        %811 = vmatprep.mubr.f32.mxu0 0.0
        %812 = vmatmul.mubr.f32.gmra.mxu0 %v695
        %v813 = vpop.f32.mrf.mxu0
        %v814 = vadd.f32 0.0, %v813
        %v815 = vpop.f32.mrf.mxu0
        %v816 = vadd.f32 0.0, %v815
        %817 = vmatprep.mubr.f32.mxu0 0.0
        %818 = vmatmul.mubr.f32.gmra.mxu0 %v697
        %v819 = vpop.f32.mrf.mxu0
        %v820 = vadd.f32 0.0, %v819
        %v821 = vpop.f32.mrf.mxu0
        %v822 = vadd.f32 0.0, %v821
        %823 = vmatprep.mubr.f32.mxu0 0.0
        %824 = vmatmul.mubr.f32.gmra.mxu0 %v699
        %v825 = vpop.f32.mrf.mxu0
        %v826 = vadd.f32 0.0, %v825
        %v827 = vpop.f32.mrf.mxu0
        %v828 = vadd.f32 0.0, %v827
        %829 = vmatprep.mubr.f32.mxu0 0.0
        %830 = vmatmul.mubr.f32.gmra.mxu0 %v701
        %v831 = vpop.f32.mrf.mxu0
        %v832 = vadd.f32 0.0, %v831
        %v833 = vpop.f32.mrf.mxu0
        %v834 = vadd.f32 0.0, %v833
        %835 = vmatprep.mubr.f32.mxu0 0.0
        %836 = vmatmul.mubr.f32.gmra.mxu0 %v703
        %v837 = vpop.f32.mrf.mxu0
        %v838 = vadd.f32 0.0, %v837
        %v839 = vpop.f32.mrf.mxu0
        %v840 = vadd.f32 0.0, %v839
        %841 = vmatprep.mubr.f32.mxu0 0.0
        %842 = vmatmul.mubr.f32.gmra.mxu0 %v705
        %v843 = vpop.f32.mrf.mxu0
        %v844 = vadd.f32 0.0, %v843
        %v845 = vpop.f32.mrf.mxu0
        %v846 = vadd.f32 0.0, %v845
        %847 = vmatprep.mubr.f32.mxu0 0.0
        %848 = vmatmul.mubr.f32.gmra.mxu0 %v707
        %v849 = vpop.f32.mrf.mxu0
        %v850 = vadd.f32 0.0, %v849
        %v851 = vpop.f32.mrf.mxu0
        %v852 = vadd.f32 0.0, %v851
        %853 = vmatprep.mubr.f32.mxu0 0.0
        %854 = vmatmul.mubr.f32.gmra.mxu0 %v709
        %v855 = vpop.f32.mrf.mxu0
        %v856 = vadd.f32 0.0, %v855
        %v857 = vpop.f32.mrf.mxu0
        %v858 = vadd.f32 0.0, %v857
        %859 = vmatprep.mubr.f32.mxu0 0.0
        %860 = vmatmul.mubr.f32.gmra.mxu0 %v711
        %v861 = vpop.f32.mrf.mxu0
        %v862 = vadd.f32 0.0, %v861
        %v863 = vpop.f32.mrf.mxu0
        %v864 = vadd.f32 0.0, %v863
        %865 = vmatprep.mubr.f32.mxu0 0.0
        %866 = vmatmul.mubr.f32.gmra.mxu0 %v713
        %v867 = vpop.f32.mrf.mxu0
        %v868 = vadd.f32 0.0, %v867
        %v869 = vpop.f32.mrf.mxu0
        %v870 = vadd.f32 0.0, %v869
        %871 = vmatprep.mubr.f32.mxu0 0.0
        %872 = vmatmul.mubr.f32.gmra.mxu0 %v715
        %v873 = vpop.f32.mrf.mxu0
        %v874 = vadd.f32 0.0, %v873
        %v875 = vpop.f32.mrf.mxu0
        %v876 = vadd.f32 0.0, %v875
        %877 = vdwg.mxu0
        %878 = vmatprep.subr.mxu0 0.0
        %879 = vmatpush1.msra.mxu0 0.0
        %880 = vmatprep.subr.mxu0 0.0
        %881 = vmatpush1.msra.mxu0 0.0
        %882 = vmatprep.subr.mxu0 0.0
        %883 = vmatpush1.msra.mxu0 0.0
        %884 = vmatprep.subr.mxu0 0.0
        %885 = vmatpush1.msra.mxu0 0.0
        %886 = vmatprep.subr.mxu0 0.0
        %887 = vmatpush1.msra.mxu0 0.0
        %888 = vmatprep.subr.mxu0 0.0
        %889 = vmatpush1.msra.mxu0 0.0
        %890 = vmatprep.subr.mxu0 0.0
        %891 = vmatpush1.msra.mxu0 0.0
        %892 = vmatprep.subr.mxu0 0.0
        %893 = vmatpush1.msra.mxu0 0.0
        %894 = vmatprep.subr.mxu0 %v636
        %895 = vmatpush1.msra.mxu0 %v635
        %896 = vmatprep.subr.mxu0 %v632
        %897 = vmatpush1.msra.mxu0 %v631
        %898 = vmatprep.subr.mxu0 %v628
        %899 = vmatpush1.msra.mxu0 %v627
        %900 = vmatprep.subr.mxu0 %v624
        %901 = vmatpush1.msra.mxu0 %v623
        %902 = vmatprep.subr.mxu0 %v620
        %903 = vmatpush1.msra.mxu0 %v619
        %904 = vmatprep.subr.mxu0 %v616
        %905 = vmatpush1.msra.mxu0 %v615
        %906 = vmatprep.subr.mxu0 %v612
        %907 = vmatpush1.msra.mxu0 %v611
        %908 = vmatprep.subr.mxu0 %v608
        %909 = vmatpush1.msra.mxu0 %v607
        %910 = vmatprep.subr.mxu0 0.0
        %911 = vmatpush2.msra.mxu0 0.0
        %912 = vmatprep.subr.mxu0 0.0
        %913 = vmatpush2.msra.mxu0 0.0
        %914 = vmatprep.subr.mxu0 0.0
        %915 = vmatpush2.msra.mxu0 0.0
        %916 = vmatprep.subr.mxu0 0.0
        %917 = vmatpush2.msra.mxu0 0.0
        %918 = vmatprep.subr.mxu0 0.0
        %919 = vmatpush2.msra.mxu0 0.0
        %920 = vmatprep.subr.mxu0 0.0
        %921 = vmatpush2.msra.mxu0 0.0
        %922 = vmatprep.subr.mxu0 0.0
        %923 = vmatpush2.msra.mxu0 0.0
        %924 = vmatprep.subr.mxu0 0.0
        %925 = vmatpush2.msra.mxu0 0.0
        %926 = vmatprep.subr.mxu0 0.0
        %927 = vmatpush2.msra.mxu0 0.0
        %928 = vmatprep.subr.mxu0 0.0
        %929 = vmatpush2.msra.mxu0 0.0
        %930 = vmatprep.subr.mxu0 0.0
        %931 = vmatpush2.msra.mxu0 0.0
        %932 = vmatprep.subr.mxu0 0.0
        %933 = vmatpush2.msra.mxu0 0.0
        %934 = vmatprep.subr.mxu0 0.0
        %935 = vmatpush2.msra.mxu0 0.0
        %936 = vmatprep.subr.mxu0 0.0
        %937 = vmatpush2.msra.mxu0 0.0
        %938 = vmatprep.subr.mxu0 0.0
        %939 = vmatpush2.msra.mxu0 0.0
        %940 = vmatprep.subr.mxu0 0.0
        %941 = vmatpush2.msra.mxu0 0.0
        %942 = vmatprep.mubr.f32.mxu0 0.0
        %943 = vmatmul.mubr.f32.gmra.mxu0 %v685
        %v944 = vpop.f32.mrf.mxu0
        %v945 = vadd.f32 0.0, %v944
        %v946 = vpop.f32.mrf.mxu0
        %v947 = vadd.f32 0.0, %v946
        %948 = vmatprep.mubr.f32.mxu0 0.0
        %949 = vmatmul.mubr.f32.gmra.mxu0 %v687
        %v950 = vpop.f32.mrf.mxu0
        %v951 = vadd.f32 0.0, %v950
        %v952 = vpop.f32.mrf.mxu0
        %v953 = vadd.f32 0.0, %v952
        %954 = vmatprep.mubr.f32.mxu0 0.0
        %955 = vmatmul.mubr.f32.gmra.mxu0 %v689
        %v956 = vpop.f32.mrf.mxu0
        %v957 = vadd.f32 0.0, %v956
        %v958 = vpop.f32.mrf.mxu0
        %v959 = vadd.f32 0.0, %v958
        %960 = vmatprep.mubr.f32.mxu0 0.0
        %961 = vmatmul.mubr.f32.gmra.mxu0 %v691
        %v962 = vpop.f32.mrf.mxu0
        %v963 = vadd.f32 0.0, %v962
        %v964 = vpop.f32.mrf.mxu0
        %v965 = vadd.f32 0.0, %v964
        %966 = vmatprep.mubr.f32.mxu0 0.0
        %967 = vmatmul.mubr.f32.gmra.mxu0 %v693
        %v968 = vpop.f32.mrf.mxu0
        %v969 = vadd.f32 0.0, %v968
        %v970 = vpop.f32.mrf.mxu0
        %v971 = vadd.f32 0.0, %v970
        %972 = vmatprep.mubr.f32.mxu0 0.0
        %973 = vmatmul.mubr.f32.gmra.mxu0 %v695
        %v974 = vpop.f32.mrf.mxu0
        %v975 = vadd.f32 0.0, %v974
        %v976 = vpop.f32.mrf.mxu0
        %v977 = vadd.f32 0.0, %v976
        %978 = vmatprep.mubr.f32.mxu0 0.0
        %979 = vmatmul.mubr.f32.gmra.mxu0 %v697
        %v980 = vpop.f32.mrf.mxu0
        %v981 = vadd.f32 0.0, %v980
        %v982 = vpop.f32.mrf.mxu0
        %v983 = vadd.f32 0.0, %v982
        %984 = vmatprep.mubr.f32.mxu0 0.0
        %985 = vmatmul.mubr.f32.gmra.mxu0 %v699
        %v986 = vpop.f32.mrf.mxu0
        %v987 = vadd.f32 0.0, %v986
        %v988 = vpop.f32.mrf.mxu0
        %v989 = vadd.f32 0.0, %v988
        %990 = vmatprep.mubr.f32.mxu0 0.0
        %991 = vmatmul.mubr.f32.gmra.mxu0 %v701
        %v992 = vpop.f32.mrf.mxu0
        %v993 = vadd.f32 0.0, %v992
        %v994 = vpop.f32.mrf.mxu0
        %v995 = vadd.f32 0.0, %v994
        %996 = vmatprep.mubr.f32.mxu0 0.0
        %997 = vmatmul.mubr.f32.gmra.mxu0 %v703
        %v998 = vpop.f32.mrf.mxu0
        %v999 = vadd.f32 0.0, %v998
        %v1000 = vpop.f32.mrf.mxu0
        %v1001 = vadd.f32 0.0, %v1000
        %1002 = vmatprep.mubr.f32.mxu0 0.0
        %1003 = vmatmul.mubr.f32.gmra.mxu0 %v705
        %v1004 = vpop.f32.mrf.mxu0
        %v1005 = vadd.f32 0.0, %v1004
        %v1006 = vpop.f32.mrf.mxu0
        %v1007 = vadd.f32 0.0, %v1006
        %1008 = vmatprep.mubr.f32.mxu0 0.0
        %1009 = vmatmul.mubr.f32.gmra.mxu0 %v707
        %v1010 = vpop.f32.mrf.mxu0
        %v1011 = vadd.f32 0.0, %v1010
        %v1012 = vpop.f32.mrf.mxu0
        %v1013 = vadd.f32 0.0, %v1012
        %1014 = vmatprep.mubr.f32.mxu0 0.0
        %1015 = vmatmul.mubr.f32.gmra.mxu0 %v709
        %v1016 = vpop.f32.mrf.mxu0
        %v1017 = vadd.f32 0.0, %v1016
        %v1018 = vpop.f32.mrf.mxu0
        %v1019 = vadd.f32 0.0, %v1018
        %1020 = vmatprep.mubr.f32.mxu0 0.0
        %1021 = vmatmul.mubr.f32.gmra.mxu0 %v711
        %v1022 = vpop.f32.mrf.mxu0
        %v1023 = vadd.f32 0.0, %v1022
        %v1024 = vpop.f32.mrf.mxu0
        %v1025 = vadd.f32 0.0, %v1024
        %1026 = vmatprep.mubr.f32.mxu0 0.0
        %1027 = vmatmul.mubr.f32.gmra.mxu0 %v713
        %v1028 = vpop.f32.mrf.mxu0
        %v1029 = vadd.f32 0.0, %v1028
        %v1030 = vpop.f32.mrf.mxu0
        %v1031 = vadd.f32 0.0, %v1030
        %1032 = vmatprep.mubr.f32.mxu0 0.0
        %1033 = vmatmul.mubr.f32.gmra.mxu0 %v715
        %v1034 = vpop.f32.mrf.mxu0
        %v1035 = vadd.f32 0.0, %v1034
        %v1036 = vpop.f32.mrf.mxu0
        %v1037 = vadd.f32 0.0, %v1036
        %1038 = vdwg.mxu0
        %v1039 = vmul.f32 %v511, %v784
        %v1040 = vmul.f32 %v517, %v790
        %v1041 = vmul.f32 %v523, %v796
        %v1042 = vmul.f32 %v529, %v802
        %v1043 = vmul.f32 %v535, %v808
        %v1044 = vmul.f32 %v541, %v814
        %v1045 = vmul.f32 %v547, %v820
        %v1046 = vmul.f32 %v553, %v826
        %v1047 = vmul.f32 %v559, %v832
        %v1048 = vmul.f32 %v565, %v838
        %v1049 = vmul.f32 %v571, %v844
        %v1050 = vmul.f32 %v577, %v850
        %v1051 = vmul.f32 %v583, %v856
        %v1052 = vmul.f32 %v589, %v862
        %v1053 = vmul.f32 %v595, %v868
        %v1054 = vmul.f32 %v601, %v874
        %1071 = vrot.lane.b32.xlu0 %v784, 64
        %v1072 = vpop.permute.xlu0 %1071
        %1073 = vrot.lane.b32.xlu0 %v790, 64
        %v1074 = vpop.permute.xlu0 %1073
        %1075 = vrot.lane.b32.xlu0 %v796, 64
        %v1076 = vpop.permute.xlu0 %1075
        %1077 = vrot.lane.b32.xlu0 %v802, 64
        %v1078 = vpop.permute.xlu0 %1077
        %1079 = vrot.lane.b32.xlu0 %v808, 64
        %v1080 = vpop.permute.xlu0 %1079
        %1081 = vrot.lane.b32.xlu0 %v814, 64
        %v1082 = vpop.permute.xlu0 %1081
        %1083 = vrot.lane.b32.xlu0 %v820, 64
        %v1084 = vpop.permute.xlu0 %1083
        %1085 = vrot.lane.b32.xlu0 %v826, 64
        %v1086 = vpop.permute.xlu0 %1085
        %1087 = vrot.lane.b32.xlu0 %v832, 64
        %v1088 = vpop.permute.xlu0 %1087
        %1089 = vrot.lane.b32.xlu0 %v838, 64
        %v1090 = vpop.permute.xlu0 %1089
        %1091 = vrot.lane.b32.xlu0 %v844, 64
        %v1092 = vpop.permute.xlu0 %1091
        %1093 = vrot.lane.b32.xlu0 %v850, 64
        %v1094 = vpop.permute.xlu0 %1093
        %1095 = vrot.lane.b32.xlu0 %v856, 64
        %v1096 = vpop.permute.xlu0 %1095
        %1097 = vrot.lane.b32.xlu0 %v862, 64
        %v1098 = vpop.permute.xlu0 %1097
        %1099 = vrot.lane.b32.xlu0 %v868, 64
        %v1100 = vpop.permute.xlu0 %1099
        %1101 = vrot.lane.b32.xlu0 %v874, 64
        %v1102 = vpop.permute.xlu0 %1101
        %v1119 = vmul.f32 %v511, %v1072
        %v1120 = vmul.f32 %v517, %v1074
        %v1121 = vmul.f32 %v523, %v1076
        %v1122 = vmul.f32 %v529, %v1078
        %v1123 = vmul.f32 %v535, %v1080
        %v1124 = vmul.f32 %v541, %v1082
        %v1125 = vmul.f32 %v547, %v1084
        %v1126 = vmul.f32 %v553, %v1086
        %v1127 = vmul.f32 %v559, %v1088
        %v1128 = vmul.f32 %v565, %v1090
        %v1129 = vmul.f32 %v571, %v1092
        %v1130 = vmul.f32 %v577, %v1094
        %v1131 = vmul.f32 %v583, %v1096
        %v1132 = vmul.f32 %v589, %v1098
        %v1133 = vmul.f32 %v595, %v1100
        %v1134 = vmul.f32 %v601, %v1102
        %v1135 = vmax.f32 %v1039, %v1119
        %v1136 = vmax.f32 %v1040, %v1120
        %v1137 = vmax.f32 %v1041, %v1121
        %v1138 = vmax.f32 %v1042, %v1122
        %v1139 = vmax.f32 %v1043, %v1123
        %v1140 = vmax.f32 %v1044, %v1124
        %v1141 = vmax.f32 %v1045, %v1125
        %v1142 = vmax.f32 %v1046, %v1126
        %v1143 = vmax.f32 %v1047, %v1127
        %v1144 = vmax.f32 %v1048, %v1128
        %v1145 = vmax.f32 %v1049, %v1129
        %v1146 = vmax.f32 %v1050, %v1130
        %v1147 = vmax.f32 %v1051, %v1131
        %v1148 = vmax.f32 %v1052, %v1132
        %v1149 = vmax.f32 %v1053, %v1133
        %v1150 = vmax.f32 %v1054, %v1134
        %v1151 = vmul.f32 %v511, %v786
        %v1152 = vmul.f32 %v517, %v792
        %v1153 = vmul.f32 %v523, %v798
        %v1154 = vmul.f32 %v529, %v804
        %v1155 = vmul.f32 %v535, %v810
        %v1156 = vmul.f32 %v541, %v816
        %v1157 = vmul.f32 %v547, %v822
        %v1158 = vmul.f32 %v553, %v828
        %v1159 = vmul.f32 %v559, %v834
        %v1160 = vmul.f32 %v565, %v840
        %v1161 = vmul.f32 %v571, %v846
        %v1162 = vmul.f32 %v577, %v852
        %v1163 = vmul.f32 %v583, %v858
        %v1164 = vmul.f32 %v589, %v864
        %v1165 = vmul.f32 %v595, %v870
        %v1166 = vmul.f32 %v601, %v876
        %v1167 = vmax.f32 %v1135, %v1151
        %v1168 = vmax.f32 %v1136, %v1152
        %v1169 = vmax.f32 %v1137, %v1153
        %v1170 = vmax.f32 %v1138, %v1154
        %v1171 = vmax.f32 %v1139, %v1155
        %v1172 = vmax.f32 %v1140, %v1156
        %v1173 = vmax.f32 %v1141, %v1157
        %v1174 = vmax.f32 %v1142, %v1158
        %v1175 = vmax.f32 %v1143, %v1159
        %v1176 = vmax.f32 %v1144, %v1160
        %v1177 = vmax.f32 %v1145, %v1161
        %v1178 = vmax.f32 %v1146, %v1162
        %v1179 = vmax.f32 %v1147, %v1163
        %v1180 = vmax.f32 %v1148, %v1164
        %v1181 = vmax.f32 %v1149, %v1165
        %v1182 = vmax.f32 %v1150, %v1166
        %1199 = vrot.lane.b32.xlu0 %v786, 64
        %v1200 = vpop.permute.xlu0 %1199
        %1201 = vrot.lane.b32.xlu0 %v792, 64
        %v1202 = vpop.permute.xlu0 %1201
        %1203 = vrot.lane.b32.xlu0 %v798, 64
        %v1204 = vpop.permute.xlu0 %1203
        %1205 = vrot.lane.b32.xlu0 %v804, 64
        %v1206 = vpop.permute.xlu0 %1205
        %1207 = vrot.lane.b32.xlu0 %v810, 64
        %v1208 = vpop.permute.xlu0 %1207
        %1209 = vrot.lane.b32.xlu0 %v816, 64
        %v1210 = vpop.permute.xlu0 %1209
        %1211 = vrot.lane.b32.xlu0 %v822, 64
        %v1212 = vpop.permute.xlu0 %1211
        %1213 = vrot.lane.b32.xlu0 %v828, 64
        %v1214 = vpop.permute.xlu0 %1213
        %1215 = vrot.lane.b32.xlu0 %v834, 64
        %v1216 = vpop.permute.xlu0 %1215
        %1217 = vrot.lane.b32.xlu0 %v840, 64
        %v1218 = vpop.permute.xlu0 %1217
        %1219 = vrot.lane.b32.xlu0 %v846, 64
        %v1220 = vpop.permute.xlu0 %1219
        %1221 = vrot.lane.b32.xlu0 %v852, 64
        %v1222 = vpop.permute.xlu0 %1221
        %1223 = vrot.lane.b32.xlu0 %v858, 64
        %v1224 = vpop.permute.xlu0 %1223
        %1225 = vrot.lane.b32.xlu0 %v864, 64
        %v1226 = vpop.permute.xlu0 %1225
        %1227 = vrot.lane.b32.xlu0 %v870, 64
        %v1228 = vpop.permute.xlu0 %1227
        %1229 = vrot.lane.b32.xlu0 %v876, 64
        %v1230 = vpop.permute.xlu0 %1229
        %v1247 = vmul.f32 %v511, %v1200
        %v1248 = vmul.f32 %v517, %v1202
        %v1249 = vmul.f32 %v523, %v1204
        %v1250 = vmul.f32 %v529, %v1206
        %v1251 = vmul.f32 %v535, %v1208
        %v1252 = vmul.f32 %v541, %v1210
        %v1253 = vmul.f32 %v547, %v1212
        %v1254 = vmul.f32 %v553, %v1214
        %v1255 = vmul.f32 %v559, %v1216
        %v1256 = vmul.f32 %v565, %v1218
        %v1257 = vmul.f32 %v571, %v1220
        %v1258 = vmul.f32 %v577, %v1222
        %v1259 = vmul.f32 %v583, %v1224
        %v1260 = vmul.f32 %v589, %v1226
        %v1261 = vmul.f32 %v595, %v1228
        %v1262 = vmul.f32 %v601, %v1230
        %v1263 = vmax.f32 %v1167, %v1247
        %v1264 = vmax.f32 %v1168, %v1248
        %v1265 = vmax.f32 %v1169, %v1249
        %v1266 = vmax.f32 %v1170, %v1250
        %v1267 = vmax.f32 %v1171, %v1251
        %v1268 = vmax.f32 %v1172, %v1252
        %v1269 = vmax.f32 %v1173, %v1253
        %v1270 = vmax.f32 %v1174, %v1254
        %v1271 = vmax.f32 %v1175, %v1255
        %v1272 = vmax.f32 %v1176, %v1256
        %v1273 = vmax.f32 %v1177, %v1257
        %v1274 = vmax.f32 %v1178, %v1258
        %v1275 = vmax.f32 %v1179, %v1259
        %v1276 = vmax.f32 %v1180, %v1260
        %v1277 = vmax.f32 %v1181, %v1261
        %v1278 = vmax.f32 %v1182, %v1262
        %v1279 = vmul.f32 %v511, %v945
        %v1280 = vmul.f32 %v517, %v951
        %v1281 = vmul.f32 %v523, %v957
        %v1282 = vmul.f32 %v529, %v963
        %v1283 = vmul.f32 %v535, %v969
        %v1284 = vmul.f32 %v541, %v975
        %v1285 = vmul.f32 %v547, %v981
        %v1286 = vmul.f32 %v553, %v987
        %v1287 = vmul.f32 %v559, %v993
        %v1288 = vmul.f32 %v565, %v999
        %v1289 = vmul.f32 %v571, %v1005
        %v1290 = vmul.f32 %v577, %v1011
        %v1291 = vmul.f32 %v583, %v1017
        %v1292 = vmul.f32 %v589, %v1023
        %v1293 = vmul.f32 %v595, %v1029
        %v1294 = vmul.f32 %v601, %v1035
        %v1295 = vmax.f32 %v1263, %v1279
        %v1296 = vmax.f32 %v1264, %v1280
        %v1297 = vmax.f32 %v1265, %v1281
        %v1298 = vmax.f32 %v1266, %v1282
        %v1299 = vmax.f32 %v1267, %v1283
        %v1300 = vmax.f32 %v1268, %v1284
        %v1301 = vmax.f32 %v1269, %v1285
        %v1302 = vmax.f32 %v1270, %v1286
        %v1303 = vmax.f32 %v1271, %v1287
        %v1304 = vmax.f32 %v1272, %v1288
        %v1305 = vmax.f32 %v1273, %v1289
        %v1306 = vmax.f32 %v1274, %v1290
        %v1307 = vmax.f32 %v1275, %v1291
        %v1308 = vmax.f32 %v1276, %v1292
        %v1309 = vmax.f32 %v1277, %v1293
        %v1310 = vmax.f32 %v1278, %v1294
        %1327 = vrot.lane.b32.xlu0 %v945, 64
        %v1328 = vpop.permute.xlu0 %1327
        %1329 = vrot.lane.b32.xlu0 %v951, 64
        %v1330 = vpop.permute.xlu0 %1329
        %1331 = vrot.lane.b32.xlu0 %v957, 64
        %v1332 = vpop.permute.xlu0 %1331
        %1333 = vrot.lane.b32.xlu0 %v963, 64
        %v1334 = vpop.permute.xlu0 %1333
        %1335 = vrot.lane.b32.xlu0 %v969, 64
        %v1336 = vpop.permute.xlu0 %1335
        %1337 = vrot.lane.b32.xlu0 %v975, 64
        %v1338 = vpop.permute.xlu0 %1337
        %1339 = vrot.lane.b32.xlu0 %v981, 64
        %v1340 = vpop.permute.xlu0 %1339
        %1341 = vrot.lane.b32.xlu0 %v987, 64
        %v1342 = vpop.permute.xlu0 %1341
        %1343 = vrot.lane.b32.xlu0 %v993, 64
        %v1344 = vpop.permute.xlu0 %1343
        %1345 = vrot.lane.b32.xlu0 %v999, 64
        %v1346 = vpop.permute.xlu0 %1345
        %1347 = vrot.lane.b32.xlu0 %v1005, 64
        %v1348 = vpop.permute.xlu0 %1347
        %1349 = vrot.lane.b32.xlu0 %v1011, 64
        %v1350 = vpop.permute.xlu0 %1349
        %1351 = vrot.lane.b32.xlu0 %v1017, 64
        %v1352 = vpop.permute.xlu0 %1351
        %1353 = vrot.lane.b32.xlu0 %v1023, 64
        %v1354 = vpop.permute.xlu0 %1353
        %1355 = vrot.lane.b32.xlu0 %v1029, 64
        %v1356 = vpop.permute.xlu0 %1355
        %1357 = vrot.lane.b32.xlu0 %v1035, 64
        %v1358 = vpop.permute.xlu0 %1357
        %v1375 = vmul.f32 %v511, %v1328
        %v1376 = vmul.f32 %v517, %v1330
        %v1377 = vmul.f32 %v523, %v1332
        %v1378 = vmul.f32 %v529, %v1334
        %v1379 = vmul.f32 %v535, %v1336
        %v1380 = vmul.f32 %v541, %v1338
        %v1381 = vmul.f32 %v547, %v1340
        %v1382 = vmul.f32 %v553, %v1342
        %v1383 = vmul.f32 %v559, %v1344
        %v1384 = vmul.f32 %v565, %v1346
        %v1385 = vmul.f32 %v571, %v1348
        %v1386 = vmul.f32 %v577, %v1350
        %v1387 = vmul.f32 %v583, %v1352
        %v1388 = vmul.f32 %v589, %v1354
        %v1389 = vmul.f32 %v595, %v1356
        %v1390 = vmul.f32 %v601, %v1358
        %v1391 = vmax.f32 %v1295, %v1375
        %v1392 = vmax.f32 %v1296, %v1376
        %v1393 = vmax.f32 %v1297, %v1377
        %v1394 = vmax.f32 %v1298, %v1378
        %v1395 = vmax.f32 %v1299, %v1379
        %v1396 = vmax.f32 %v1300, %v1380
        %v1397 = vmax.f32 %v1301, %v1381
        %v1398 = vmax.f32 %v1302, %v1382
        %v1399 = vmax.f32 %v1303, %v1383
        %v1400 = vmax.f32 %v1304, %v1384
        %v1401 = vmax.f32 %v1305, %v1385
        %v1402 = vmax.f32 %v1306, %v1386
        %v1403 = vmax.f32 %v1307, %v1387
        %v1404 = vmax.f32 %v1308, %v1388
        %v1405 = vmax.f32 %v1309, %v1389
        %v1406 = vmax.f32 %v1310, %v1390
        %v1407 = vmul.f32 %v511, %v947
        %v1408 = vmul.f32 %v517, %v953
        %v1409 = vmul.f32 %v523, %v959
        %v1410 = vmul.f32 %v529, %v965
        %v1411 = vmul.f32 %v535, %v971
        %v1412 = vmul.f32 %v541, %v977
        %v1413 = vmul.f32 %v547, %v983
        %v1414 = vmul.f32 %v553, %v989
        %v1415 = vmul.f32 %v559, %v995
        %v1416 = vmul.f32 %v565, %v1001
        %v1417 = vmul.f32 %v571, %v1007
        %v1418 = vmul.f32 %v577, %v1013
        %v1419 = vmul.f32 %v583, %v1019
        %v1420 = vmul.f32 %v589, %v1025
        %v1421 = vmul.f32 %v595, %v1031
        %v1422 = vmul.f32 %v601, %v1037
        %v1423 = vmax.f32 %v1391, %v1407
        %v1424 = vmax.f32 %v1392, %v1408
        %v1425 = vmax.f32 %v1393, %v1409
        %v1426 = vmax.f32 %v1394, %v1410
        %v1427 = vmax.f32 %v1395, %v1411
        %v1428 = vmax.f32 %v1396, %v1412
        %v1429 = vmax.f32 %v1397, %v1413
        %v1430 = vmax.f32 %v1398, %v1414
        %v1431 = vmax.f32 %v1399, %v1415
        %v1432 = vmax.f32 %v1400, %v1416
        %v1433 = vmax.f32 %v1401, %v1417
        %v1434 = vmax.f32 %v1402, %v1418
        %v1435 = vmax.f32 %v1403, %v1419
        %v1436 = vmax.f32 %v1404, %v1420
        %v1437 = vmax.f32 %v1405, %v1421
        %v1438 = vmax.f32 %v1406, %v1422
        %1455 = vrot.lane.b32.xlu0 %v947, 64
        %v1456 = vpop.permute.xlu0 %1455
        %1457 = vrot.lane.b32.xlu0 %v953, 64
        %v1458 = vpop.permute.xlu0 %1457
        %1459 = vrot.lane.b32.xlu0 %v959, 64
        %v1460 = vpop.permute.xlu0 %1459
        %1461 = vrot.lane.b32.xlu0 %v965, 64
        %v1462 = vpop.permute.xlu0 %1461
        %1463 = vrot.lane.b32.xlu0 %v971, 64
        %v1464 = vpop.permute.xlu0 %1463
        %1465 = vrot.lane.b32.xlu0 %v977, 64
        %v1466 = vpop.permute.xlu0 %1465
        %1467 = vrot.lane.b32.xlu0 %v983, 64
        %v1468 = vpop.permute.xlu0 %1467
        %1469 = vrot.lane.b32.xlu0 %v989, 64
        %v1470 = vpop.permute.xlu0 %1469
        %1471 = vrot.lane.b32.xlu0 %v995, 64
        %v1472 = vpop.permute.xlu0 %1471
        %1473 = vrot.lane.b32.xlu0 %v1001, 64
        %v1474 = vpop.permute.xlu0 %1473
        %1475 = vrot.lane.b32.xlu0 %v1007, 64
        %v1476 = vpop.permute.xlu0 %1475
        %1477 = vrot.lane.b32.xlu0 %v1013, 64
        %v1478 = vpop.permute.xlu0 %1477
        %1479 = vrot.lane.b32.xlu0 %v1019, 64
        %v1480 = vpop.permute.xlu0 %1479
        %1481 = vrot.lane.b32.xlu0 %v1025, 64
        %v1482 = vpop.permute.xlu0 %1481
        %1483 = vrot.lane.b32.xlu0 %v1031, 64
        %v1484 = vpop.permute.xlu0 %1483
        %1485 = vrot.lane.b32.xlu0 %v1037, 64
        %v1486 = vpop.permute.xlu0 %1485
        %v1503 = vmul.f32 %v511, %v1456
        %v1504 = vmul.f32 %v517, %v1458
        %v1505 = vmul.f32 %v523, %v1460
        %v1506 = vmul.f32 %v529, %v1462
        %v1507 = vmul.f32 %v535, %v1464
        %v1508 = vmul.f32 %v541, %v1466
        %v1509 = vmul.f32 %v547, %v1468
        %v1510 = vmul.f32 %v553, %v1470
        %v1511 = vmul.f32 %v559, %v1472
        %v1512 = vmul.f32 %v565, %v1474
        %v1513 = vmul.f32 %v571, %v1476
        %v1514 = vmul.f32 %v577, %v1478
        %v1515 = vmul.f32 %v583, %v1480
        %v1516 = vmul.f32 %v589, %v1482
        %v1517 = vmul.f32 %v595, %v1484
        %v1518 = vmul.f32 %v601, %v1486
        %v1519 = vmax.f32 %v1423, %v1503
        %v1520 = vmax.f32 %v1424, %v1504
        %v1521 = vmax.f32 %v1425, %v1505
        %v1522 = vmax.f32 %v1426, %v1506
        %v1523 = vmax.f32 %v1427, %v1507
        %v1524 = vmax.f32 %v1428, %v1508
        %v1525 = vmax.f32 %v1429, %v1509
        %v1526 = vmax.f32 %v1430, %v1510
        %v1527 = vmax.f32 %v1431, %v1511
        %v1528 = vmax.f32 %v1432, %v1512
        %v1529 = vmax.f32 %v1433, %v1513
        %v1530 = vmax.f32 %v1434, %v1514
        %v1531 = vmax.f32 %v1435, %v1515
        %v1532 = vmax.f32 %v1436, %v1516
        %v1533 = vmax.f32 %v1437, %v1517
        %v1534 = vmax.f32 %v1438, %v1518
        %v1535 = vld [vmem:[%s5] sm:$0xff]
        %v1536 = vld [vmem:[%s5 + $0x8] sm:$0xff]
        %v1537 = vld [vmem:[%s5 + $0x10] sm:$0xff]
        %v1538 = vld [vmem:[%s5 + $0x18] sm:$0xff]
        %v1539 = vld [vmem:[%s5 + $0x20] sm:$0xff]
        %v1540 = vld [vmem:[%s5 + $0x28] sm:$0xff]
        %v1541 = vld [vmem:[%s5 + $0x30] sm:$0xff]
        %v1542 = vld [vmem:[%s5 + $0x38] sm:$0xff]
        %v1543 = vld [vmem:[%s5 + $0x40] sm:$0xff]
        %v1544 = vld [vmem:[%s5 + $0x48] sm:$0xff]
        %v1545 = vld [vmem:[%s5 + $0x50] sm:$0xff]
        %v1546 = vld [vmem:[%s5 + $0x58] sm:$0xff]
        %v1547 = vld [vmem:[%s5 + $0x60] sm:$0xff]
        %v1548 = vld [vmem:[%s5 + $0x68] sm:$0xff]
        %v1549 = vld [vmem:[%s5 + $0x70] sm:$0xff]
        %v1550 = vld [vmem:[%s5 + $0x78] sm:$0xff]
        %v1551 = vld [vmem:[%s5 + $0x80] sm:$0xff]
        %v1552 = vld [vmem:[%s5 + $0x88] sm:$0xff]
        %v1553 = vld [vmem:[%s5 + $0x90] sm:$0xff]
        %v1554 = vld [vmem:[%s5 + $0x98] sm:$0xff]
        %v1555 = vld [vmem:[%s5 + $0xa0] sm:$0xff]
        %v1556 = vld [vmem:[%s5 + $0xa8] sm:$0xff]
        %v1557 = vld [vmem:[%s5 + $0xb0] sm:$0xff]
        %v1558 = vld [vmem:[%s5 + $0xb8] sm:$0xff]
        %v1559 = vld [vmem:[%s5 + $0xc0] sm:$0xff]
        %v1560 = vld [vmem:[%s5 + $0xc8] sm:$0xff]
        %v1561 = vld [vmem:[%s5 + $0xd0] sm:$0xff]
        %v1562 = vld [vmem:[%s5 + $0xd8] sm:$0xff]
        %v1563 = vld [vmem:[%s5 + $0xe0] sm:$0xff]
        %v1564 = vld [vmem:[%s5 + $0xe8] sm:$0xff]
        %v1565 = vld [vmem:[%s5 + $0xf0] sm:$0xff]
        %v1566 = vld [vmem:[%s5 + $0xf8] sm:$0xff]
        %v1567 = vsel %vm395, %v511, 0
        %v1569 = vsel %vm395, %v517, 0
        %v1571 = vsel %vm395, %v523, 0
        %v1573 = vsel %vm395, %v529, 0
        %v1575 = vsel %vm395, %v535, 0
        %v1577 = vsel %vm395, %v541, 0
        %v1579 = vsel %vm395, %v547, 0
        %v1581 = vsel %vm395, %v553, 0
        %v1583 = vsel %vm395, %v559, 0
        %v1585 = vsel %vm395, %v565, 0
        %v1587 = vsel %vm395, %v571, 0
        %v1589 = vsel %vm395, %v577, 0
        %v1591 = vsel %vm395, %v583, 0
        %v1593 = vsel %vm395, %v589, 0
        %v1595 = vsel %vm395, %v595, 0
        %v1597 = vsel %vm395, %v601, 0
        %1599 = vmatprep.subr.mxu0 0.0
        %1600 = vmatpush1.msra.mxu0 0.0
        %1601 = vmatprep.subr.mxu0 0.0
        %1602 = vmatpush1.msra.mxu0 0.0
        %1603 = vmatprep.subr.mxu0 0.0
        %1604 = vmatpush1.msra.mxu0 0.0
        %1605 = vmatprep.subr.mxu0 0.0
        %1606 = vmatpush1.msra.mxu0 0.0
        %1607 = vmatprep.subr.mxu0 0.0
        %1608 = vmatpush1.msra.mxu0 0.0
        %1609 = vmatprep.subr.mxu0 0.0
        %1610 = vmatpush1.msra.mxu0 0.0
        %1611 = vmatprep.subr.mxu0 0.0
        %1612 = vmatpush1.msra.mxu0 0.0
        %1613 = vmatprep.subr.mxu0 0.0
        %1614 = vmatpush1.msra.mxu0 0.0
        %1615 = vmatprep.subr.mxu0 %v1564
        %1616 = vmatpush1.msra.mxu0 %v1563
        %1617 = vmatprep.subr.mxu0 %v1560
        %1618 = vmatpush1.msra.mxu0 %v1559
        %1619 = vmatprep.subr.mxu0 %v1556
        %1620 = vmatpush1.msra.mxu0 %v1555
        %1621 = vmatprep.subr.mxu0 %v1552
        %1622 = vmatpush1.msra.mxu0 %v1551
        %1623 = vmatprep.subr.mxu0 %v1548
        %1624 = vmatpush1.msra.mxu0 %v1547
        %1625 = vmatprep.subr.mxu0 %v1544
        %1626 = vmatpush1.msra.mxu0 %v1543
        %1627 = vmatprep.subr.mxu0 %v1540
        %1628 = vmatpush1.msra.mxu0 %v1539
        %1629 = vmatprep.subr.mxu0 %v1536
        %1630 = vmatpush1.msra.mxu0 %v1535
        %1631 = vmatprep.subr.mxu0 0.0
        %1632 = vmatpush2.msra.mxu0 0.0
        %1633 = vmatprep.subr.mxu0 0.0
        %1634 = vmatpush2.msra.mxu0 0.0
        %1635 = vmatprep.subr.mxu0 0.0
        %1636 = vmatpush2.msra.mxu0 0.0
        %1637 = vmatprep.subr.mxu0 0.0
        %1638 = vmatpush2.msra.mxu0 0.0
        %1639 = vmatprep.subr.mxu0 0.0
        %1640 = vmatpush2.msra.mxu0 0.0
        %1641 = vmatprep.subr.mxu0 0.0
        %1642 = vmatpush2.msra.mxu0 0.0
        %1643 = vmatprep.subr.mxu0 0.0
        %1644 = vmatpush2.msra.mxu0 0.0
        %1645 = vmatprep.subr.mxu0 0.0
        %1646 = vmatpush2.msra.mxu0 0.0
        %1647 = vmatprep.subr.mxu0 0.0
        %1648 = vmatpush2.msra.mxu0 0.0
        %1649 = vmatprep.subr.mxu0 0.0
        %1650 = vmatpush2.msra.mxu0 0.0
        %1651 = vmatprep.subr.mxu0 0.0
        %1652 = vmatpush2.msra.mxu0 0.0
        %1653 = vmatprep.subr.mxu0 0.0
        %1654 = vmatpush2.msra.mxu0 0.0
        %1655 = vmatprep.subr.mxu0 0.0
        %1656 = vmatpush2.msra.mxu0 0.0
        %1657 = vmatprep.subr.mxu0 0.0
        %1658 = vmatpush2.msra.mxu0 0.0
        %1659 = vmatprep.subr.mxu0 0.0
        %1660 = vmatpush2.msra.mxu0 0.0
        %1661 = vmatprep.subr.mxu0 0.0
        %1662 = vmatpush2.msra.mxu0 0.0
        %1663 = vmatprep.mubr.f32.mxu0 0.0
        %1664 = vmatmul.mubr.f32.gmra.mxu0 %v1567
        %v1665 = vpop.f32.mrf.mxu0
        %v1666 = vadd.f32 0.0, %v1665
        %v1667 = vpop.f32.mrf.mxu0
        %v1668 = vadd.f32 0.0, %v1667
        %1669 = vmatprep.mubr.f32.mxu0 0.0
        %1670 = vmatmul.mubr.f32.gmra.mxu0 %v1569
        %v1671 = vpop.f32.mrf.mxu0
        %v1672 = vadd.f32 0.0, %v1671
        %v1673 = vpop.f32.mrf.mxu0
        %v1674 = vadd.f32 0.0, %v1673
        %1675 = vmatprep.mubr.f32.mxu0 0.0
        %1676 = vmatmul.mubr.f32.gmra.mxu0 %v1571
        %v1677 = vpop.f32.mrf.mxu0
        %v1678 = vadd.f32 0.0, %v1677
        %v1679 = vpop.f32.mrf.mxu0
        %v1680 = vadd.f32 0.0, %v1679
        %1681 = vmatprep.mubr.f32.mxu0 0.0
        %1682 = vmatmul.mubr.f32.gmra.mxu0 %v1573
        %v1683 = vpop.f32.mrf.mxu0
        %v1684 = vadd.f32 0.0, %v1683
        %v1685 = vpop.f32.mrf.mxu0
        %v1686 = vadd.f32 0.0, %v1685
        %1687 = vmatprep.mubr.f32.mxu0 0.0
        %1688 = vmatmul.mubr.f32.gmra.mxu0 %v1575
        %v1689 = vpop.f32.mrf.mxu0
        %v1690 = vadd.f32 0.0, %v1689
        %v1691 = vpop.f32.mrf.mxu0
        %v1692 = vadd.f32 0.0, %v1691
        %1693 = vmatprep.mubr.f32.mxu0 0.0
        %1694 = vmatmul.mubr.f32.gmra.mxu0 %v1577
        %v1695 = vpop.f32.mrf.mxu0
        %v1696 = vadd.f32 0.0, %v1695
        %v1697 = vpop.f32.mrf.mxu0
        %v1698 = vadd.f32 0.0, %v1697
        %1699 = vmatprep.mubr.f32.mxu0 0.0
        %1700 = vmatmul.mubr.f32.gmra.mxu0 %v1579
        %v1701 = vpop.f32.mrf.mxu0
        %v1702 = vadd.f32 0.0, %v1701
        %v1703 = vpop.f32.mrf.mxu0
        %v1704 = vadd.f32 0.0, %v1703
        %1705 = vmatprep.mubr.f32.mxu0 0.0
        %1706 = vmatmul.mubr.f32.gmra.mxu0 %v1581
        %v1707 = vpop.f32.mrf.mxu0
        %v1708 = vadd.f32 0.0, %v1707
        %v1709 = vpop.f32.mrf.mxu0
        %v1710 = vadd.f32 0.0, %v1709
        %1711 = vmatprep.mubr.f32.mxu0 0.0
        %1712 = vmatmul.mubr.f32.gmra.mxu0 %v1583
        %v1713 = vpop.f32.mrf.mxu0
        %v1714 = vadd.f32 0.0, %v1713
        %v1715 = vpop.f32.mrf.mxu0
        %v1716 = vadd.f32 0.0, %v1715
        %1717 = vmatprep.mubr.f32.mxu0 0.0
        %1718 = vmatmul.mubr.f32.gmra.mxu0 %v1585
        %v1719 = vpop.f32.mrf.mxu0
        %v1720 = vadd.f32 0.0, %v1719
        %v1721 = vpop.f32.mrf.mxu0
        %v1722 = vadd.f32 0.0, %v1721
        %1723 = vmatprep.mubr.f32.mxu0 0.0
        %1724 = vmatmul.mubr.f32.gmra.mxu0 %v1587
        %v1725 = vpop.f32.mrf.mxu0
        %v1726 = vadd.f32 0.0, %v1725
        %v1727 = vpop.f32.mrf.mxu0
        %v1728 = vadd.f32 0.0, %v1727
        %1729 = vmatprep.mubr.f32.mxu0 0.0
        %1730 = vmatmul.mubr.f32.gmra.mxu0 %v1589
        %v1731 = vpop.f32.mrf.mxu0
        %v1732 = vadd.f32 0.0, %v1731
        %v1733 = vpop.f32.mrf.mxu0
        %v1734 = vadd.f32 0.0, %v1733
        %1735 = vmatprep.mubr.f32.mxu0 0.0
        %1736 = vmatmul.mubr.f32.gmra.mxu0 %v1591
        %v1737 = vpop.f32.mrf.mxu0
        %v1738 = vadd.f32 0.0, %v1737
        %v1739 = vpop.f32.mrf.mxu0
        %v1740 = vadd.f32 0.0, %v1739
        %1741 = vmatprep.mubr.f32.mxu0 0.0
        %1742 = vmatmul.mubr.f32.gmra.mxu0 %v1593
        %v1743 = vpop.f32.mrf.mxu0
        %v1744 = vadd.f32 0.0, %v1743
        %v1745 = vpop.f32.mrf.mxu0
        %v1746 = vadd.f32 0.0, %v1745
        %1747 = vmatprep.mubr.f32.mxu0 0.0
        %1748 = vmatmul.mubr.f32.gmra.mxu0 %v1595
        %v1749 = vpop.f32.mrf.mxu0
        %v1750 = vadd.f32 0.0, %v1749
        %v1751 = vpop.f32.mrf.mxu0
        %v1752 = vadd.f32 0.0, %v1751
        %1753 = vmatprep.mubr.f32.mxu0 0.0
        %1754 = vmatmul.mubr.f32.gmra.mxu0 %v1597
        %v1755 = vpop.f32.mrf.mxu0
        %v1756 = vadd.f32 0.0, %v1755
        %v1757 = vpop.f32.mrf.mxu0
        %v1758 = vadd.f32 0.0, %v1757
        %1759 = vdwg.mxu0
        %1760 = vmatprep.subr.mxu0 0.0
        %1761 = vmatpush1.msra.mxu0 0.0
        %1762 = vmatprep.subr.mxu0 0.0
        %1763 = vmatpush1.msra.mxu0 0.0
        %1764 = vmatprep.subr.mxu0 0.0
        %1765 = vmatpush1.msra.mxu0 0.0
        %1766 = vmatprep.subr.mxu0 0.0
        %1767 = vmatpush1.msra.mxu0 0.0
        %1768 = vmatprep.subr.mxu0 0.0
        %1769 = vmatpush1.msra.mxu0 0.0
        %1770 = vmatprep.subr.mxu0 0.0
        %1771 = vmatpush1.msra.mxu0 0.0
        %1772 = vmatprep.subr.mxu0 0.0
        %1773 = vmatpush1.msra.mxu0 0.0
        %1774 = vmatprep.subr.mxu0 0.0
        %1775 = vmatpush1.msra.mxu0 0.0
        %1776 = vmatprep.subr.mxu0 %v1566
        %1777 = vmatpush1.msra.mxu0 %v1565
        %1778 = vmatprep.subr.mxu0 %v1562
        %1779 = vmatpush1.msra.mxu0 %v1561
        %1780 = vmatprep.subr.mxu0 %v1558
        %1781 = vmatpush1.msra.mxu0 %v1557
        %1782 = vmatprep.subr.mxu0 %v1554
        %1783 = vmatpush1.msra.mxu0 %v1553
        %1784 = vmatprep.subr.mxu0 %v1550
        %1785 = vmatpush1.msra.mxu0 %v1549
        %1786 = vmatprep.subr.mxu0 %v1546
        %1787 = vmatpush1.msra.mxu0 %v1545
        %1788 = vmatprep.subr.mxu0 %v1542
        %1789 = vmatpush1.msra.mxu0 %v1541
        %1790 = vmatprep.subr.mxu0 %v1538
        %1791 = vmatpush1.msra.mxu0 %v1537
        %1792 = vmatprep.subr.mxu0 0.0
        %1793 = vmatpush2.msra.mxu0 0.0
        %1794 = vmatprep.subr.mxu0 0.0
        %1795 = vmatpush2.msra.mxu0 0.0
        %1796 = vmatprep.subr.mxu0 0.0
        %1797 = vmatpush2.msra.mxu0 0.0
        %1798 = vmatprep.subr.mxu0 0.0
        %1799 = vmatpush2.msra.mxu0 0.0
        %1800 = vmatprep.subr.mxu0 0.0
        %1801 = vmatpush2.msra.mxu0 0.0
        %1802 = vmatprep.subr.mxu0 0.0
        %1803 = vmatpush2.msra.mxu0 0.0
        %1804 = vmatprep.subr.mxu0 0.0
        %1805 = vmatpush2.msra.mxu0 0.0
        %1806 = vmatprep.subr.mxu0 0.0
        %1807 = vmatpush2.msra.mxu0 0.0
        %1808 = vmatprep.subr.mxu0 0.0
        %1809 = vmatpush2.msra.mxu0 0.0
        %1810 = vmatprep.subr.mxu0 0.0
        %1811 = vmatpush2.msra.mxu0 0.0
        %1812 = vmatprep.subr.mxu0 0.0
        %1813 = vmatpush2.msra.mxu0 0.0
        %1814 = vmatprep.subr.mxu0 0.0
        %1815 = vmatpush2.msra.mxu0 0.0
        %1816 = vmatprep.subr.mxu0 0.0
        %1817 = vmatpush2.msra.mxu0 0.0
        %1818 = vmatprep.subr.mxu0 0.0
        %1819 = vmatpush2.msra.mxu0 0.0
        %1820 = vmatprep.subr.mxu0 0.0
        %1821 = vmatpush2.msra.mxu0 0.0
        %1822 = vmatprep.subr.mxu0 0.0
        %1823 = vmatpush2.msra.mxu0 0.0
        %1824 = vmatprep.mubr.f32.mxu0 0.0
        %1825 = vmatmul.mubr.f32.gmra.mxu0 %v1567
        %v1826 = vpop.f32.mrf.mxu0
        %v1827 = vadd.f32 0.0, %v1826
        %v1828 = vpop.f32.mrf.mxu0
        %v1829 = vadd.f32 0.0, %v1828
        %1830 = vmatprep.mubr.f32.mxu0 0.0
        %1831 = vmatmul.mubr.f32.gmra.mxu0 %v1569
        %v1832 = vpop.f32.mrf.mxu0
        %v1833 = vadd.f32 0.0, %v1832
        %v1834 = vpop.f32.mrf.mxu0
        %v1835 = vadd.f32 0.0, %v1834
        %1836 = vmatprep.mubr.f32.mxu0 0.0
        %1837 = vmatmul.mubr.f32.gmra.mxu0 %v1571
        %v1838 = vpop.f32.mrf.mxu0
        %v1839 = vadd.f32 0.0, %v1838
        %v1840 = vpop.f32.mrf.mxu0
        %v1841 = vadd.f32 0.0, %v1840
        %1842 = vmatprep.mubr.f32.mxu0 0.0
        %1843 = vmatmul.mubr.f32.gmra.mxu0 %v1573
        %v1844 = vpop.f32.mrf.mxu0
        %v1845 = vadd.f32 0.0, %v1844
        %v1846 = vpop.f32.mrf.mxu0
        %v1847 = vadd.f32 0.0, %v1846
        %1848 = vmatprep.mubr.f32.mxu0 0.0
        %1849 = vmatmul.mubr.f32.gmra.mxu0 %v1575
        %v1850 = vpop.f32.mrf.mxu0
        %v1851 = vadd.f32 0.0, %v1850
        %v1852 = vpop.f32.mrf.mxu0
        %v1853 = vadd.f32 0.0, %v1852
        %1854 = vmatprep.mubr.f32.mxu0 0.0
        %1855 = vmatmul.mubr.f32.gmra.mxu0 %v1577
        %v1856 = vpop.f32.mrf.mxu0
        %v1857 = vadd.f32 0.0, %v1856
        %v1858 = vpop.f32.mrf.mxu0
        %v1859 = vadd.f32 0.0, %v1858
        %1860 = vmatprep.mubr.f32.mxu0 0.0
        %1861 = vmatmul.mubr.f32.gmra.mxu0 %v1579
        %v1862 = vpop.f32.mrf.mxu0
        %v1863 = vadd.f32 0.0, %v1862
        %v1864 = vpop.f32.mrf.mxu0
        %v1865 = vadd.f32 0.0, %v1864
        %1866 = vmatprep.mubr.f32.mxu0 0.0
        %1867 = vmatmul.mubr.f32.gmra.mxu0 %v1581
        %v1868 = vpop.f32.mrf.mxu0
        %v1869 = vadd.f32 0.0, %v1868
        %v1870 = vpop.f32.mrf.mxu0
        %v1871 = vadd.f32 0.0, %v1870
        %1872 = vmatprep.mubr.f32.mxu0 0.0
        %1873 = vmatmul.mubr.f32.gmra.mxu0 %v1583
        %v1874 = vpop.f32.mrf.mxu0
        %v1875 = vadd.f32 0.0, %v1874
        %v1876 = vpop.f32.mrf.mxu0
        %v1877 = vadd.f32 0.0, %v1876
        %1878 = vmatprep.mubr.f32.mxu0 0.0
        %1879 = vmatmul.mubr.f32.gmra.mxu0 %v1585
        %v1880 = vpop.f32.mrf.mxu0
        %v1881 = vadd.f32 0.0, %v1880
        %v1882 = vpop.f32.mrf.mxu0
        %v1883 = vadd.f32 0.0, %v1882
        %1884 = vmatprep.mubr.f32.mxu0 0.0
        %1885 = vmatmul.mubr.f32.gmra.mxu0 %v1587
        %v1886 = vpop.f32.mrf.mxu0
        %v1887 = vadd.f32 0.0, %v1886
        %v1888 = vpop.f32.mrf.mxu0
        %v1889 = vadd.f32 0.0, %v1888
        %1890 = vmatprep.mubr.f32.mxu0 0.0
        %1891 = vmatmul.mubr.f32.gmra.mxu0 %v1589
        %v1892 = vpop.f32.mrf.mxu0
        %v1893 = vadd.f32 0.0, %v1892
        %v1894 = vpop.f32.mrf.mxu0
        %v1895 = vadd.f32 0.0, %v1894
        %1896 = vmatprep.mubr.f32.mxu0 0.0
        %1897 = vmatmul.mubr.f32.gmra.mxu0 %v1591
        %v1898 = vpop.f32.mrf.mxu0
        %v1899 = vadd.f32 0.0, %v1898
        %v1900 = vpop.f32.mrf.mxu0
        %v1901 = vadd.f32 0.0, %v1900
        %1902 = vmatprep.mubr.f32.mxu0 0.0
        %1903 = vmatmul.mubr.f32.gmra.mxu0 %v1593
        %v1904 = vpop.f32.mrf.mxu0
        %v1905 = vadd.f32 0.0, %v1904
        %v1906 = vpop.f32.mrf.mxu0
        %v1907 = vadd.f32 0.0, %v1906
        %1908 = vmatprep.mubr.f32.mxu0 0.0
        %1909 = vmatmul.mubr.f32.gmra.mxu0 %v1595
        %v1910 = vpop.f32.mrf.mxu0
        %v1911 = vadd.f32 0.0, %v1910
        %v1912 = vpop.f32.mrf.mxu0
        %v1913 = vadd.f32 0.0, %v1912
        %1914 = vmatprep.mubr.f32.mxu0 0.0
        %1915 = vmatmul.mubr.f32.gmra.mxu0 %v1597
        %v1916 = vpop.f32.mrf.mxu0
        %v1917 = vadd.f32 0.0, %v1916
        %v1918 = vpop.f32.mrf.mxu0
        %v1919 = vadd.f32 0.0, %v1918
        %1920 = vdwg.mxu0
        %v1921 = vld [vmem:[%s6] sm:$0xff]
        %v1922 = vld [vmem:[%s6 + $0x8] sm:$0xff]
        %v1923 = vld [vmem:[%s6 + $0x10] sm:$0xff]
        %v1924 = vld [vmem:[%s6 + $0x18] sm:$0xff]
        %v1925 = vld [vmem:[%s6 + $0x20] sm:$0xff]
        %v1926 = vld [vmem:[%s6 + $0x28] sm:$0xff]
        %v1927 = vld [vmem:[%s6 + $0x30] sm:$0xff]
        %v1928 = vld [vmem:[%s6 + $0x38] sm:$0xff]
        %v1929 = vld [vmem:[%s6 + $0x40] sm:$0xff]
        %v1930 = vld [vmem:[%s6 + $0x48] sm:$0xff]
        %v1931 = vld [vmem:[%s6 + $0x50] sm:$0xff]
        %v1932 = vld [vmem:[%s6 + $0x58] sm:$0xff]
        %v1933 = vld [vmem:[%s6 + $0x60] sm:$0xff]
        %v1934 = vld [vmem:[%s6 + $0x68] sm:$0xff]
        %v1935 = vld [vmem:[%s6 + $0x70] sm:$0xff]
        %v1936 = vld [vmem:[%s6 + $0x78] sm:$0xff]
        %v1937 = vld [vmem:[%s6 + $0x80] sm:$0xff]
        %v1938 = vld [vmem:[%s6 + $0x88] sm:$0xff]
        %v1939 = vld [vmem:[%s6 + $0x90] sm:$0xff]
        %v1940 = vld [vmem:[%s6 + $0x98] sm:$0xff]
        %v1941 = vld [vmem:[%s6 + $0xa0] sm:$0xff]
        %v1942 = vld [vmem:[%s6 + $0xa8] sm:$0xff]
        %v1943 = vld [vmem:[%s6 + $0xb0] sm:$0xff]
        %v1944 = vld [vmem:[%s6 + $0xb8] sm:$0xff]
        %v1945 = vld [vmem:[%s6 + $0xc0] sm:$0xff]
        %v1946 = vld [vmem:[%s6 + $0xc8] sm:$0xff]
        %v1947 = vld [vmem:[%s6 + $0xd0] sm:$0xff]
        %v1948 = vld [vmem:[%s6 + $0xd8] sm:$0xff]
        %v1949 = vld [vmem:[%s6 + $0xe0] sm:$0xff]
        %v1950 = vld [vmem:[%s6 + $0xe8] sm:$0xff]
        %v1951 = vld [vmem:[%s6 + $0xf0] sm:$0xff]
        %v1952 = vld [vmem:[%s6 + $0xf8] sm:$0xff]
        %1953 = vmatprep.subr.mxu0 0.0
        %1954 = vmatpush1.msra.mxu0 0.0
        %1955 = vmatprep.subr.mxu0 0.0
        %1956 = vmatpush1.msra.mxu0 0.0
        %1957 = vmatprep.subr.mxu0 0.0
        %1958 = vmatpush1.msra.mxu0 0.0
        %1959 = vmatprep.subr.mxu0 0.0
        %1960 = vmatpush1.msra.mxu0 0.0
        %1961 = vmatprep.subr.mxu0 0.0
        %1962 = vmatpush1.msra.mxu0 0.0
        %1963 = vmatprep.subr.mxu0 0.0
        %1964 = vmatpush1.msra.mxu0 0.0
        %1965 = vmatprep.subr.mxu0 0.0
        %1966 = vmatpush1.msra.mxu0 0.0
        %1967 = vmatprep.subr.mxu0 0.0
        %1968 = vmatpush1.msra.mxu0 0.0
        %1969 = vmatprep.subr.mxu0 %v1950
        %1970 = vmatpush1.msra.mxu0 %v1949
        %1971 = vmatprep.subr.mxu0 %v1946
        %1972 = vmatpush1.msra.mxu0 %v1945
        %1973 = vmatprep.subr.mxu0 %v1942
        %1974 = vmatpush1.msra.mxu0 %v1941
        %1975 = vmatprep.subr.mxu0 %v1938
        %1976 = vmatpush1.msra.mxu0 %v1937
        %1977 = vmatprep.subr.mxu0 %v1934
        %1978 = vmatpush1.msra.mxu0 %v1933
        %1979 = vmatprep.subr.mxu0 %v1930
        %1980 = vmatpush1.msra.mxu0 %v1929
        %1981 = vmatprep.subr.mxu0 %v1926
        %1982 = vmatpush1.msra.mxu0 %v1925
        %1983 = vmatprep.subr.mxu0 %v1922
        %1984 = vmatpush1.msra.mxu0 %v1921
        %1985 = vmatprep.subr.mxu0 0.0
        %1986 = vmatpush2.msra.mxu0 0.0
        %1987 = vmatprep.subr.mxu0 0.0
        %1988 = vmatpush2.msra.mxu0 0.0
        %1989 = vmatprep.subr.mxu0 0.0
        %1990 = vmatpush2.msra.mxu0 0.0
        %1991 = vmatprep.subr.mxu0 0.0
        %1992 = vmatpush2.msra.mxu0 0.0
        %1993 = vmatprep.subr.mxu0 0.0
        %1994 = vmatpush2.msra.mxu0 0.0
        %1995 = vmatprep.subr.mxu0 0.0
        %1996 = vmatpush2.msra.mxu0 0.0
        %1997 = vmatprep.subr.mxu0 0.0
        %1998 = vmatpush2.msra.mxu0 0.0
        %1999 = vmatprep.subr.mxu0 0.0
        %2000 = vmatpush2.msra.mxu0 0.0
        %2001 = vmatprep.subr.mxu0 0.0
        %2002 = vmatpush2.msra.mxu0 0.0
        %2003 = vmatprep.subr.mxu0 0.0
        %2004 = vmatpush2.msra.mxu0 0.0
        %2005 = vmatprep.subr.mxu0 0.0
        %2006 = vmatpush2.msra.mxu0 0.0
        %2007 = vmatprep.subr.mxu0 0.0
        %2008 = vmatpush2.msra.mxu0 0.0
        %2009 = vmatprep.subr.mxu0 0.0
        %2010 = vmatpush2.msra.mxu0 0.0
        %2011 = vmatprep.subr.mxu0 0.0
        %2012 = vmatpush2.msra.mxu0 0.0
        %2013 = vmatprep.subr.mxu0 0.0
        %2014 = vmatpush2.msra.mxu0 0.0
        %2015 = vmatprep.subr.mxu0 0.0
        %2016 = vmatpush2.msra.mxu0 0.0
        %2017 = vmatprep.mubr.f32.mxu0 0.0
        %2018 = vmatmul.mubr.f32.gmra.mxu0 %v685
        %v2019 = vpop.f32.mrf.mxu0
        %v2020 = vadd.f32 0.0, %v2019
        %v2021 = vpop.f32.mrf.mxu0
        %v2022 = vadd.f32 0.0, %v2021
        %2023 = vmatprep.mubr.f32.mxu0 0.0
        %2024 = vmatmul.mubr.f32.gmra.mxu0 %v687
        %v2025 = vpop.f32.mrf.mxu0
        %v2026 = vadd.f32 0.0, %v2025
        %v2027 = vpop.f32.mrf.mxu0
        %v2028 = vadd.f32 0.0, %v2027
        %2029 = vmatprep.mubr.f32.mxu0 0.0
        %2030 = vmatmul.mubr.f32.gmra.mxu0 %v689
        %v2031 = vpop.f32.mrf.mxu0
        %v2032 = vadd.f32 0.0, %v2031
        %v2033 = vpop.f32.mrf.mxu0
        %v2034 = vadd.f32 0.0, %v2033
        %2035 = vmatprep.mubr.f32.mxu0 0.0
        %2036 = vmatmul.mubr.f32.gmra.mxu0 %v691
        %v2037 = vpop.f32.mrf.mxu0
        %v2038 = vadd.f32 0.0, %v2037
        %v2039 = vpop.f32.mrf.mxu0
        %v2040 = vadd.f32 0.0, %v2039
        %2041 = vmatprep.mubr.f32.mxu0 0.0
        %2042 = vmatmul.mubr.f32.gmra.mxu0 %v693
        %v2043 = vpop.f32.mrf.mxu0
        %v2044 = vadd.f32 0.0, %v2043
        %v2045 = vpop.f32.mrf.mxu0
        %v2046 = vadd.f32 0.0, %v2045
        %2047 = vmatprep.mubr.f32.mxu0 0.0
        %2048 = vmatmul.mubr.f32.gmra.mxu0 %v695
        %v2049 = vpop.f32.mrf.mxu0
        %v2050 = vadd.f32 0.0, %v2049
        %v2051 = vpop.f32.mrf.mxu0
        %v2052 = vadd.f32 0.0, %v2051
        %2053 = vmatprep.mubr.f32.mxu0 0.0
        %2054 = vmatmul.mubr.f32.gmra.mxu0 %v697
        %v2055 = vpop.f32.mrf.mxu0
        %v2056 = vadd.f32 0.0, %v2055
        %v2057 = vpop.f32.mrf.mxu0
        %v2058 = vadd.f32 0.0, %v2057
        %2059 = vmatprep.mubr.f32.mxu0 0.0
        %2060 = vmatmul.mubr.f32.gmra.mxu0 %v699
        %v2061 = vpop.f32.mrf.mxu0
        %v2062 = vadd.f32 0.0, %v2061
        %v2063 = vpop.f32.mrf.mxu0
        %v2064 = vadd.f32 0.0, %v2063
        %2065 = vmatprep.mubr.f32.mxu0 0.0
        %2066 = vmatmul.mubr.f32.gmra.mxu0 %v701
        %v2067 = vpop.f32.mrf.mxu0
        %v2068 = vadd.f32 0.0, %v2067
        %v2069 = vpop.f32.mrf.mxu0
        %v2070 = vadd.f32 0.0, %v2069
        %2071 = vmatprep.mubr.f32.mxu0 0.0
        %2072 = vmatmul.mubr.f32.gmra.mxu0 %v703
        %v2073 = vpop.f32.mrf.mxu0
        %v2074 = vadd.f32 0.0, %v2073
        %v2075 = vpop.f32.mrf.mxu0
        %v2076 = vadd.f32 0.0, %v2075
        %2077 = vmatprep.mubr.f32.mxu0 0.0
        %2078 = vmatmul.mubr.f32.gmra.mxu0 %v705
        %v2079 = vpop.f32.mrf.mxu0
        %v2080 = vadd.f32 0.0, %v2079
        %v2081 = vpop.f32.mrf.mxu0
        %v2082 = vadd.f32 0.0, %v2081
        %2083 = vmatprep.mubr.f32.mxu0 0.0
        %2084 = vmatmul.mubr.f32.gmra.mxu0 %v707
        %v2085 = vpop.f32.mrf.mxu0
        %v2086 = vadd.f32 0.0, %v2085
        %v2087 = vpop.f32.mrf.mxu0
        %v2088 = vadd.f32 0.0, %v2087
        %2089 = vmatprep.mubr.f32.mxu0 0.0
        %2090 = vmatmul.mubr.f32.gmra.mxu0 %v709
        %v2091 = vpop.f32.mrf.mxu0
        %v2092 = vadd.f32 0.0, %v2091
        %v2093 = vpop.f32.mrf.mxu0
        %v2094 = vadd.f32 0.0, %v2093
        %2095 = vmatprep.mubr.f32.mxu0 0.0
        %2096 = vmatmul.mubr.f32.gmra.mxu0 %v711
        %v2097 = vpop.f32.mrf.mxu0
        %v2098 = vadd.f32 0.0, %v2097
        %v2099 = vpop.f32.mrf.mxu0
        %v2100 = vadd.f32 0.0, %v2099
        %2101 = vmatprep.mubr.f32.mxu0 0.0
        %2102 = vmatmul.mubr.f32.gmra.mxu0 %v713
        %v2103 = vpop.f32.mrf.mxu0
        %v2104 = vadd.f32 0.0, %v2103
        %v2105 = vpop.f32.mrf.mxu0
        %v2106 = vadd.f32 0.0, %v2105
        %2107 = vmatprep.mubr.f32.mxu0 0.0
        %2108 = vmatmul.mubr.f32.gmra.mxu0 %v715
        %v2109 = vpop.f32.mrf.mxu0
        %v2110 = vadd.f32 0.0, %v2109
        %v2111 = vpop.f32.mrf.mxu0
        %v2112 = vadd.f32 0.0, %v2111
        %2113 = vdwg.mxu0
        %2114 = vmatprep.subr.mxu0 0.0
        %2115 = vmatpush1.msra.mxu0 0.0
        %2116 = vmatprep.subr.mxu0 0.0
        %2117 = vmatpush1.msra.mxu0 0.0
        %2118 = vmatprep.subr.mxu0 0.0
        %2119 = vmatpush1.msra.mxu0 0.0
        %2120 = vmatprep.subr.mxu0 0.0
        %2121 = vmatpush1.msra.mxu0 0.0
        %2122 = vmatprep.subr.mxu0 0.0
        %2123 = vmatpush1.msra.mxu0 0.0
        %2124 = vmatprep.subr.mxu0 0.0
        %2125 = vmatpush1.msra.mxu0 0.0
        %2126 = vmatprep.subr.mxu0 0.0
        %2127 = vmatpush1.msra.mxu0 0.0
        %2128 = vmatprep.subr.mxu0 0.0
        %2129 = vmatpush1.msra.mxu0 0.0
        %2130 = vmatprep.subr.mxu0 %v1952
        %2131 = vmatpush1.msra.mxu0 %v1951
        %2132 = vmatprep.subr.mxu0 %v1948
        %2133 = vmatpush1.msra.mxu0 %v1947
        %2134 = vmatprep.subr.mxu0 %v1944
        %2135 = vmatpush1.msra.mxu0 %v1943
        %2136 = vmatprep.subr.mxu0 %v1940
        %2137 = vmatpush1.msra.mxu0 %v1939
        %2138 = vmatprep.subr.mxu0 %v1936
        %2139 = vmatpush1.msra.mxu0 %v1935
        %2140 = vmatprep.subr.mxu0 %v1932
        %2141 = vmatpush1.msra.mxu0 %v1931
        %2142 = vmatprep.subr.mxu0 %v1928
        %2143 = vmatpush1.msra.mxu0 %v1927
        %2144 = vmatprep.subr.mxu0 %v1924
        %2145 = vmatpush1.msra.mxu0 %v1923
        %2146 = vmatprep.subr.mxu0 0.0
        %2147 = vmatpush2.msra.mxu0 0.0
        %2148 = vmatprep.subr.mxu0 0.0
        %2149 = vmatpush2.msra.mxu0 0.0
        %2150 = vmatprep.subr.mxu0 0.0
        %2151 = vmatpush2.msra.mxu0 0.0
        %2152 = vmatprep.subr.mxu0 0.0
        %2153 = vmatpush2.msra.mxu0 0.0
        %2154 = vmatprep.subr.mxu0 0.0
        %2155 = vmatpush2.msra.mxu0 0.0
        %2156 = vmatprep.subr.mxu0 0.0
        %2157 = vmatpush2.msra.mxu0 0.0
        %2158 = vmatprep.subr.mxu0 0.0
        %2159 = vmatpush2.msra.mxu0 0.0
        %2160 = vmatprep.subr.mxu0 0.0
        %2161 = vmatpush2.msra.mxu0 0.0
        %2162 = vmatprep.subr.mxu0 0.0
        %2163 = vmatpush2.msra.mxu0 0.0
        %2164 = vmatprep.subr.mxu0 0.0
        %2165 = vmatpush2.msra.mxu0 0.0
        %2166 = vmatprep.subr.mxu0 0.0
        %2167 = vmatpush2.msra.mxu0 0.0
        %2168 = vmatprep.subr.mxu0 0.0
        %2169 = vmatpush2.msra.mxu0 0.0
        %2170 = vmatprep.subr.mxu0 0.0
        %2171 = vmatpush2.msra.mxu0 0.0
        %2172 = vmatprep.subr.mxu0 0.0
        %2173 = vmatpush2.msra.mxu0 0.0
        %2174 = vmatprep.subr.mxu0 0.0
        %2175 = vmatpush2.msra.mxu0 0.0
        %2176 = vmatprep.subr.mxu0 0.0
        %2177 = vmatpush2.msra.mxu0 0.0
        %2178 = vmatprep.mubr.f32.mxu0 0.0
        %2179 = vmatmul.mubr.f32.gmra.mxu0 %v685
        %v2180 = vpop.f32.mrf.mxu0
        %v2181 = vadd.f32 0.0, %v2180
        %v2182 = vpop.f32.mrf.mxu0
        %v2183 = vadd.f32 0.0, %v2182
        %2184 = vmatprep.mubr.f32.mxu0 0.0
        %2185 = vmatmul.mubr.f32.gmra.mxu0 %v687
        %v2186 = vpop.f32.mrf.mxu0
        %v2187 = vadd.f32 0.0, %v2186
        %v2188 = vpop.f32.mrf.mxu0
        %v2189 = vadd.f32 0.0, %v2188
        %2190 = vmatprep.mubr.f32.mxu0 0.0
        %2191 = vmatmul.mubr.f32.gmra.mxu0 %v689
        %v2192 = vpop.f32.mrf.mxu0
        %v2193 = vadd.f32 0.0, %v2192
        %v2194 = vpop.f32.mrf.mxu0
        %v2195 = vadd.f32 0.0, %v2194
        %2196 = vmatprep.mubr.f32.mxu0 0.0
        %2197 = vmatmul.mubr.f32.gmra.mxu0 %v691
        %v2198 = vpop.f32.mrf.mxu0
        %v2199 = vadd.f32 0.0, %v2198
        %v2200 = vpop.f32.mrf.mxu0
        %v2201 = vadd.f32 0.0, %v2200
        %2202 = vmatprep.mubr.f32.mxu0 0.0
        %2203 = vmatmul.mubr.f32.gmra.mxu0 %v693
        %v2204 = vpop.f32.mrf.mxu0
        %v2205 = vadd.f32 0.0, %v2204
        %v2206 = vpop.f32.mrf.mxu0
        %v2207 = vadd.f32 0.0, %v2206
        %2208 = vmatprep.mubr.f32.mxu0 0.0
        %2209 = vmatmul.mubr.f32.gmra.mxu0 %v695
        %v2210 = vpop.f32.mrf.mxu0
        %v2211 = vadd.f32 0.0, %v2210
        %v2212 = vpop.f32.mrf.mxu0
        %v2213 = vadd.f32 0.0, %v2212
        %2214 = vmatprep.mubr.f32.mxu0 0.0
        %2215 = vmatmul.mubr.f32.gmra.mxu0 %v697
        %v2216 = vpop.f32.mrf.mxu0
        %v2217 = vadd.f32 0.0, %v2216
        %v2218 = vpop.f32.mrf.mxu0
        %v2219 = vadd.f32 0.0, %v2218
        %2220 = vmatprep.mubr.f32.mxu0 0.0
        %2221 = vmatmul.mubr.f32.gmra.mxu0 %v699
        %v2222 = vpop.f32.mrf.mxu0
        %v2223 = vadd.f32 0.0, %v2222
        %v2224 = vpop.f32.mrf.mxu0
        %v2225 = vadd.f32 0.0, %v2224
        %2226 = vmatprep.mubr.f32.mxu0 0.0
        %2227 = vmatmul.mubr.f32.gmra.mxu0 %v701
        %v2228 = vpop.f32.mrf.mxu0
        %v2229 = vadd.f32 0.0, %v2228
        %v2230 = vpop.f32.mrf.mxu0
        %v2231 = vadd.f32 0.0, %v2230
        %2232 = vmatprep.mubr.f32.mxu0 0.0
        %2233 = vmatmul.mubr.f32.gmra.mxu0 %v703
        %v2234 = vpop.f32.mrf.mxu0
        %v2235 = vadd.f32 0.0, %v2234
        %v2236 = vpop.f32.mrf.mxu0
        %v2237 = vadd.f32 0.0, %v2236
        %2238 = vmatprep.mubr.f32.mxu0 0.0
        %2239 = vmatmul.mubr.f32.gmra.mxu0 %v705
        %v2240 = vpop.f32.mrf.mxu0
        %v2241 = vadd.f32 0.0, %v2240
        %v2242 = vpop.f32.mrf.mxu0
        %v2243 = vadd.f32 0.0, %v2242
        %2244 = vmatprep.mubr.f32.mxu0 0.0
        %2245 = vmatmul.mubr.f32.gmra.mxu0 %v707
        %v2246 = vpop.f32.mrf.mxu0
        %v2247 = vadd.f32 0.0, %v2246
        %v2248 = vpop.f32.mrf.mxu0
        %v2249 = vadd.f32 0.0, %v2248
        %2250 = vmatprep.mubr.f32.mxu0 0.0
        %2251 = vmatmul.mubr.f32.gmra.mxu0 %v709
        %v2252 = vpop.f32.mrf.mxu0
        %v2253 = vadd.f32 0.0, %v2252
        %v2254 = vpop.f32.mrf.mxu0
        %v2255 = vadd.f32 0.0, %v2254
        %2256 = vmatprep.mubr.f32.mxu0 0.0
        %2257 = vmatmul.mubr.f32.gmra.mxu0 %v711
        %v2258 = vpop.f32.mrf.mxu0
        %v2259 = vadd.f32 0.0, %v2258
        %v2260 = vpop.f32.mrf.mxu0
        %v2261 = vadd.f32 0.0, %v2260
        %2262 = vmatprep.mubr.f32.mxu0 0.0
        %2263 = vmatmul.mubr.f32.gmra.mxu0 %v713
        %v2264 = vpop.f32.mrf.mxu0
        %v2265 = vadd.f32 0.0, %v2264
        %v2266 = vpop.f32.mrf.mxu0
        %v2267 = vadd.f32 0.0, %v2266
        %2268 = vmatprep.mubr.f32.mxu0 0.0
        %2269 = vmatmul.mubr.f32.gmra.mxu0 %v715
        %v2270 = vpop.f32.mrf.mxu0
        %v2271 = vadd.f32 0.0, %v2270
        %v2272 = vpop.f32.mrf.mxu0
        %v2273 = vadd.f32 0.0, %v2272
        %2274 = vdwg.mxu0
        %v2276 = vsel %vm395, %v513, 0
        %v2279 = vsel %vm395, %v519, 0
        %v2282 = vsel %vm395, %v525, 0
        %v2285 = vsel %vm395, %v531, 0
        %v2288 = vsel %vm395, %v537, 0
        %v2291 = vsel %vm395, %v543, 0
        %v2294 = vsel %vm395, %v549, 0
        %v2297 = vsel %vm395, %v555, 0
        %v2300 = vsel %vm395, %v561, 0
        %v2303 = vsel %vm395, %v567, 0
        %v2306 = vsel %vm395, %v573, 0
        %v2309 = vsel %vm395, %v579, 0
        %v2312 = vsel %vm395, %v585, 0
        %v2315 = vsel %vm395, %v591, 0
        %v2318 = vsel %vm395, %v597, 0
        %v2321 = vsel %vm395, %v603, 0
        %2323 = vmatprep.subr.mxu0 0.0
        %2324 = vmatpush1.msra.mxu0 0.0
        %2325 = vmatprep.subr.mxu0 0.0
        %2326 = vmatpush1.msra.mxu0 0.0
        %2327 = vmatprep.subr.mxu0 0.0
        %2328 = vmatpush1.msra.mxu0 0.0
        %2329 = vmatprep.subr.mxu0 0.0
        %2330 = vmatpush1.msra.mxu0 0.0
        %2331 = vmatprep.subr.mxu0 0.0
        %2332 = vmatpush1.msra.mxu0 0.0
        %2333 = vmatprep.subr.mxu0 0.0
        %2334 = vmatpush1.msra.mxu0 0.0
        %2335 = vmatprep.subr.mxu0 0.0
        %2336 = vmatpush1.msra.mxu0 0.0
        %2337 = vmatprep.subr.mxu0 0.0
        %2338 = vmatpush1.msra.mxu0 0.0
        %2339 = vmatprep.subr.mxu0 %v1950
        %2340 = vmatpush1.msra.mxu0 %v1949
        %2341 = vmatprep.subr.mxu0 %v1946
        %2342 = vmatpush1.msra.mxu0 %v1945
        %2343 = vmatprep.subr.mxu0 %v1942
        %2344 = vmatpush1.msra.mxu0 %v1941
        %2345 = vmatprep.subr.mxu0 %v1938
        %2346 = vmatpush1.msra.mxu0 %v1937
        %2347 = vmatprep.subr.mxu0 %v1934
        %2348 = vmatpush1.msra.mxu0 %v1933
        %2349 = vmatprep.subr.mxu0 %v1930
        %2350 = vmatpush1.msra.mxu0 %v1929
        %2351 = vmatprep.subr.mxu0 %v1926
        %2352 = vmatpush1.msra.mxu0 %v1925
        %2353 = vmatprep.subr.mxu0 %v1922
        %2354 = vmatpush1.msra.mxu0 %v1921
        %2355 = vmatprep.subr.mxu0 0.0
        %2356 = vmatpush2.msra.mxu0 0.0
        %2357 = vmatprep.subr.mxu0 0.0
        %2358 = vmatpush2.msra.mxu0 0.0
        %2359 = vmatprep.subr.mxu0 0.0
        %2360 = vmatpush2.msra.mxu0 0.0
        %2361 = vmatprep.subr.mxu0 0.0
        %2362 = vmatpush2.msra.mxu0 0.0
        %2363 = vmatprep.subr.mxu0 0.0
        %2364 = vmatpush2.msra.mxu0 0.0
        %2365 = vmatprep.subr.mxu0 0.0
        %2366 = vmatpush2.msra.mxu0 0.0
        %2367 = vmatprep.subr.mxu0 0.0
        %2368 = vmatpush2.msra.mxu0 0.0
        %2369 = vmatprep.subr.mxu0 0.0
        %2370 = vmatpush2.msra.mxu0 0.0
        %2371 = vmatprep.subr.mxu0 0.0
        %2372 = vmatpush2.msra.mxu0 0.0
        %2373 = vmatprep.subr.mxu0 0.0
        %2374 = vmatpush2.msra.mxu0 0.0
        %2375 = vmatprep.subr.mxu0 0.0
        %2376 = vmatpush2.msra.mxu0 0.0
        %2377 = vmatprep.subr.mxu0 0.0
        %2378 = vmatpush2.msra.mxu0 0.0
        %2379 = vmatprep.subr.mxu0 0.0
        %2380 = vmatpush2.msra.mxu0 0.0
        %2381 = vmatprep.subr.mxu0 0.0
        %2382 = vmatpush2.msra.mxu0 0.0
        %2383 = vmatprep.subr.mxu0 0.0
        %2384 = vmatpush2.msra.mxu0 0.0
        %2385 = vmatprep.subr.mxu0 0.0
        %2386 = vmatpush2.msra.mxu0 0.0
        %2387 = vmatprep.mubr.f32.mxu0 0.0
        %2388 = vmatmul.mubr.f32.gmra.mxu0 %v2276
        %v2389 = vpop.f32.mrf.mxu0
        %v2390 = vadd.f32 0.0, %v2389
        %v2391 = vpop.f32.mrf.mxu0
        %v2392 = vadd.f32 0.0, %v2391
        %2393 = vmatprep.mubr.f32.mxu0 0.0
        %2394 = vmatmul.mubr.f32.gmra.mxu0 %v2279
        %v2395 = vpop.f32.mrf.mxu0
        %v2396 = vadd.f32 0.0, %v2395
        %v2397 = vpop.f32.mrf.mxu0
        %v2398 = vadd.f32 0.0, %v2397
        %2399 = vmatprep.mubr.f32.mxu0 0.0
        %2400 = vmatmul.mubr.f32.gmra.mxu0 %v2282
        %v2401 = vpop.f32.mrf.mxu0
        %v2402 = vadd.f32 0.0, %v2401
        %v2403 = vpop.f32.mrf.mxu0
        %v2404 = vadd.f32 0.0, %v2403
        %2405 = vmatprep.mubr.f32.mxu0 0.0
        %2406 = vmatmul.mubr.f32.gmra.mxu0 %v2285
        %v2407 = vpop.f32.mrf.mxu0
        %v2408 = vadd.f32 0.0, %v2407
        %v2409 = vpop.f32.mrf.mxu0
        %v2410 = vadd.f32 0.0, %v2409
        %2411 = vmatprep.mubr.f32.mxu0 0.0
        %2412 = vmatmul.mubr.f32.gmra.mxu0 %v2288
        %v2413 = vpop.f32.mrf.mxu0
        %v2414 = vadd.f32 0.0, %v2413
        %v2415 = vpop.f32.mrf.mxu0
        %v2416 = vadd.f32 0.0, %v2415
        %2417 = vmatprep.mubr.f32.mxu0 0.0
        %2418 = vmatmul.mubr.f32.gmra.mxu0 %v2291
        %v2419 = vpop.f32.mrf.mxu0
        %v2420 = vadd.f32 0.0, %v2419
        %v2421 = vpop.f32.mrf.mxu0
        %v2422 = vadd.f32 0.0, %v2421
        %2423 = vmatprep.mubr.f32.mxu0 0.0
        %2424 = vmatmul.mubr.f32.gmra.mxu0 %v2294
        %v2425 = vpop.f32.mrf.mxu0
        %v2426 = vadd.f32 0.0, %v2425
        %v2427 = vpop.f32.mrf.mxu0
        %v2428 = vadd.f32 0.0, %v2427
        %2429 = vmatprep.mubr.f32.mxu0 0.0
        %2430 = vmatmul.mubr.f32.gmra.mxu0 %v2297
        %v2431 = vpop.f32.mrf.mxu0
        %v2432 = vadd.f32 0.0, %v2431
        %v2433 = vpop.f32.mrf.mxu0
        %v2434 = vadd.f32 0.0, %v2433
        %2435 = vmatprep.mubr.f32.mxu0 0.0
        %2436 = vmatmul.mubr.f32.gmra.mxu0 %v2300
        %v2437 = vpop.f32.mrf.mxu0
        %v2438 = vadd.f32 0.0, %v2437
        %v2439 = vpop.f32.mrf.mxu0
        %v2440 = vadd.f32 0.0, %v2439
        %2441 = vmatprep.mubr.f32.mxu0 0.0
        %2442 = vmatmul.mubr.f32.gmra.mxu0 %v2303
        %v2443 = vpop.f32.mrf.mxu0
        %v2444 = vadd.f32 0.0, %v2443
        %v2445 = vpop.f32.mrf.mxu0
        %v2446 = vadd.f32 0.0, %v2445
        %2447 = vmatprep.mubr.f32.mxu0 0.0
        %2448 = vmatmul.mubr.f32.gmra.mxu0 %v2306
        %v2449 = vpop.f32.mrf.mxu0
        %v2450 = vadd.f32 0.0, %v2449
        %v2451 = vpop.f32.mrf.mxu0
        %v2452 = vadd.f32 0.0, %v2451
        %2453 = vmatprep.mubr.f32.mxu0 0.0
        %2454 = vmatmul.mubr.f32.gmra.mxu0 %v2309
        %v2455 = vpop.f32.mrf.mxu0
        %v2456 = vadd.f32 0.0, %v2455
        %v2457 = vpop.f32.mrf.mxu0
        %v2458 = vadd.f32 0.0, %v2457
        %2459 = vmatprep.mubr.f32.mxu0 0.0
        %2460 = vmatmul.mubr.f32.gmra.mxu0 %v2312
        %v2461 = vpop.f32.mrf.mxu0
        %v2462 = vadd.f32 0.0, %v2461
        %v2463 = vpop.f32.mrf.mxu0
        %v2464 = vadd.f32 0.0, %v2463
        %2465 = vmatprep.mubr.f32.mxu0 0.0
        %2466 = vmatmul.mubr.f32.gmra.mxu0 %v2315
        %v2467 = vpop.f32.mrf.mxu0
        %v2468 = vadd.f32 0.0, %v2467
        %v2469 = vpop.f32.mrf.mxu0
        %v2470 = vadd.f32 0.0, %v2469
        %2471 = vmatprep.mubr.f32.mxu0 0.0
        %2472 = vmatmul.mubr.f32.gmra.mxu0 %v2318
        %v2473 = vpop.f32.mrf.mxu0
        %v2474 = vadd.f32 0.0, %v2473
        %v2475 = vpop.f32.mrf.mxu0
        %v2476 = vadd.f32 0.0, %v2475
        %2477 = vmatprep.mubr.f32.mxu0 0.0
        %2478 = vmatmul.mubr.f32.gmra.mxu0 %v2321
        %v2479 = vpop.f32.mrf.mxu0
        %v2480 = vadd.f32 0.0, %v2479
        %v2481 = vpop.f32.mrf.mxu0
        %v2482 = vadd.f32 0.0, %v2481
        %2483 = vdwg.mxu0
        %2484 = vmatprep.subr.mxu0 0.0
        %2485 = vmatpush1.msra.mxu0 0.0
        %2486 = vmatprep.subr.mxu0 0.0
        %2487 = vmatpush1.msra.mxu0 0.0
        %2488 = vmatprep.subr.mxu0 0.0
        %2489 = vmatpush1.msra.mxu0 0.0
        %2490 = vmatprep.subr.mxu0 0.0
        %2491 = vmatpush1.msra.mxu0 0.0
        %2492 = vmatprep.subr.mxu0 0.0
        %2493 = vmatpush1.msra.mxu0 0.0
        %2494 = vmatprep.subr.mxu0 0.0
        %2495 = vmatpush1.msra.mxu0 0.0
        %2496 = vmatprep.subr.mxu0 0.0
        %2497 = vmatpush1.msra.mxu0 0.0
        %2498 = vmatprep.subr.mxu0 0.0
        %2499 = vmatpush1.msra.mxu0 0.0
        %2500 = vmatprep.subr.mxu0 %v1952
        %2501 = vmatpush1.msra.mxu0 %v1951
        %2502 = vmatprep.subr.mxu0 %v1948
        %2503 = vmatpush1.msra.mxu0 %v1947
        %2504 = vmatprep.subr.mxu0 %v1944
        %2505 = vmatpush1.msra.mxu0 %v1943
        %2506 = vmatprep.subr.mxu0 %v1940
        %2507 = vmatpush1.msra.mxu0 %v1939
        %2508 = vmatprep.subr.mxu0 %v1936
        %2509 = vmatpush1.msra.mxu0 %v1935
        %2510 = vmatprep.subr.mxu0 %v1932
        %2511 = vmatpush1.msra.mxu0 %v1931
        %2512 = vmatprep.subr.mxu0 %v1928
        %2513 = vmatpush1.msra.mxu0 %v1927
        %2514 = vmatprep.subr.mxu0 %v1924
        %2515 = vmatpush1.msra.mxu0 %v1923
        %2516 = vmatprep.subr.mxu0 0.0
        %2517 = vmatpush2.msra.mxu0 0.0
        %2518 = vmatprep.subr.mxu0 0.0
        %2519 = vmatpush2.msra.mxu0 0.0
        %2520 = vmatprep.subr.mxu0 0.0
        %2521 = vmatpush2.msra.mxu0 0.0
        %2522 = vmatprep.subr.mxu0 0.0
        %2523 = vmatpush2.msra.mxu0 0.0
        %2524 = vmatprep.subr.mxu0 0.0
        %2525 = vmatpush2.msra.mxu0 0.0
        %2526 = vmatprep.subr.mxu0 0.0
        %2527 = vmatpush2.msra.mxu0 0.0
        %2528 = vmatprep.subr.mxu0 0.0
        %2529 = vmatpush2.msra.mxu0 0.0
        %2530 = vmatprep.subr.mxu0 0.0
        %2531 = vmatpush2.msra.mxu0 0.0
        %2532 = vmatprep.subr.mxu0 0.0
        %2533 = vmatpush2.msra.mxu0 0.0
        %2534 = vmatprep.subr.mxu0 0.0
        %2535 = vmatpush2.msra.mxu0 0.0
        %2536 = vmatprep.subr.mxu0 0.0
        %2537 = vmatpush2.msra.mxu0 0.0
        %2538 = vmatprep.subr.mxu0 0.0
        %2539 = vmatpush2.msra.mxu0 0.0
        %2540 = vmatprep.subr.mxu0 0.0
        %2541 = vmatpush2.msra.mxu0 0.0
        %2542 = vmatprep.subr.mxu0 0.0
        %2543 = vmatpush2.msra.mxu0 0.0
        %2544 = vmatprep.subr.mxu0 0.0
        %2545 = vmatpush2.msra.mxu0 0.0
        %2546 = vmatprep.subr.mxu0 0.0
        %2547 = vmatpush2.msra.mxu0 0.0
        %2548 = vmatprep.mubr.f32.mxu0 0.0
        %2549 = vmatmul.mubr.f32.gmra.mxu0 %v2276
        %v2550 = vpop.f32.mrf.mxu0
        %v2551 = vadd.f32 0.0, %v2550
        %v2552 = vpop.f32.mrf.mxu0
        %v2553 = vadd.f32 0.0, %v2552
        %2554 = vmatprep.mubr.f32.mxu0 0.0
        %2555 = vmatmul.mubr.f32.gmra.mxu0 %v2279
        %v2556 = vpop.f32.mrf.mxu0
        %v2557 = vadd.f32 0.0, %v2556
        %v2558 = vpop.f32.mrf.mxu0
        %v2559 = vadd.f32 0.0, %v2558
        %2560 = vmatprep.mubr.f32.mxu0 0.0
        %2561 = vmatmul.mubr.f32.gmra.mxu0 %v2282
        %v2562 = vpop.f32.mrf.mxu0
        %v2563 = vadd.f32 0.0, %v2562
        %v2564 = vpop.f32.mrf.mxu0
        %v2565 = vadd.f32 0.0, %v2564
        %2566 = vmatprep.mubr.f32.mxu0 0.0
        %2567 = vmatmul.mubr.f32.gmra.mxu0 %v2285
        %v2568 = vpop.f32.mrf.mxu0
        %v2569 = vadd.f32 0.0, %v2568
        %v2570 = vpop.f32.mrf.mxu0
        %v2571 = vadd.f32 0.0, %v2570
        %2572 = vmatprep.mubr.f32.mxu0 0.0
        %2573 = vmatmul.mubr.f32.gmra.mxu0 %v2288
        %v2574 = vpop.f32.mrf.mxu0
        %v2575 = vadd.f32 0.0, %v2574
        %v2576 = vpop.f32.mrf.mxu0
        %v2577 = vadd.f32 0.0, %v2576
        %2578 = vmatprep.mubr.f32.mxu0 0.0
        %2579 = vmatmul.mubr.f32.gmra.mxu0 %v2291
        %v2580 = vpop.f32.mrf.mxu0
        %v2581 = vadd.f32 0.0, %v2580
        %v2582 = vpop.f32.mrf.mxu0
        %v2583 = vadd.f32 0.0, %v2582
        %2584 = vmatprep.mubr.f32.mxu0 0.0
        %2585 = vmatmul.mubr.f32.gmra.mxu0 %v2294
        %v2586 = vpop.f32.mrf.mxu0
        %v2587 = vadd.f32 0.0, %v2586
        %v2588 = vpop.f32.mrf.mxu0
        %v2589 = vadd.f32 0.0, %v2588
        %2590 = vmatprep.mubr.f32.mxu0 0.0
        %2591 = vmatmul.mubr.f32.gmra.mxu0 %v2297
        %v2592 = vpop.f32.mrf.mxu0
        %v2593 = vadd.f32 0.0, %v2592
        %v2594 = vpop.f32.mrf.mxu0
        %v2595 = vadd.f32 0.0, %v2594
        %2596 = vmatprep.mubr.f32.mxu0 0.0
        %2597 = vmatmul.mubr.f32.gmra.mxu0 %v2300
        %v2598 = vpop.f32.mrf.mxu0
        %v2599 = vadd.f32 0.0, %v2598
        %v2600 = vpop.f32.mrf.mxu0
        %v2601 = vadd.f32 0.0, %v2600
        %2602 = vmatprep.mubr.f32.mxu0 0.0
        %2603 = vmatmul.mubr.f32.gmra.mxu0 %v2303
        %v2604 = vpop.f32.mrf.mxu0
        %v2605 = vadd.f32 0.0, %v2604
        %v2606 = vpop.f32.mrf.mxu0
        %v2607 = vadd.f32 0.0, %v2606
        %2608 = vmatprep.mubr.f32.mxu0 0.0
        %2609 = vmatmul.mubr.f32.gmra.mxu0 %v2306
        %v2610 = vpop.f32.mrf.mxu0
        %v2611 = vadd.f32 0.0, %v2610
        %v2612 = vpop.f32.mrf.mxu0
        %v2613 = vadd.f32 0.0, %v2612
        %2614 = vmatprep.mubr.f32.mxu0 0.0
        %2615 = vmatmul.mubr.f32.gmra.mxu0 %v2309
        %v2616 = vpop.f32.mrf.mxu0
        %v2617 = vadd.f32 0.0, %v2616
        %v2618 = vpop.f32.mrf.mxu0
        %v2619 = vadd.f32 0.0, %v2618
        %2620 = vmatprep.mubr.f32.mxu0 0.0
        %2621 = vmatmul.mubr.f32.gmra.mxu0 %v2312
        %v2622 = vpop.f32.mrf.mxu0
        %v2623 = vadd.f32 0.0, %v2622
        %v2624 = vpop.f32.mrf.mxu0
        %v2625 = vadd.f32 0.0, %v2624
        %2626 = vmatprep.mubr.f32.mxu0 0.0
        %2627 = vmatmul.mubr.f32.gmra.mxu0 %v2315
        %v2628 = vpop.f32.mrf.mxu0
        %v2629 = vadd.f32 0.0, %v2628
        %v2630 = vpop.f32.mrf.mxu0
        %v2631 = vadd.f32 0.0, %v2630
        %2632 = vmatprep.mubr.f32.mxu0 0.0
        %2633 = vmatmul.mubr.f32.gmra.mxu0 %v2318
        %v2634 = vpop.f32.mrf.mxu0
        %v2635 = vadd.f32 0.0, %v2634
        %v2636 = vpop.f32.mrf.mxu0
        %v2637 = vadd.f32 0.0, %v2636
        %2638 = vmatprep.mubr.f32.mxu0 0.0
        %2639 = vmatmul.mubr.f32.gmra.mxu0 %v2321
        %v2640 = vpop.f32.mrf.mxu0
        %v2641 = vadd.f32 0.0, %v2640
        %v2642 = vpop.f32.mrf.mxu0
        %v2643 = vadd.f32 0.0, %v2642
        %2644 = vdwg.mxu0
        %v2646 = vsel %vm395, %v1519, 0
        %v2649 = vsel %vm395, %v1520, 0
        %v2652 = vsel %vm395, %v1521, 0
        %v2655 = vsel %vm395, %v1522, 0
        %v2658 = vsel %vm395, %v1523, 0
        %v2661 = vsel %vm395, %v1524, 0
        %v2664 = vsel %vm395, %v1525, 0
        %v2667 = vsel %vm395, %v1526, 0
        %v2670 = vsel %vm395, %v1527, 0
        %v2673 = vsel %vm395, %v1528, 0
        %v2676 = vsel %vm395, %v1529, 0
        %v2679 = vsel %vm395, %v1530, 0
        %v2682 = vsel %vm395, %v1531, 0
        %v2685 = vsel %vm395, %v1532, 0
        %v2688 = vsel %vm395, %v1533, 0
        %v2691 = vsel %vm395, %v1534, 0
        %2693 = vmatprep.subr.mxu0 0.0
        %2694 = vmatpush1.msra.mxu0 0.0
        %2695 = vmatprep.subr.mxu0 0.0
        %2696 = vmatpush1.msra.mxu0 0.0
        %2697 = vmatprep.subr.mxu0 0.0
        %2698 = vmatpush1.msra.mxu0 0.0
        %2699 = vmatprep.subr.mxu0 0.0
        %2700 = vmatpush1.msra.mxu0 0.0
        %2701 = vmatprep.subr.mxu0 0.0
        %2702 = vmatpush1.msra.mxu0 0.0
        %2703 = vmatprep.subr.mxu0 0.0
        %2704 = vmatpush1.msra.mxu0 0.0
        %2705 = vmatprep.subr.mxu0 0.0
        %2706 = vmatpush1.msra.mxu0 0.0
        %2707 = vmatprep.subr.mxu0 0.0
        %2708 = vmatpush1.msra.mxu0 0.0
        %2709 = vmatprep.subr.mxu0 %v1564
        %2710 = vmatpush1.msra.mxu0 %v1563
        %2711 = vmatprep.subr.mxu0 %v1560
        %2712 = vmatpush1.msra.mxu0 %v1559
        %2713 = vmatprep.subr.mxu0 %v1556
        %2714 = vmatpush1.msra.mxu0 %v1555
        %2715 = vmatprep.subr.mxu0 %v1552
        %2716 = vmatpush1.msra.mxu0 %v1551
        %2717 = vmatprep.subr.mxu0 %v1548
        %2718 = vmatpush1.msra.mxu0 %v1547
        %2719 = vmatprep.subr.mxu0 %v1544
        %2720 = vmatpush1.msra.mxu0 %v1543
        %2721 = vmatprep.subr.mxu0 %v1540
        %2722 = vmatpush1.msra.mxu0 %v1539
        %2723 = vmatprep.subr.mxu0 %v1536
        %2724 = vmatpush1.msra.mxu0 %v1535
        %2725 = vmatprep.subr.mxu0 0.0
        %2726 = vmatpush2.msra.mxu0 0.0
        %2727 = vmatprep.subr.mxu0 0.0
        %2728 = vmatpush2.msra.mxu0 0.0
        %2729 = vmatprep.subr.mxu0 0.0
        %2730 = vmatpush2.msra.mxu0 0.0
        %2731 = vmatprep.subr.mxu0 0.0
        %2732 = vmatpush2.msra.mxu0 0.0
        %2733 = vmatprep.subr.mxu0 0.0
        %2734 = vmatpush2.msra.mxu0 0.0
        %2735 = vmatprep.subr.mxu0 0.0
        %2736 = vmatpush2.msra.mxu0 0.0
        %2737 = vmatprep.subr.mxu0 0.0
        %2738 = vmatpush2.msra.mxu0 0.0
        %2739 = vmatprep.subr.mxu0 0.0
        %2740 = vmatpush2.msra.mxu0 0.0
        %2741 = vmatprep.subr.mxu0 0.0
        %2742 = vmatpush2.msra.mxu0 0.0
        %2743 = vmatprep.subr.mxu0 0.0
        %2744 = vmatpush2.msra.mxu0 0.0
        %2745 = vmatprep.subr.mxu0 0.0
        %2746 = vmatpush2.msra.mxu0 0.0
        %2747 = vmatprep.subr.mxu0 0.0
        %2748 = vmatpush2.msra.mxu0 0.0
        %2749 = vmatprep.subr.mxu0 0.0
        %2750 = vmatpush2.msra.mxu0 0.0
        %2751 = vmatprep.subr.mxu0 0.0
        %2752 = vmatpush2.msra.mxu0 0.0
        %2753 = vmatprep.subr.mxu0 0.0
        %2754 = vmatpush2.msra.mxu0 0.0
        %2755 = vmatprep.subr.mxu0 0.0
        %2756 = vmatpush2.msra.mxu0 0.0
        %2757 = vmatprep.mubr.f32.mxu0 0.0
        %2758 = vmatmul.mubr.f32.gmra.mxu0 %v2646
        %v2759 = vpop.f32.mrf.mxu0
        %v2760 = vadd.f32 0.0, %v2759
        %v2761 = vpop.f32.mrf.mxu0
        %v2762 = vadd.f32 0.0, %v2761
        %2763 = vmatprep.mubr.f32.mxu0 0.0
        %2764 = vmatmul.mubr.f32.gmra.mxu0 %v2649
        %v2765 = vpop.f32.mrf.mxu0
        %v2766 = vadd.f32 0.0, %v2765
        %v2767 = vpop.f32.mrf.mxu0
        %v2768 = vadd.f32 0.0, %v2767
        %2769 = vmatprep.mubr.f32.mxu0 0.0
        %2770 = vmatmul.mubr.f32.gmra.mxu0 %v2652
        %v2771 = vpop.f32.mrf.mxu0
        %v2772 = vadd.f32 0.0, %v2771
        %v2773 = vpop.f32.mrf.mxu0
        %v2774 = vadd.f32 0.0, %v2773
        %2775 = vmatprep.mubr.f32.mxu0 0.0
        %2776 = vmatmul.mubr.f32.gmra.mxu0 %v2655
        %v2777 = vpop.f32.mrf.mxu0
        %v2778 = vadd.f32 0.0, %v2777
        %v2779 = vpop.f32.mrf.mxu0
        %v2780 = vadd.f32 0.0, %v2779
        %2781 = vmatprep.mubr.f32.mxu0 0.0
        %2782 = vmatmul.mubr.f32.gmra.mxu0 %v2658
        %v2783 = vpop.f32.mrf.mxu0
        %v2784 = vadd.f32 0.0, %v2783
        %v2785 = vpop.f32.mrf.mxu0
        %v2786 = vadd.f32 0.0, %v2785
        %2787 = vmatprep.mubr.f32.mxu0 0.0
        %2788 = vmatmul.mubr.f32.gmra.mxu0 %v2661
        %v2789 = vpop.f32.mrf.mxu0
        %v2790 = vadd.f32 0.0, %v2789
        %v2791 = vpop.f32.mrf.mxu0
        %v2792 = vadd.f32 0.0, %v2791
        %2793 = vmatprep.mubr.f32.mxu0 0.0
        %2794 = vmatmul.mubr.f32.gmra.mxu0 %v2664
        %v2795 = vpop.f32.mrf.mxu0
        %v2796 = vadd.f32 0.0, %v2795
        %v2797 = vpop.f32.mrf.mxu0
        %v2798 = vadd.f32 0.0, %v2797
        %2799 = vmatprep.mubr.f32.mxu0 0.0
        %2800 = vmatmul.mubr.f32.gmra.mxu0 %v2667
        %v2801 = vpop.f32.mrf.mxu0
        %v2802 = vadd.f32 0.0, %v2801
        %v2803 = vpop.f32.mrf.mxu0
        %v2804 = vadd.f32 0.0, %v2803
        %2805 = vmatprep.mubr.f32.mxu0 0.0
        %2806 = vmatmul.mubr.f32.gmra.mxu0 %v2670
        %v2807 = vpop.f32.mrf.mxu0
        %v2808 = vadd.f32 0.0, %v2807
        %v2809 = vpop.f32.mrf.mxu0
        %v2810 = vadd.f32 0.0, %v2809
        %2811 = vmatprep.mubr.f32.mxu0 0.0
        %2812 = vmatmul.mubr.f32.gmra.mxu0 %v2673
        %v2813 = vpop.f32.mrf.mxu0
        %v2814 = vadd.f32 0.0, %v2813
        %v2815 = vpop.f32.mrf.mxu0
        %v2816 = vadd.f32 0.0, %v2815
        %2817 = vmatprep.mubr.f32.mxu0 0.0
        %2818 = vmatmul.mubr.f32.gmra.mxu0 %v2676
        %v2819 = vpop.f32.mrf.mxu0
        %v2820 = vadd.f32 0.0, %v2819
        %v2821 = vpop.f32.mrf.mxu0
        %v2822 = vadd.f32 0.0, %v2821
        %2823 = vmatprep.mubr.f32.mxu0 0.0
        %2824 = vmatmul.mubr.f32.gmra.mxu0 %v2679
        %v2825 = vpop.f32.mrf.mxu0
        %v2826 = vadd.f32 0.0, %v2825
        %v2827 = vpop.f32.mrf.mxu0
        %v2828 = vadd.f32 0.0, %v2827
        %2829 = vmatprep.mubr.f32.mxu0 0.0
        %2830 = vmatmul.mubr.f32.gmra.mxu0 %v2682
        %v2831 = vpop.f32.mrf.mxu0
        %v2832 = vadd.f32 0.0, %v2831
        %v2833 = vpop.f32.mrf.mxu0
        %v2834 = vadd.f32 0.0, %v2833
        %2835 = vmatprep.mubr.f32.mxu0 0.0
        %2836 = vmatmul.mubr.f32.gmra.mxu0 %v2685
        %v2837 = vpop.f32.mrf.mxu0
        %v2838 = vadd.f32 0.0, %v2837
        %v2839 = vpop.f32.mrf.mxu0
        %v2840 = vadd.f32 0.0, %v2839
        %2841 = vmatprep.mubr.f32.mxu0 0.0
        %2842 = vmatmul.mubr.f32.gmra.mxu0 %v2688
        %v2843 = vpop.f32.mrf.mxu0
        %v2844 = vadd.f32 0.0, %v2843
        %v2845 = vpop.f32.mrf.mxu0
        %v2846 = vadd.f32 0.0, %v2845
        %2847 = vmatprep.mubr.f32.mxu0 0.0
        %2848 = vmatmul.mubr.f32.gmra.mxu0 %v2691
        %v2849 = vpop.f32.mrf.mxu0
        %v2850 = vadd.f32 0.0, %v2849
        %v2851 = vpop.f32.mrf.mxu0
        %v2852 = vadd.f32 0.0, %v2851
        %2853 = vdwg.mxu0
        %2854 = vmatprep.subr.mxu0 0.0
        %2855 = vmatpush1.msra.mxu0 0.0
        %2856 = vmatprep.subr.mxu0 0.0
        %2857 = vmatpush1.msra.mxu0 0.0
        %2858 = vmatprep.subr.mxu0 0.0
        %2859 = vmatpush1.msra.mxu0 0.0
        %2860 = vmatprep.subr.mxu0 0.0
        %2861 = vmatpush1.msra.mxu0 0.0
        %2862 = vmatprep.subr.mxu0 0.0
        %2863 = vmatpush1.msra.mxu0 0.0
        %2864 = vmatprep.subr.mxu0 0.0
        %2865 = vmatpush1.msra.mxu0 0.0
        %2866 = vmatprep.subr.mxu0 0.0
        %2867 = vmatpush1.msra.mxu0 0.0
        %2868 = vmatprep.subr.mxu0 0.0
        %2869 = vmatpush1.msra.mxu0 0.0
        %2870 = vmatprep.subr.mxu0 %v1566
        %2871 = vmatpush1.msra.mxu0 %v1565
        %2872 = vmatprep.subr.mxu0 %v1562
        %2873 = vmatpush1.msra.mxu0 %v1561
        %2874 = vmatprep.subr.mxu0 %v1558
        %2875 = vmatpush1.msra.mxu0 %v1557
        %2876 = vmatprep.subr.mxu0 %v1554
        %2877 = vmatpush1.msra.mxu0 %v1553
        %2878 = vmatprep.subr.mxu0 %v1550
        %2879 = vmatpush1.msra.mxu0 %v1549
        %2880 = vmatprep.subr.mxu0 %v1546
        %2881 = vmatpush1.msra.mxu0 %v1545
        %2882 = vmatprep.subr.mxu0 %v1542
        %2883 = vmatpush1.msra.mxu0 %v1541
        %2884 = vmatprep.subr.mxu0 %v1538
        %2885 = vmatpush1.msra.mxu0 %v1537
        %2886 = vmatprep.subr.mxu0 0.0
        %2887 = vmatpush2.msra.mxu0 0.0
        %2888 = vmatprep.subr.mxu0 0.0
        %2889 = vmatpush2.msra.mxu0 0.0
        %2890 = vmatprep.subr.mxu0 0.0
        %2891 = vmatpush2.msra.mxu0 0.0
        %2892 = vmatprep.subr.mxu0 0.0
        %2893 = vmatpush2.msra.mxu0 0.0
        %2894 = vmatprep.subr.mxu0 0.0
        %2895 = vmatpush2.msra.mxu0 0.0
        %2896 = vmatprep.subr.mxu0 0.0
        %2897 = vmatpush2.msra.mxu0 0.0
        %2898 = vmatprep.subr.mxu0 0.0
        %2899 = vmatpush2.msra.mxu0 0.0
        %2900 = vmatprep.subr.mxu0 0.0
        %2901 = vmatpush2.msra.mxu0 0.0
        %2902 = vmatprep.subr.mxu0 0.0
        %2903 = vmatpush2.msra.mxu0 0.0
        %2904 = vmatprep.subr.mxu0 0.0
        %2905 = vmatpush2.msra.mxu0 0.0
        %2906 = vmatprep.subr.mxu0 0.0
        %2907 = vmatpush2.msra.mxu0 0.0
        %2908 = vmatprep.subr.mxu0 0.0
        %2909 = vmatpush2.msra.mxu0 0.0
        %2910 = vmatprep.subr.mxu0 0.0
        %2911 = vmatpush2.msra.mxu0 0.0
        %2912 = vmatprep.subr.mxu0 0.0
        %2913 = vmatpush2.msra.mxu0 0.0
        %2914 = vmatprep.subr.mxu0 0.0
        %2915 = vmatpush2.msra.mxu0 0.0
        %2916 = vmatprep.subr.mxu0 0.0
        %2917 = vmatpush2.msra.mxu0 0.0
        %2918 = vmatprep.mubr.f32.mxu0 0.0
        %2919 = vmatmul.mubr.f32.gmra.mxu0 %v2646
        %v2920 = vpop.f32.mrf.mxu0
        %v2921 = vadd.f32 0.0, %v2920
        %v2922 = vpop.f32.mrf.mxu0
        %v2923 = vadd.f32 0.0, %v2922
        %2924 = vmatprep.mubr.f32.mxu0 0.0
        %2925 = vmatmul.mubr.f32.gmra.mxu0 %v2649
        %v2926 = vpop.f32.mrf.mxu0
        %v2927 = vadd.f32 0.0, %v2926
        %v2928 = vpop.f32.mrf.mxu0
        %v2929 = vadd.f32 0.0, %v2928
        %2930 = vmatprep.mubr.f32.mxu0 0.0
        %2931 = vmatmul.mubr.f32.gmra.mxu0 %v2652
        %v2932 = vpop.f32.mrf.mxu0
        %v2933 = vadd.f32 0.0, %v2932
        %v2934 = vpop.f32.mrf.mxu0
        %v2935 = vadd.f32 0.0, %v2934
        %2936 = vmatprep.mubr.f32.mxu0 0.0
        %2937 = vmatmul.mubr.f32.gmra.mxu0 %v2655
        %v2938 = vpop.f32.mrf.mxu0
        %v2939 = vadd.f32 0.0, %v2938
        %v2940 = vpop.f32.mrf.mxu0
        %v2941 = vadd.f32 0.0, %v2940
        %2942 = vmatprep.mubr.f32.mxu0 0.0
        %2943 = vmatmul.mubr.f32.gmra.mxu0 %v2658
        %v2944 = vpop.f32.mrf.mxu0
        %v2945 = vadd.f32 0.0, %v2944
        %v2946 = vpop.f32.mrf.mxu0
        %v2947 = vadd.f32 0.0, %v2946
        %2948 = vmatprep.mubr.f32.mxu0 0.0
        %2949 = vmatmul.mubr.f32.gmra.mxu0 %v2661
        %v2950 = vpop.f32.mrf.mxu0
        %v2951 = vadd.f32 0.0, %v2950
        %v2952 = vpop.f32.mrf.mxu0
        %v2953 = vadd.f32 0.0, %v2952
        %2954 = vmatprep.mubr.f32.mxu0 0.0
        %2955 = vmatmul.mubr.f32.gmra.mxu0 %v2664
        %v2956 = vpop.f32.mrf.mxu0
        %v2957 = vadd.f32 0.0, %v2956
        %v2958 = vpop.f32.mrf.mxu0
        %v2959 = vadd.f32 0.0, %v2958
        %2960 = vmatprep.mubr.f32.mxu0 0.0
        %2961 = vmatmul.mubr.f32.gmra.mxu0 %v2667
        %v2962 = vpop.f32.mrf.mxu0
        %v2963 = vadd.f32 0.0, %v2962
        %v2964 = vpop.f32.mrf.mxu0
        %v2965 = vadd.f32 0.0, %v2964
        %2966 = vmatprep.mubr.f32.mxu0 0.0
        %2967 = vmatmul.mubr.f32.gmra.mxu0 %v2670
        %v2968 = vpop.f32.mrf.mxu0
        %v2969 = vadd.f32 0.0, %v2968
        %v2970 = vpop.f32.mrf.mxu0
        %v2971 = vadd.f32 0.0, %v2970
        %2972 = vmatprep.mubr.f32.mxu0 0.0
        %2973 = vmatmul.mubr.f32.gmra.mxu0 %v2673
        %v2974 = vpop.f32.mrf.mxu0
        %v2975 = vadd.f32 0.0, %v2974
        %v2976 = vpop.f32.mrf.mxu0
        %v2977 = vadd.f32 0.0, %v2976
        %2978 = vmatprep.mubr.f32.mxu0 0.0
        %2979 = vmatmul.mubr.f32.gmra.mxu0 %v2676
        %v2980 = vpop.f32.mrf.mxu0
        %v2981 = vadd.f32 0.0, %v2980
        %v2982 = vpop.f32.mrf.mxu0
        %v2983 = vadd.f32 0.0, %v2982
        %2984 = vmatprep.mubr.f32.mxu0 0.0
        %2985 = vmatmul.mubr.f32.gmra.mxu0 %v2679
        %v2986 = vpop.f32.mrf.mxu0
        %v2987 = vadd.f32 0.0, %v2986
        %v2988 = vpop.f32.mrf.mxu0
        %v2989 = vadd.f32 0.0, %v2988
        %2990 = vmatprep.mubr.f32.mxu0 0.0
        %2991 = vmatmul.mubr.f32.gmra.mxu0 %v2682
        %v2992 = vpop.f32.mrf.mxu0
        %v2993 = vadd.f32 0.0, %v2992
        %v2994 = vpop.f32.mrf.mxu0
        %v2995 = vadd.f32 0.0, %v2994
        %2996 = vmatprep.mubr.f32.mxu0 0.0
        %2997 = vmatmul.mubr.f32.gmra.mxu0 %v2685
        %v2998 = vpop.f32.mrf.mxu0
        %v2999 = vadd.f32 0.0, %v2998
        %v3000 = vpop.f32.mrf.mxu0
        %v3001 = vadd.f32 0.0, %v3000
        %3002 = vmatprep.mubr.f32.mxu0 0.0
        %3003 = vmatmul.mubr.f32.gmra.mxu0 %v2688
        %v3004 = vpop.f32.mrf.mxu0
        %v3005 = vadd.f32 0.0, %v3004
        %v3006 = vpop.f32.mrf.mxu0
        %v3007 = vadd.f32 0.0, %v3006
        %3008 = vmatprep.mubr.f32.mxu0 0.0
        %3009 = vmatmul.mubr.f32.gmra.mxu0 %v2691
        %v3010 = vpop.f32.mrf.mxu0
        %v3011 = vadd.f32 0.0, %v3010
        %v3012 = vpop.f32.mrf.mxu0
        %v3013 = vadd.f32 0.0, %v3012
        %3014 = vdwg.mxu0
        %v3015 = vmul.f32 %v1666, %v2020
        %v3016 = vmul.f32 %v1668, %v2022
        %v3017 = vmul.f32 %v1827, %v2181
        %v3018 = vmul.f32 %v1829, %v2183
        %v3019 = vmul.f32 %v1672, %v2026
        %v3020 = vmul.f32 %v1674, %v2028
        %v3021 = vmul.f32 %v1833, %v2187
        %v3022 = vmul.f32 %v1835, %v2189
        %v3023 = vmul.f32 %v1678, %v2032
        %v3024 = vmul.f32 %v1680, %v2034
        %v3025 = vmul.f32 %v1839, %v2193
        %v3026 = vmul.f32 %v1841, %v2195
        %v3027 = vmul.f32 %v1684, %v2038
        %v3028 = vmul.f32 %v1686, %v2040
        %v3029 = vmul.f32 %v1845, %v2199
        %v3030 = vmul.f32 %v1847, %v2201
        %v3031 = vmul.f32 %v1690, %v2044
        %v3032 = vmul.f32 %v1692, %v2046
        %v3033 = vmul.f32 %v1851, %v2205
        %v3034 = vmul.f32 %v1853, %v2207
        %v3035 = vmul.f32 %v1696, %v2050
        %v3036 = vmul.f32 %v1698, %v2052
        %v3037 = vmul.f32 %v1857, %v2211
        %v3038 = vmul.f32 %v1859, %v2213
        %v3039 = vmul.f32 %v1702, %v2056
        %v3040 = vmul.f32 %v1704, %v2058
        %v3041 = vmul.f32 %v1863, %v2217
        %v3042 = vmul.f32 %v1865, %v2219
        %v3043 = vmul.f32 %v1708, %v2062
        %v3044 = vmul.f32 %v1710, %v2064
        %v3045 = vmul.f32 %v1869, %v2223
        %v3046 = vmul.f32 %v1871, %v2225
        %v3047 = vmul.f32 %v1714, %v2068
        %v3048 = vmul.f32 %v1716, %v2070
        %v3049 = vmul.f32 %v1875, %v2229
        %v3050 = vmul.f32 %v1877, %v2231
        %v3051 = vmul.f32 %v1720, %v2074
        %v3052 = vmul.f32 %v1722, %v2076
        %v3053 = vmul.f32 %v1881, %v2235
        %v3054 = vmul.f32 %v1883, %v2237
        %v3055 = vmul.f32 %v1726, %v2080
        %v3056 = vmul.f32 %v1728, %v2082
        %v3057 = vmul.f32 %v1887, %v2241
        %v3058 = vmul.f32 %v1889, %v2243
        %v3059 = vmul.f32 %v1732, %v2086
        %v3060 = vmul.f32 %v1734, %v2088
        %v3061 = vmul.f32 %v1893, %v2247
        %v3062 = vmul.f32 %v1895, %v2249
        %v3063 = vmul.f32 %v1738, %v2092
        %v3064 = vmul.f32 %v1740, %v2094
        %v3065 = vmul.f32 %v1899, %v2253
        %v3066 = vmul.f32 %v1901, %v2255
        %v3067 = vmul.f32 %v1744, %v2098
        %v3068 = vmul.f32 %v1746, %v2100
        %v3069 = vmul.f32 %v1905, %v2259
        %v3070 = vmul.f32 %v1907, %v2261
        %v3071 = vmul.f32 %v1750, %v2104
        %v3072 = vmul.f32 %v1752, %v2106
        %v3073 = vmul.f32 %v1911, %v2265
        %v3074 = vmul.f32 %v1913, %v2267
        %v3075 = vmul.f32 %v1756, %v2110
        %v3076 = vmul.f32 %v1758, %v2112
        %v3077 = vmul.f32 %v1917, %v2271
        %v3078 = vmul.f32 %v1919, %v2273
        %v3079 = vsub.f32 %v3015, %v2760
        %v3080 = vsub.f32 %v3016, %v2762
        %v3081 = vsub.f32 %v3017, %v2921
        %v3082 = vsub.f32 %v3018, %v2923
        %v3083 = vsub.f32 %v3019, %v2766
        %v3084 = vsub.f32 %v3020, %v2768
        %v3085 = vsub.f32 %v3021, %v2927
        %v3086 = vsub.f32 %v3022, %v2929
        %v3087 = vsub.f32 %v3023, %v2772
        %v3088 = vsub.f32 %v3024, %v2774
        %v3089 = vsub.f32 %v3025, %v2933
        %v3090 = vsub.f32 %v3026, %v2935
        %v3091 = vsub.f32 %v3027, %v2778
        %v3092 = vsub.f32 %v3028, %v2780
        %v3093 = vsub.f32 %v3029, %v2939
        %v3094 = vsub.f32 %v3030, %v2941
        %v3095 = vsub.f32 %v3031, %v2784
        %v3096 = vsub.f32 %v3032, %v2786
        %v3097 = vsub.f32 %v3033, %v2945
        %v3098 = vsub.f32 %v3034, %v2947
        %v3099 = vsub.f32 %v3035, %v2790
        %v3100 = vsub.f32 %v3036, %v2792
        %v3101 = vsub.f32 %v3037, %v2951
        %v3102 = vsub.f32 %v3038, %v2953
        %v3103 = vsub.f32 %v3039, %v2796
        %v3104 = vsub.f32 %v3040, %v2798
        %v3105 = vsub.f32 %v3041, %v2957
        %v3106 = vsub.f32 %v3042, %v2959
        %v3107 = vsub.f32 %v3043, %v2802
        %v3108 = vsub.f32 %v3044, %v2804
        %v3109 = vsub.f32 %v3045, %v2963
        %v3110 = vsub.f32 %v3046, %v2965
        %v3111 = vsub.f32 %v3047, %v2808
        %v3112 = vsub.f32 %v3048, %v2810
        %v3113 = vsub.f32 %v3049, %v2969
        %v3114 = vsub.f32 %v3050, %v2971
        %v3115 = vsub.f32 %v3051, %v2814
        %v3116 = vsub.f32 %v3052, %v2816
        %v3117 = vsub.f32 %v3053, %v2975
        %v3118 = vsub.f32 %v3054, %v2977
        %v3119 = vsub.f32 %v3055, %v2820
        %v3120 = vsub.f32 %v3056, %v2822
        %v3121 = vsub.f32 %v3057, %v2981
        %v3122 = vsub.f32 %v3058, %v2983
        %v3123 = vsub.f32 %v3059, %v2826
        %v3124 = vsub.f32 %v3060, %v2828
        %v3125 = vsub.f32 %v3061, %v2987
        %v3126 = vsub.f32 %v3062, %v2989
        %v3127 = vsub.f32 %v3063, %v2832
        %v3128 = vsub.f32 %v3064, %v2834
        %v3129 = vsub.f32 %v3065, %v2993
        %v3130 = vsub.f32 %v3066, %v2995
        %v3131 = vsub.f32 %v3067, %v2838
        %v3132 = vsub.f32 %v3068, %v2840
        %v3133 = vsub.f32 %v3069, %v2999
        %v3134 = vsub.f32 %v3070, %v3001
        %v3135 = vsub.f32 %v3071, %v2844
        %v3136 = vsub.f32 %v3072, %v2846
        %v3137 = vsub.f32 %v3073, %v3005
        %v3138 = vsub.f32 %v3074, %v3007
        %v3139 = vsub.f32 %v3075, %v2850
        %v3140 = vsub.f32 %v3076, %v2852
        %v3141 = vsub.f32 %v3077, %v3011
        %v3142 = vsub.f32 %v3078, %v3013
        %v3143 = vmul.f32 %v3079, 1.442695
        %v3144 = vpow.pop %v3143
        %v3145 = vmul.f32 %v3080, 1.442695
        %v3146 = vpow.pop %v3145
        %v3147 = vmul.f32 %v3081, 1.442695
        %v3148 = vpow.pop %v3147
        %v3149 = vmul.f32 %v3082, 1.442695
        %v3150 = vpow.pop %v3149
        %v3151 = vmul.f32 %v3083, 1.442695
        %v3152 = vpow.pop %v3151
        %v3153 = vmul.f32 %v3084, 1.442695
        %v3154 = vpow.pop %v3153
        %v3155 = vmul.f32 %v3085, 1.442695
        %v3156 = vpow.pop %v3155
        %v3157 = vmul.f32 %v3086, 1.442695
        %v3158 = vpow.pop %v3157
        %v3159 = vmul.f32 %v3087, 1.442695
        %v3160 = vpow.pop %v3159
        %v3161 = vmul.f32 %v3088, 1.442695
        %v3162 = vpow.pop %v3161
        %v3163 = vmul.f32 %v3089, 1.442695
        %v3164 = vpow.pop %v3163
        %v3165 = vmul.f32 %v3090, 1.442695
        %v3166 = vpow.pop %v3165
        %v3167 = vmul.f32 %v3091, 1.442695
        %v3168 = vpow.pop %v3167
        %v3169 = vmul.f32 %v3092, 1.442695
        %v3170 = vpow.pop %v3169
        %v3171 = vmul.f32 %v3093, 1.442695
        %v3172 = vpow.pop %v3171
        %v3173 = vmul.f32 %v3094, 1.442695
        %v3174 = vpow.pop %v3173
        %v3175 = vmul.f32 %v3095, 1.442695
        %v3176 = vpow.pop %v3175
        %v3177 = vmul.f32 %v3096, 1.442695
        %v3178 = vpow.pop %v3177
        %v3179 = vmul.f32 %v3097, 1.442695
        %v3180 = vpow.pop %v3179
        %v3181 = vmul.f32 %v3098, 1.442695
        %v3182 = vpow.pop %v3181
        %v3183 = vmul.f32 %v3099, 1.442695
        %v3184 = vpow.pop %v3183
        %v3185 = vmul.f32 %v3100, 1.442695
        %v3186 = vpow.pop %v3185
        %v3187 = vmul.f32 %v3101, 1.442695
        %v3188 = vpow.pop %v3187
        %v3189 = vmul.f32 %v3102, 1.442695
        %v3190 = vpow.pop %v3189
        %v3191 = vmul.f32 %v3103, 1.442695
        %v3192 = vpow.pop %v3191
        %v3193 = vmul.f32 %v3104, 1.442695
        %v3194 = vpow.pop %v3193
        %v3195 = vmul.f32 %v3105, 1.442695
        %v3196 = vpow.pop %v3195
        %v3197 = vmul.f32 %v3106, 1.442695
        %v3198 = vpow.pop %v3197
        %v3199 = vmul.f32 %v3107, 1.442695
        %v3200 = vpow.pop %v3199
        %v3201 = vmul.f32 %v3108, 1.442695
        %v3202 = vpow.pop %v3201
        %v3203 = vmul.f32 %v3109, 1.442695
        %v3204 = vpow.pop %v3203
        %v3205 = vmul.f32 %v3110, 1.442695
        %v3206 = vpow.pop %v3205
        %v3207 = vmul.f32 %v3111, 1.442695
        %v3208 = vpow.pop %v3207
        %v3209 = vmul.f32 %v3112, 1.442695
        %v3210 = vpow.pop %v3209
        %v3211 = vmul.f32 %v3113, 1.442695
        %v3212 = vpow.pop %v3211
        %v3213 = vmul.f32 %v3114, 1.442695
        %v3214 = vpow.pop %v3213
        %v3215 = vmul.f32 %v3115, 1.442695
        %v3216 = vpow.pop %v3215
        %v3217 = vmul.f32 %v3116, 1.442695
        %v3218 = vpow.pop %v3217
        %v3219 = vmul.f32 %v3117, 1.442695
        %v3220 = vpow.pop %v3219
        %v3221 = vmul.f32 %v3118, 1.442695
        %v3222 = vpow.pop %v3221
        %v3223 = vmul.f32 %v3119, 1.442695
        %v3224 = vpow.pop %v3223
        %v3225 = vmul.f32 %v3120, 1.442695
        %v3226 = vpow.pop %v3225
        %v3227 = vmul.f32 %v3121, 1.442695
        %v3228 = vpow.pop %v3227
        %v3229 = vmul.f32 %v3122, 1.442695
        %v3230 = vpow.pop %v3229
        %v3231 = vmul.f32 %v3123, 1.442695
        %v3232 = vpow.pop %v3231
        %v3233 = vmul.f32 %v3124, 1.442695
        %v3234 = vpow.pop %v3233
        %v3235 = vmul.f32 %v3125, 1.442695
        %v3236 = vpow.pop %v3235
        %v3237 = vmul.f32 %v3126, 1.442695
        %v3238 = vpow.pop %v3237
        %v3239 = vmul.f32 %v3127, 1.442695
        %v3240 = vpow.pop %v3239
        %v3241 = vmul.f32 %v3128, 1.442695
        %v3242 = vpow.pop %v3241
        %v3243 = vmul.f32 %v3129, 1.442695
        %v3244 = vpow.pop %v3243
        %v3245 = vmul.f32 %v3130, 1.442695
        %v3246 = vpow.pop %v3245
        %v3247 = vmul.f32 %v3131, 1.442695
        %v3248 = vpow.pop %v3247
        %v3249 = vmul.f32 %v3132, 1.442695
        %v3250 = vpow.pop %v3249
        %v3251 = vmul.f32 %v3133, 1.442695
        %v3252 = vpow.pop %v3251
        %v3253 = vmul.f32 %v3134, 1.442695
        %v3254 = vpow.pop %v3253
        %v3255 = vmul.f32 %v3135, 1.442695
        %v3256 = vpow.pop %v3255
        %v3257 = vmul.f32 %v3136, 1.442695
        %v3258 = vpow.pop %v3257
        %v3259 = vmul.f32 %v3137, 1.442695
        %v3260 = vpow.pop %v3259
        %v3261 = vmul.f32 %v3138, 1.442695
        %v3262 = vpow.pop %v3261
        %v3263 = vmul.f32 %v3139, 1.442695
        %v3264 = vpow.pop %v3263
        %v3265 = vmul.f32 %v3140, 1.442695
        %v3266 = vpow.pop %v3265
        %v3267 = vmul.f32 %v3141, 1.442695
        %v3268 = vpow.pop %v3267
        %v3269 = vmul.f32 %v3142, 1.442695
        %v3270 = vpow.pop %v3269
        %v3271 = vld [vmem:[%s8] sm:$0xff]
        %v3272 = vld [vmem:[%s8 + $0x8] sm:$0xff]
        %v3273 = vld [vmem:[%s8 + $0x10] sm:$0xff]
        %v3274 = vld [vmem:[%s8 + $0x18] sm:$0xff]
        %v3275 = vld [vmem:[%s8 + $0x20] sm:$0xff]
        %v3276 = vld [vmem:[%s8 + $0x28] sm:$0xff]
        %v3277 = vld [vmem:[%s8 + $0x30] sm:$0xff]
        %v3278 = vld [vmem:[%s8 + $0x38] sm:$0xff]
        %v3279 = vld [vmem:[%s8 + $0x40] sm:$0xff]
        %v3280 = vld [vmem:[%s8 + $0x48] sm:$0xff]
        %v3281 = vld [vmem:[%s8 + $0x50] sm:$0xff]
        %v3282 = vld [vmem:[%s8 + $0x58] sm:$0xff]
        %v3283 = vld [vmem:[%s8 + $0x60] sm:$0xff]
        %v3284 = vld [vmem:[%s8 + $0x68] sm:$0xff]
        %v3285 = vld [vmem:[%s8 + $0x70] sm:$0xff]
        %v3286 = vld [vmem:[%s8 + $0x78] sm:$0xff]
        %v3287 = vld [vmem:[%s8 + $0x80] sm:$0xff]
        %v3288 = vld [vmem:[%s8 + $0x88] sm:$0xff]
        %v3289 = vld [vmem:[%s8 + $0x90] sm:$0xff]
        %v3290 = vld [vmem:[%s8 + $0x98] sm:$0xff]
        %v3291 = vld [vmem:[%s8 + $0xa0] sm:$0xff]
        %v3292 = vld [vmem:[%s8 + $0xa8] sm:$0xff]
        %v3293 = vld [vmem:[%s8 + $0xb0] sm:$0xff]
        %v3294 = vld [vmem:[%s8 + $0xb8] sm:$0xff]
        %v3295 = vld [vmem:[%s8 + $0xc0] sm:$0xff]
        %v3296 = vld [vmem:[%s8 + $0xc8] sm:$0xff]
        %v3297 = vld [vmem:[%s8 + $0xd0] sm:$0xff]
        %v3298 = vld [vmem:[%s8 + $0xd8] sm:$0xff]
        %v3299 = vld [vmem:[%s8 + $0xe0] sm:$0xff]
        %v3300 = vld [vmem:[%s8 + $0xe8] sm:$0xff]
        %v3301 = vld [vmem:[%s8 + $0xf0] sm:$0xff]
        %v3302 = vld [vmem:[%s8 + $0xf8] sm:$0xff]
        %v3303 = vld [vmem:[%s8 + $0x100] sm:$0xff]
        %v3304 = vld [vmem:[%s8 + $0x108] sm:$0xff]
        %v3305 = vld [vmem:[%s8 + $0x110] sm:$0xff]
        %v3306 = vld [vmem:[%s8 + $0x118] sm:$0xff]
        %v3307 = vld [vmem:[%s8 + $0x120] sm:$0xff]
        %v3308 = vld [vmem:[%s8 + $0x128] sm:$0xff]
        %v3309 = vld [vmem:[%s8 + $0x130] sm:$0xff]
        %v3310 = vld [vmem:[%s8 + $0x138] sm:$0xff]
        %v3311 = vld [vmem:[%s8 + $0x140] sm:$0xff]
        %v3312 = vld [vmem:[%s8 + $0x148] sm:$0xff]
        %v3313 = vld [vmem:[%s8 + $0x150] sm:$0xff]
        %v3314 = vld [vmem:[%s8 + $0x158] sm:$0xff]
        %v3315 = vld [vmem:[%s8 + $0x160] sm:$0xff]
        %v3316 = vld [vmem:[%s8 + $0x168] sm:$0xff]
        %v3317 = vld [vmem:[%s8 + $0x170] sm:$0xff]
        %v3318 = vld [vmem:[%s8 + $0x178] sm:$0xff]
        %v3319 = vld [vmem:[%s8 + $0x180] sm:$0xff]
        %v3320 = vld [vmem:[%s8 + $0x188] sm:$0xff]
        %v3321 = vld [vmem:[%s8 + $0x190] sm:$0xff]
        %v3322 = vld [vmem:[%s8 + $0x198] sm:$0xff]
        %v3323 = vld [vmem:[%s8 + $0x1a0] sm:$0xff]
        %v3324 = vld [vmem:[%s8 + $0x1a8] sm:$0xff]
        %v3325 = vld [vmem:[%s8 + $0x1b0] sm:$0xff]
        %v3326 = vld [vmem:[%s8 + $0x1b8] sm:$0xff]
        %v3327 = vld [vmem:[%s8 + $0x1c0] sm:$0xff]
        %v3328 = vld [vmem:[%s8 + $0x1c8] sm:$0xff]
        %v3329 = vld [vmem:[%s8 + $0x1d0] sm:$0xff]
        %v3330 = vld [vmem:[%s8 + $0x1d8] sm:$0xff]
        %v3331 = vld [vmem:[%s8 + $0x1e0] sm:$0xff]
        %v3332 = vld [vmem:[%s8 + $0x1e8] sm:$0xff]
        %v3333 = vld [vmem:[%s8 + $0x1f0] sm:$0xff]
        %v3334 = vld [vmem:[%s8 + $0x1f8] sm:$0xff]
        %3335 = vmatprep.subr.mxu0 0.0
        %3336 = vmatpush1.msra.mxu0 %v3286
        %3337 = vmatprep.subr.mxu0 0.0
        %3338 = vmatpush1.msra.mxu0 %v3285
        %3339 = vmatprep.subr.mxu0 0.0
        %3340 = vmatpush1.msra.mxu0 %v3284
        %3341 = vmatprep.subr.mxu0 0.0
        %3342 = vmatpush1.msra.mxu0 %v3283
        %3343 = vmatprep.subr.mxu0 0.0
        %3344 = vmatpush1.msra.mxu0 %v3282
        %3345 = vmatprep.subr.mxu0 0.0
        %3346 = vmatpush1.msra.mxu0 %v3281
        %3347 = vmatprep.subr.mxu0 0.0
        %3348 = vmatpush1.msra.mxu0 %v3280
        %3349 = vmatprep.subr.mxu0 0.0
        %3350 = vmatpush1.msra.mxu0 %v3279
        %3351 = vmatprep.subr.mxu0 0.0
        %3352 = vmatpush1.msra.mxu0 %v3278
        %3353 = vmatprep.subr.mxu0 0.0
        %3354 = vmatpush1.msra.mxu0 %v3277
        %3355 = vmatprep.subr.mxu0 0.0
        %3356 = vmatpush1.msra.mxu0 %v3276
        %3357 = vmatprep.subr.mxu0 0.0
        %3358 = vmatpush1.msra.mxu0 %v3275
        %3359 = vmatprep.subr.mxu0 0.0
        %3360 = vmatpush1.msra.mxu0 %v3274
        %3361 = vmatprep.subr.mxu0 0.0
        %3362 = vmatpush1.msra.mxu0 %v3273
        %3363 = vmatprep.subr.mxu0 0.0
        %3364 = vmatpush1.msra.mxu0 %v3272
        %3365 = vmatprep.subr.mxu0 0.0
        %3366 = vmatpush1.msra.mxu0 %v3271
        %3367 = vmatprep.subr.mxu0 0.0
        %3368 = vmatpush2.msra.mxu0 %v3302
        %3369 = vmatprep.subr.mxu0 0.0
        %3370 = vmatpush2.msra.mxu0 %v3301
        %3371 = vmatprep.subr.mxu0 0.0
        %3372 = vmatpush2.msra.mxu0 %v3300
        %3373 = vmatprep.subr.mxu0 0.0
        %3374 = vmatpush2.msra.mxu0 %v3299
        %3375 = vmatprep.subr.mxu0 0.0
        %3376 = vmatpush2.msra.mxu0 %v3298
        %3377 = vmatprep.subr.mxu0 0.0
        %3378 = vmatpush2.msra.mxu0 %v3297
        %3379 = vmatprep.subr.mxu0 0.0
        %3380 = vmatpush2.msra.mxu0 %v3296
        %3381 = vmatprep.subr.mxu0 0.0
        %3382 = vmatpush2.msra.mxu0 %v3295
        %3383 = vmatprep.subr.mxu0 0.0
        %3384 = vmatpush2.msra.mxu0 %v3294
        %3385 = vmatprep.subr.mxu0 0.0
        %3386 = vmatpush2.msra.mxu0 %v3293
        %3387 = vmatprep.subr.mxu0 0.0
        %3388 = vmatpush2.msra.mxu0 %v3292
        %3389 = vmatprep.subr.mxu0 0.0
        %3390 = vmatpush2.msra.mxu0 %v3291
        %3391 = vmatprep.subr.mxu0 0.0
        %3392 = vmatpush2.msra.mxu0 %v3290
        %3393 = vmatprep.subr.mxu0 0.0
        %3394 = vmatpush2.msra.mxu0 %v3289
        %3395 = vmatprep.subr.mxu0 0.0
        %3396 = vmatpush2.msra.mxu0 %v3288
        %3397 = vmatprep.subr.mxu0 0.0
        %3398 = vmatpush2.msra.mxu0 %v3287
        %3399 = vmatprep.mubr.f32.mxu0 %v3146
        %3400 = vmatmul.mubr.f32.gmra.mxu0 %v3144
        %v3401 = vpop.f32.mrf.mxu0
        %v3402 = vadd.f32 0.0, %v3401
        %v3403 = vpop.f32.mrf.mxu0
        %3404 = vmatprep.mubr.f32.mxu0 %v3154
        %3405 = vmatmul.mubr.f32.gmra.mxu0 %v3152
        %v3406 = vpop.f32.mrf.mxu0
        %v3407 = vadd.f32 0.0, %v3406
        %v3408 = vpop.f32.mrf.mxu0
        %3409 = vmatprep.mubr.f32.mxu0 %v3162
        %3410 = vmatmul.mubr.f32.gmra.mxu0 %v3160
        %v3411 = vpop.f32.mrf.mxu0
        %v3412 = vadd.f32 0.0, %v3411
        %v3413 = vpop.f32.mrf.mxu0
        %3414 = vmatprep.mubr.f32.mxu0 %v3170
        %3415 = vmatmul.mubr.f32.gmra.mxu0 %v3168
        %v3416 = vpop.f32.mrf.mxu0
        %v3417 = vadd.f32 0.0, %v3416
        %v3418 = vpop.f32.mrf.mxu0
        %3419 = vmatprep.mubr.f32.mxu0 %v3178
        %3420 = vmatmul.mubr.f32.gmra.mxu0 %v3176
        %v3421 = vpop.f32.mrf.mxu0
        %v3422 = vadd.f32 0.0, %v3421
        %v3423 = vpop.f32.mrf.mxu0
        %3424 = vmatprep.mubr.f32.mxu0 %v3186
        %3425 = vmatmul.mubr.f32.gmra.mxu0 %v3184
        %v3426 = vpop.f32.mrf.mxu0
        %v3427 = vadd.f32 0.0, %v3426
        %v3428 = vpop.f32.mrf.mxu0
        %3429 = vmatprep.mubr.f32.mxu0 %v3194
        %3430 = vmatmul.mubr.f32.gmra.mxu0 %v3192
        %v3431 = vpop.f32.mrf.mxu0
        %v3432 = vadd.f32 0.0, %v3431
        %v3433 = vpop.f32.mrf.mxu0
        %3434 = vmatprep.mubr.f32.mxu0 %v3202
        %3435 = vmatmul.mubr.f32.gmra.mxu0 %v3200
        %v3436 = vpop.f32.mrf.mxu0
        %v3437 = vadd.f32 0.0, %v3436
        %v3438 = vpop.f32.mrf.mxu0
        %3439 = vmatprep.mubr.f32.mxu0 %v3210
        %3440 = vmatmul.mubr.f32.gmra.mxu0 %v3208
        %v3441 = vpop.f32.mrf.mxu0
        %v3442 = vadd.f32 0.0, %v3441
        %v3443 = vpop.f32.mrf.mxu0
        %3444 = vmatprep.mubr.f32.mxu0 %v3218
        %3445 = vmatmul.mubr.f32.gmra.mxu0 %v3216
        %v3446 = vpop.f32.mrf.mxu0
        %v3447 = vadd.f32 0.0, %v3446
        %v3448 = vpop.f32.mrf.mxu0
        %3449 = vmatprep.mubr.f32.mxu0 %v3226
        %3450 = vmatmul.mubr.f32.gmra.mxu0 %v3224
        %v3451 = vpop.f32.mrf.mxu0
        %v3452 = vadd.f32 0.0, %v3451
        %v3453 = vpop.f32.mrf.mxu0
        %3454 = vmatprep.mubr.f32.mxu0 %v3234
        %3455 = vmatmul.mubr.f32.gmra.mxu0 %v3232
        %v3456 = vpop.f32.mrf.mxu0
        %v3457 = vadd.f32 0.0, %v3456
        %v3458 = vpop.f32.mrf.mxu0
        %3459 = vmatprep.mubr.f32.mxu0 %v3242
        %3460 = vmatmul.mubr.f32.gmra.mxu0 %v3240
        %v3461 = vpop.f32.mrf.mxu0
        %v3462 = vadd.f32 0.0, %v3461
        %v3463 = vpop.f32.mrf.mxu0
        %3464 = vmatprep.mubr.f32.mxu0 %v3250
        %3465 = vmatmul.mubr.f32.gmra.mxu0 %v3248
        %v3466 = vpop.f32.mrf.mxu0
        %v3467 = vadd.f32 0.0, %v3466
        %v3468 = vpop.f32.mrf.mxu0
        %3469 = vmatprep.mubr.f32.mxu0 %v3258
        %3470 = vmatmul.mubr.f32.gmra.mxu0 %v3256
        %v3471 = vpop.f32.mrf.mxu0
        %v3472 = vadd.f32 0.0, %v3471
        %v3473 = vpop.f32.mrf.mxu0
        %3474 = vmatprep.mubr.f32.mxu0 %v3266
        %3475 = vmatmul.mubr.f32.gmra.mxu0 %v3264
        %v3476 = vpop.f32.mrf.mxu0
        %v3477 = vadd.f32 0.0, %v3476
        %v3478 = vpop.f32.mrf.mxu0
        %3479 = vdwg.mxu0
        %3480 = vmatprep.subr.mxu0 0.0
        %3481 = vmatpush1.msra.mxu0 %v3318
        %3482 = vmatprep.subr.mxu0 0.0
        %3483 = vmatpush1.msra.mxu0 %v3317
        %3484 = vmatprep.subr.mxu0 0.0
        %3485 = vmatpush1.msra.mxu0 %v3316
        %3486 = vmatprep.subr.mxu0 0.0
        %3487 = vmatpush1.msra.mxu0 %v3315
        %3488 = vmatprep.subr.mxu0 0.0
        %3489 = vmatpush1.msra.mxu0 %v3314
        %3490 = vmatprep.subr.mxu0 0.0
        %3491 = vmatpush1.msra.mxu0 %v3313
        %3492 = vmatprep.subr.mxu0 0.0
        %3493 = vmatpush1.msra.mxu0 %v3312
        %3494 = vmatprep.subr.mxu0 0.0
        %3495 = vmatpush1.msra.mxu0 %v3311
        %3496 = vmatprep.subr.mxu0 0.0
        %3497 = vmatpush1.msra.mxu0 %v3310
        %3498 = vmatprep.subr.mxu0 0.0
        %3499 = vmatpush1.msra.mxu0 %v3309
        %3500 = vmatprep.subr.mxu0 0.0
        %3501 = vmatpush1.msra.mxu0 %v3308
        %3502 = vmatprep.subr.mxu0 0.0
        %3503 = vmatpush1.msra.mxu0 %v3307
        %3504 = vmatprep.subr.mxu0 0.0
        %3505 = vmatpush1.msra.mxu0 %v3306
        %3506 = vmatprep.subr.mxu0 0.0
        %3507 = vmatpush1.msra.mxu0 %v3305
        %3508 = vmatprep.subr.mxu0 0.0
        %3509 = vmatpush1.msra.mxu0 %v3304
        %3510 = vmatprep.subr.mxu0 0.0
        %3511 = vmatpush1.msra.mxu0 %v3303
        %3512 = vmatprep.subr.mxu0 0.0
        %3513 = vmatpush2.msra.mxu0 %v3334
        %3514 = vmatprep.subr.mxu0 0.0
        %3515 = vmatpush2.msra.mxu0 %v3333
        %3516 = vmatprep.subr.mxu0 0.0
        %3517 = vmatpush2.msra.mxu0 %v3332
        %3518 = vmatprep.subr.mxu0 0.0
        %3519 = vmatpush2.msra.mxu0 %v3331
        %3520 = vmatprep.subr.mxu0 0.0
        %3521 = vmatpush2.msra.mxu0 %v3330
        %3522 = vmatprep.subr.mxu0 0.0
        %3523 = vmatpush2.msra.mxu0 %v3329
        %3524 = vmatprep.subr.mxu0 0.0
        %3525 = vmatpush2.msra.mxu0 %v3328
        %3526 = vmatprep.subr.mxu0 0.0
        %3527 = vmatpush2.msra.mxu0 %v3327
        %3528 = vmatprep.subr.mxu0 0.0
        %3529 = vmatpush2.msra.mxu0 %v3326
        %3530 = vmatprep.subr.mxu0 0.0
        %3531 = vmatpush2.msra.mxu0 %v3325
        %3532 = vmatprep.subr.mxu0 0.0
        %3533 = vmatpush2.msra.mxu0 %v3324
        %3534 = vmatprep.subr.mxu0 0.0
        %3535 = vmatpush2.msra.mxu0 %v3323
        %3536 = vmatprep.subr.mxu0 0.0
        %3537 = vmatpush2.msra.mxu0 %v3322
        %3538 = vmatprep.subr.mxu0 0.0
        %3539 = vmatpush2.msra.mxu0 %v3321
        %3540 = vmatprep.subr.mxu0 0.0
        %3541 = vmatpush2.msra.mxu0 %v3320
        %3542 = vmatprep.subr.mxu0 0.0
        %3543 = vmatpush2.msra.mxu0 %v3319
        %3544 = vmatprep.mubr.f32.mxu0 %v3150
        %3545 = vmatmul.mubr.f32.gmra.mxu0 %v3148
        %v3546 = vpop.f32.mrf.mxu0
        %v3547 = vadd.f32 %v3402, %v3546
        %v3548 = vpop.f32.mrf.mxu0
        %3549 = vmatprep.mubr.f32.mxu0 %v3158
        %3550 = vmatmul.mubr.f32.gmra.mxu0 %v3156
        %v3551 = vpop.f32.mrf.mxu0
        %v3552 = vadd.f32 %v3407, %v3551
        %v3553 = vpop.f32.mrf.mxu0
        %3554 = vmatprep.mubr.f32.mxu0 %v3166
        %3555 = vmatmul.mubr.f32.gmra.mxu0 %v3164
        %v3556 = vpop.f32.mrf.mxu0
        %v3557 = vadd.f32 %v3412, %v3556
        %v3558 = vpop.f32.mrf.mxu0
        %3559 = vmatprep.mubr.f32.mxu0 %v3174
        %3560 = vmatmul.mubr.f32.gmra.mxu0 %v3172
        %v3561 = vpop.f32.mrf.mxu0
        %v3562 = vadd.f32 %v3417, %v3561
        %v3563 = vpop.f32.mrf.mxu0
        %3564 = vmatprep.mubr.f32.mxu0 %v3182
        %3565 = vmatmul.mubr.f32.gmra.mxu0 %v3180
        %v3566 = vpop.f32.mrf.mxu0
        %v3567 = vadd.f32 %v3422, %v3566
        %v3568 = vpop.f32.mrf.mxu0
        %3569 = vmatprep.mubr.f32.mxu0 %v3190
        %3570 = vmatmul.mubr.f32.gmra.mxu0 %v3188
        %v3571 = vpop.f32.mrf.mxu0
        %v3572 = vadd.f32 %v3427, %v3571
        %v3573 = vpop.f32.mrf.mxu0
        %3574 = vmatprep.mubr.f32.mxu0 %v3198
        %3575 = vmatmul.mubr.f32.gmra.mxu0 %v3196
        %v3576 = vpop.f32.mrf.mxu0
        %v3577 = vadd.f32 %v3432, %v3576
        %v3578 = vpop.f32.mrf.mxu0
        %3579 = vmatprep.mubr.f32.mxu0 %v3206
        %3580 = vmatmul.mubr.f32.gmra.mxu0 %v3204
        %v3581 = vpop.f32.mrf.mxu0
        %v3582 = vadd.f32 %v3437, %v3581
        %v3583 = vpop.f32.mrf.mxu0
        %3584 = vmatprep.mubr.f32.mxu0 %v3214
        %3585 = vmatmul.mubr.f32.gmra.mxu0 %v3212
        %v3586 = vpop.f32.mrf.mxu0
        %v3587 = vadd.f32 %v3442, %v3586
        %v3588 = vpop.f32.mrf.mxu0
        %3589 = vmatprep.mubr.f32.mxu0 %v3222
        %3590 = vmatmul.mubr.f32.gmra.mxu0 %v3220
        %v3591 = vpop.f32.mrf.mxu0
        %v3592 = vadd.f32 %v3447, %v3591
        %v3593 = vpop.f32.mrf.mxu0
        %3594 = vmatprep.mubr.f32.mxu0 %v3230
        %3595 = vmatmul.mubr.f32.gmra.mxu0 %v3228
        %v3596 = vpop.f32.mrf.mxu0
        %v3597 = vadd.f32 %v3452, %v3596
        %v3598 = vpop.f32.mrf.mxu0
        %3599 = vmatprep.mubr.f32.mxu0 %v3238
        %3600 = vmatmul.mubr.f32.gmra.mxu0 %v3236
        %v3601 = vpop.f32.mrf.mxu0
        %v3602 = vadd.f32 %v3457, %v3601
        %v3603 = vpop.f32.mrf.mxu0
        %3604 = vmatprep.mubr.f32.mxu0 %v3246
        %3605 = vmatmul.mubr.f32.gmra.mxu0 %v3244
        %v3606 = vpop.f32.mrf.mxu0
        %v3607 = vadd.f32 %v3462, %v3606
        %v3608 = vpop.f32.mrf.mxu0
        %3609 = vmatprep.mubr.f32.mxu0 %v3254
        %3610 = vmatmul.mubr.f32.gmra.mxu0 %v3252
        %v3611 = vpop.f32.mrf.mxu0
        %v3612 = vadd.f32 %v3467, %v3611
        %v3613 = vpop.f32.mrf.mxu0
        %3614 = vmatprep.mubr.f32.mxu0 %v3262
        %3615 = vmatmul.mubr.f32.gmra.mxu0 %v3260
        %v3616 = vpop.f32.mrf.mxu0
        %v3617 = vadd.f32 %v3472, %v3616
        %v3618 = vpop.f32.mrf.mxu0
        %3619 = vmatprep.mubr.f32.mxu0 %v3270
        %3620 = vmatmul.mubr.f32.gmra.mxu0 %v3268
        %v3621 = vpop.f32.mrf.mxu0
        %v3622 = vadd.f32 %v3477, %v3621
        %v3623 = vpop.f32.mrf.mxu0
        %3624 = vdwg.mxu0
        %v3625 = vmul.f32 %v3144, %v2390
        %v3626 = vmul.f32 %v3146, %v2392
        %v3627 = vmul.f32 %v3148, %v2551
        %v3628 = vmul.f32 %v3150, %v2553
        %v3629 = vmul.f32 %v3152, %v2396
        %v3630 = vmul.f32 %v3154, %v2398
        %v3631 = vmul.f32 %v3156, %v2557
        %v3632 = vmul.f32 %v3158, %v2559
        %v3633 = vmul.f32 %v3160, %v2402
        %v3634 = vmul.f32 %v3162, %v2404
        %v3635 = vmul.f32 %v3164, %v2563
        %v3636 = vmul.f32 %v3166, %v2565
        %v3637 = vmul.f32 %v3168, %v2408
        %v3638 = vmul.f32 %v3170, %v2410
        %v3639 = vmul.f32 %v3172, %v2569
        %v3640 = vmul.f32 %v3174, %v2571
        %v3641 = vmul.f32 %v3176, %v2414
        %v3642 = vmul.f32 %v3178, %v2416
        %v3643 = vmul.f32 %v3180, %v2575
        %v3644 = vmul.f32 %v3182, %v2577
        %v3645 = vmul.f32 %v3184, %v2420
        %v3646 = vmul.f32 %v3186, %v2422
        %v3647 = vmul.f32 %v3188, %v2581
        %v3648 = vmul.f32 %v3190, %v2583
        %v3649 = vmul.f32 %v3192, %v2426
        %v3650 = vmul.f32 %v3194, %v2428
        %v3651 = vmul.f32 %v3196, %v2587
        %v3652 = vmul.f32 %v3198, %v2589
        %v3653 = vmul.f32 %v3200, %v2432
        %v3654 = vmul.f32 %v3202, %v2434
        %v3655 = vmul.f32 %v3204, %v2593
        %v3656 = vmul.f32 %v3206, %v2595
        %v3657 = vmul.f32 %v3208, %v2438
        %v3658 = vmul.f32 %v3210, %v2440
        %v3659 = vmul.f32 %v3212, %v2599
        %v3660 = vmul.f32 %v3214, %v2601
        %v3661 = vmul.f32 %v3216, %v2444
        %v3662 = vmul.f32 %v3218, %v2446
        %v3663 = vmul.f32 %v3220, %v2605
        %v3664 = vmul.f32 %v3222, %v2607
        %v3665 = vmul.f32 %v3224, %v2450
        %v3666 = vmul.f32 %v3226, %v2452
        %v3667 = vmul.f32 %v3228, %v2611
        %v3668 = vmul.f32 %v3230, %v2613
        %v3669 = vmul.f32 %v3232, %v2456
        %v3670 = vmul.f32 %v3234, %v2458
        %v3671 = vmul.f32 %v3236, %v2617
        %v3672 = vmul.f32 %v3238, %v2619
        %v3673 = vmul.f32 %v3240, %v2462
        %v3674 = vmul.f32 %v3242, %v2464
        %v3675 = vmul.f32 %v3244, %v2623
        %v3676 = vmul.f32 %v3246, %v2625
        %v3677 = vmul.f32 %v3248, %v2468
        %v3678 = vmul.f32 %v3250, %v2470
        %v3679 = vmul.f32 %v3252, %v2629
        %v3680 = vmul.f32 %v3254, %v2631
        %v3681 = vmul.f32 %v3256, %v2474
        %v3682 = vmul.f32 %v3258, %v2476
        %v3683 = vmul.f32 %v3260, %v2635
        %v3684 = vmul.f32 %v3262, %v2637
        %v3685 = vmul.f32 %v3264, %v2480
        %v3686 = vmul.f32 %v3266, %v2482
        %v3687 = vmul.f32 %v3268, %v2641
        %v3688 = vmul.f32 %v3270, %v2643
        %3689 = vmatprep.subr.mxu0 0.0
        %3690 = vmatpush1.msra.mxu0 %v3286
        %3691 = vmatprep.subr.mxu0 0.0
        %3692 = vmatpush1.msra.mxu0 %v3285
        %3693 = vmatprep.subr.mxu0 0.0
        %3694 = vmatpush1.msra.mxu0 %v3284
        %3695 = vmatprep.subr.mxu0 0.0
        %3696 = vmatpush1.msra.mxu0 %v3283
        %3697 = vmatprep.subr.mxu0 0.0
        %3698 = vmatpush1.msra.mxu0 %v3282
        %3699 = vmatprep.subr.mxu0 0.0
        %3700 = vmatpush1.msra.mxu0 %v3281
        %3701 = vmatprep.subr.mxu0 0.0
        %3702 = vmatpush1.msra.mxu0 %v3280
        %3703 = vmatprep.subr.mxu0 0.0
        %3704 = vmatpush1.msra.mxu0 %v3279
        %3705 = vmatprep.subr.mxu0 0.0
        %3706 = vmatpush1.msra.mxu0 %v3278
        %3707 = vmatprep.subr.mxu0 0.0
        %3708 = vmatpush1.msra.mxu0 %v3277
        %3709 = vmatprep.subr.mxu0 0.0
        %3710 = vmatpush1.msra.mxu0 %v3276
        %3711 = vmatprep.subr.mxu0 0.0
        %3712 = vmatpush1.msra.mxu0 %v3275
        %3713 = vmatprep.subr.mxu0 0.0
        %3714 = vmatpush1.msra.mxu0 %v3274
        %3715 = vmatprep.subr.mxu0 0.0
        %3716 = vmatpush1.msra.mxu0 %v3273
        %3717 = vmatprep.subr.mxu0 0.0
        %3718 = vmatpush1.msra.mxu0 %v3272
        %3719 = vmatprep.subr.mxu0 0.0
        %3720 = vmatpush1.msra.mxu0 %v3271
        %3721 = vmatprep.subr.mxu0 0.0
        %3722 = vmatpush2.msra.mxu0 %v3302
        %3723 = vmatprep.subr.mxu0 0.0
        %3724 = vmatpush2.msra.mxu0 %v3301
        %3725 = vmatprep.subr.mxu0 0.0
        %3726 = vmatpush2.msra.mxu0 %v3300
        %3727 = vmatprep.subr.mxu0 0.0
        %3728 = vmatpush2.msra.mxu0 %v3299
        %3729 = vmatprep.subr.mxu0 0.0
        %3730 = vmatpush2.msra.mxu0 %v3298
        %3731 = vmatprep.subr.mxu0 0.0
        %3732 = vmatpush2.msra.mxu0 %v3297
        %3733 = vmatprep.subr.mxu0 0.0
        %3734 = vmatpush2.msra.mxu0 %v3296
        %3735 = vmatprep.subr.mxu0 0.0
        %3736 = vmatpush2.msra.mxu0 %v3295
        %3737 = vmatprep.subr.mxu0 0.0
        %3738 = vmatpush2.msra.mxu0 %v3294
        %3739 = vmatprep.subr.mxu0 0.0
        %3740 = vmatpush2.msra.mxu0 %v3293
        %3741 = vmatprep.subr.mxu0 0.0
        %3742 = vmatpush2.msra.mxu0 %v3292
        %3743 = vmatprep.subr.mxu0 0.0
        %3744 = vmatpush2.msra.mxu0 %v3291
        %3745 = vmatprep.subr.mxu0 0.0
        %3746 = vmatpush2.msra.mxu0 %v3290
        %3747 = vmatprep.subr.mxu0 0.0
        %3748 = vmatpush2.msra.mxu0 %v3289
        %3749 = vmatprep.subr.mxu0 0.0
        %3750 = vmatpush2.msra.mxu0 %v3288
        %3751 = vmatprep.subr.mxu0 0.0
        %3752 = vmatpush2.msra.mxu0 %v3287
        %3753 = vmatprep.mubr.f32.mxu0 %v3626
        %3754 = vmatmul.mubr.f32.gmra.mxu0 %v3625
        %v3755 = vpop.f32.mrf.mxu0
        %v3756 = vadd.f32 0.0, %v3755
        %v3757 = vpop.f32.mrf.mxu0
        %3758 = vmatprep.mubr.f32.mxu0 %v3630
        %3759 = vmatmul.mubr.f32.gmra.mxu0 %v3629
        %v3760 = vpop.f32.mrf.mxu0
        %v3761 = vadd.f32 0.0, %v3760
        %v3762 = vpop.f32.mrf.mxu0
        %3763 = vmatprep.mubr.f32.mxu0 %v3634
        %3764 = vmatmul.mubr.f32.gmra.mxu0 %v3633
        %v3765 = vpop.f32.mrf.mxu0
        %v3766 = vadd.f32 0.0, %v3765
        %v3767 = vpop.f32.mrf.mxu0
        %3768 = vmatprep.mubr.f32.mxu0 %v3638
        %3769 = vmatmul.mubr.f32.gmra.mxu0 %v3637
        %v3770 = vpop.f32.mrf.mxu0
        %v3771 = vadd.f32 0.0, %v3770
        %v3772 = vpop.f32.mrf.mxu0
        %3773 = vmatprep.mubr.f32.mxu0 %v3642
        %3774 = vmatmul.mubr.f32.gmra.mxu0 %v3641
        %v3775 = vpop.f32.mrf.mxu0
        %v3776 = vadd.f32 0.0, %v3775
        %v3777 = vpop.f32.mrf.mxu0
        %3778 = vmatprep.mubr.f32.mxu0 %v3646
        %3779 = vmatmul.mubr.f32.gmra.mxu0 %v3645
        %v3780 = vpop.f32.mrf.mxu0
        %v3781 = vadd.f32 0.0, %v3780
        %v3782 = vpop.f32.mrf.mxu0
        %3783 = vmatprep.mubr.f32.mxu0 %v3650
        %3784 = vmatmul.mubr.f32.gmra.mxu0 %v3649
        %v3785 = vpop.f32.mrf.mxu0
        %v3786 = vadd.f32 0.0, %v3785
        %v3787 = vpop.f32.mrf.mxu0
        %3788 = vmatprep.mubr.f32.mxu0 %v3654
        %3789 = vmatmul.mubr.f32.gmra.mxu0 %v3653
        %v3790 = vpop.f32.mrf.mxu0
        %v3791 = vadd.f32 0.0, %v3790
        %v3792 = vpop.f32.mrf.mxu0
        %3793 = vmatprep.mubr.f32.mxu0 %v3658
        %3794 = vmatmul.mubr.f32.gmra.mxu0 %v3657
        %v3795 = vpop.f32.mrf.mxu0
        %v3796 = vadd.f32 0.0, %v3795
        %v3797 = vpop.f32.mrf.mxu0
        %3798 = vmatprep.mubr.f32.mxu0 %v3662
        %3799 = vmatmul.mubr.f32.gmra.mxu0 %v3661
        %v3800 = vpop.f32.mrf.mxu0
        %v3801 = vadd.f32 0.0, %v3800
        %v3802 = vpop.f32.mrf.mxu0
        %3803 = vmatprep.mubr.f32.mxu0 %v3666
        %3804 = vmatmul.mubr.f32.gmra.mxu0 %v3665
        %v3805 = vpop.f32.mrf.mxu0
        %v3806 = vadd.f32 0.0, %v3805
        %v3807 = vpop.f32.mrf.mxu0
        %3808 = vmatprep.mubr.f32.mxu0 %v3670
        %3809 = vmatmul.mubr.f32.gmra.mxu0 %v3669
        %v3810 = vpop.f32.mrf.mxu0
        %v3811 = vadd.f32 0.0, %v3810
        %v3812 = vpop.f32.mrf.mxu0
        %3813 = vmatprep.mubr.f32.mxu0 %v3674
        %3814 = vmatmul.mubr.f32.gmra.mxu0 %v3673
        %v3815 = vpop.f32.mrf.mxu0
        %v3816 = vadd.f32 0.0, %v3815
        %v3817 = vpop.f32.mrf.mxu0
        %3818 = vmatprep.mubr.f32.mxu0 %v3678
        %3819 = vmatmul.mubr.f32.gmra.mxu0 %v3677
        %v3820 = vpop.f32.mrf.mxu0
        %v3821 = vadd.f32 0.0, %v3820
        %v3822 = vpop.f32.mrf.mxu0
        %3823 = vmatprep.mubr.f32.mxu0 %v3682
        %3824 = vmatmul.mubr.f32.gmra.mxu0 %v3681
        %v3825 = vpop.f32.mrf.mxu0
        %v3826 = vadd.f32 0.0, %v3825
        %v3827 = vpop.f32.mrf.mxu0
        %3828 = vmatprep.mubr.f32.mxu0 %v3686
        %3829 = vmatmul.mubr.f32.gmra.mxu0 %v3685
        %v3830 = vpop.f32.mrf.mxu0
        %v3831 = vadd.f32 0.0, %v3830
        %v3832 = vpop.f32.mrf.mxu0
        %3833 = vdwg.mxu0
        %3834 = vmatprep.subr.mxu0 0.0
        %3835 = vmatpush1.msra.mxu0 %v3318
        %3836 = vmatprep.subr.mxu0 0.0
        %3837 = vmatpush1.msra.mxu0 %v3317
        %3838 = vmatprep.subr.mxu0 0.0
        %3839 = vmatpush1.msra.mxu0 %v3316
        %3840 = vmatprep.subr.mxu0 0.0
        %3841 = vmatpush1.msra.mxu0 %v3315
        %3842 = vmatprep.subr.mxu0 0.0
        %3843 = vmatpush1.msra.mxu0 %v3314
        %3844 = vmatprep.subr.mxu0 0.0
        %3845 = vmatpush1.msra.mxu0 %v3313
        %3846 = vmatprep.subr.mxu0 0.0
        %3847 = vmatpush1.msra.mxu0 %v3312
        %3848 = vmatprep.subr.mxu0 0.0
        %3849 = vmatpush1.msra.mxu0 %v3311
        %3850 = vmatprep.subr.mxu0 0.0
        %3851 = vmatpush1.msra.mxu0 %v3310
        %3852 = vmatprep.subr.mxu0 0.0
        %3853 = vmatpush1.msra.mxu0 %v3309
        %3854 = vmatprep.subr.mxu0 0.0
        %3855 = vmatpush1.msra.mxu0 %v3308
        %3856 = vmatprep.subr.mxu0 0.0
        %3857 = vmatpush1.msra.mxu0 %v3307
        %3858 = vmatprep.subr.mxu0 0.0
        %3859 = vmatpush1.msra.mxu0 %v3306
        %3860 = vmatprep.subr.mxu0 0.0
        %3861 = vmatpush1.msra.mxu0 %v3305
        %3862 = vmatprep.subr.mxu0 0.0
        %3863 = vmatpush1.msra.mxu0 %v3304
        %3864 = vmatprep.subr.mxu0 0.0
        %3865 = vmatpush1.msra.mxu0 %v3303
        %3866 = vmatprep.subr.mxu0 0.0
        %3867 = vmatpush2.msra.mxu0 %v3334
        %3868 = vmatprep.subr.mxu0 0.0
        %3869 = vmatpush2.msra.mxu0 %v3333
        %3870 = vmatprep.subr.mxu0 0.0
        %3871 = vmatpush2.msra.mxu0 %v3332
        %3872 = vmatprep.subr.mxu0 0.0
        %3873 = vmatpush2.msra.mxu0 %v3331
        %3874 = vmatprep.subr.mxu0 0.0
        %3875 = vmatpush2.msra.mxu0 %v3330
        %3876 = vmatprep.subr.mxu0 0.0
        %3877 = vmatpush2.msra.mxu0 %v3329
        %3878 = vmatprep.subr.mxu0 0.0
        %3879 = vmatpush2.msra.mxu0 %v3328
        %3880 = vmatprep.subr.mxu0 0.0
        %3881 = vmatpush2.msra.mxu0 %v3327
        %3882 = vmatprep.subr.mxu0 0.0
        %3883 = vmatpush2.msra.mxu0 %v3326
        %3884 = vmatprep.subr.mxu0 0.0
        %3885 = vmatpush2.msra.mxu0 %v3325
        %3886 = vmatprep.subr.mxu0 0.0
        %3887 = vmatpush2.msra.mxu0 %v3324
        %3888 = vmatprep.subr.mxu0 0.0
        %3889 = vmatpush2.msra.mxu0 %v3323
        %3890 = vmatprep.subr.mxu0 0.0
        %3891 = vmatpush2.msra.mxu0 %v3322
        %3892 = vmatprep.subr.mxu0 0.0
        %3893 = vmatpush2.msra.mxu0 %v3321
        %3894 = vmatprep.subr.mxu0 0.0
        %3895 = vmatpush2.msra.mxu0 %v3320
        %3896 = vmatprep.subr.mxu0 0.0
        %3897 = vmatpush2.msra.mxu0 %v3319
        %3898 = vmatprep.mubr.f32.mxu0 %v3628
        %3899 = vmatmul.mubr.f32.gmra.mxu0 %v3627
        %v3900 = vpop.f32.mrf.mxu0
        %v3901 = vadd.f32 %v3756, %v3900
        %v3902 = vpop.f32.mrf.mxu0
        %3903 = vmatprep.mubr.f32.mxu0 %v3632
        %3904 = vmatmul.mubr.f32.gmra.mxu0 %v3631
        %v3905 = vpop.f32.mrf.mxu0
        %v3906 = vadd.f32 %v3761, %v3905
        %v3907 = vpop.f32.mrf.mxu0
        %3908 = vmatprep.mubr.f32.mxu0 %v3636
        %3909 = vmatmul.mubr.f32.gmra.mxu0 %v3635
        %v3910 = vpop.f32.mrf.mxu0
        %v3911 = vadd.f32 %v3766, %v3910
        %v3912 = vpop.f32.mrf.mxu0
        %3913 = vmatprep.mubr.f32.mxu0 %v3640
        %3914 = vmatmul.mubr.f32.gmra.mxu0 %v3639
        %v3915 = vpop.f32.mrf.mxu0
        %v3916 = vadd.f32 %v3771, %v3915
        %v3917 = vpop.f32.mrf.mxu0
        %3918 = vmatprep.mubr.f32.mxu0 %v3644
        %3919 = vmatmul.mubr.f32.gmra.mxu0 %v3643
        %v3920 = vpop.f32.mrf.mxu0
        %v3921 = vadd.f32 %v3776, %v3920
        %v3922 = vpop.f32.mrf.mxu0
        %3923 = vmatprep.mubr.f32.mxu0 %v3648
        %3924 = vmatmul.mubr.f32.gmra.mxu0 %v3647
        %v3925 = vpop.f32.mrf.mxu0
        %v3926 = vadd.f32 %v3781, %v3925
        %v3927 = vpop.f32.mrf.mxu0
        %3928 = vmatprep.mubr.f32.mxu0 %v3652
        %3929 = vmatmul.mubr.f32.gmra.mxu0 %v3651
        %v3930 = vpop.f32.mrf.mxu0
        %v3931 = vadd.f32 %v3786, %v3930
        %v3932 = vpop.f32.mrf.mxu0
        %3933 = vmatprep.mubr.f32.mxu0 %v3656
        %3934 = vmatmul.mubr.f32.gmra.mxu0 %v3655
        %v3935 = vpop.f32.mrf.mxu0
        %v3936 = vadd.f32 %v3791, %v3935
        %v3937 = vpop.f32.mrf.mxu0
        %3938 = vmatprep.mubr.f32.mxu0 %v3660
        %3939 = vmatmul.mubr.f32.gmra.mxu0 %v3659
        %v3940 = vpop.f32.mrf.mxu0
        %v3941 = vadd.f32 %v3796, %v3940
        %v3942 = vpop.f32.mrf.mxu0
        %3943 = vmatprep.mubr.f32.mxu0 %v3664
        %3944 = vmatmul.mubr.f32.gmra.mxu0 %v3663
        %v3945 = vpop.f32.mrf.mxu0
        %v3946 = vadd.f32 %v3801, %v3945
        %v3947 = vpop.f32.mrf.mxu0
        %3948 = vmatprep.mubr.f32.mxu0 %v3668
        %3949 = vmatmul.mubr.f32.gmra.mxu0 %v3667
        %v3950 = vpop.f32.mrf.mxu0
        %v3951 = vadd.f32 %v3806, %v3950
        %v3952 = vpop.f32.mrf.mxu0
        %3953 = vmatprep.mubr.f32.mxu0 %v3672
        %3954 = vmatmul.mubr.f32.gmra.mxu0 %v3671
        %v3955 = vpop.f32.mrf.mxu0
        %v3956 = vadd.f32 %v3811, %v3955
        %v3957 = vpop.f32.mrf.mxu0
        %3958 = vmatprep.mubr.f32.mxu0 %v3676
        %3959 = vmatmul.mubr.f32.gmra.mxu0 %v3675
        %v3960 = vpop.f32.mrf.mxu0
        %v3961 = vadd.f32 %v3816, %v3960
        %v3962 = vpop.f32.mrf.mxu0
        %3963 = vmatprep.mubr.f32.mxu0 %v3680
        %3964 = vmatmul.mubr.f32.gmra.mxu0 %v3679
        %v3965 = vpop.f32.mrf.mxu0
        %v3966 = vadd.f32 %v3821, %v3965
        %v3967 = vpop.f32.mrf.mxu0
        %3968 = vmatprep.mubr.f32.mxu0 %v3684
        %3969 = vmatmul.mubr.f32.gmra.mxu0 %v3683
        %v3970 = vpop.f32.mrf.mxu0
        %v3971 = vadd.f32 %v3826, %v3970
        %v3972 = vpop.f32.mrf.mxu0
        %3973 = vmatprep.mubr.f32.mxu0 %v3688
        %3974 = vmatmul.mubr.f32.gmra.mxu0 %v3687
        %v3975 = vpop.f32.mrf.mxu0
        %v3976 = vadd.f32 %v3831, %v3975
        %v3977 = vpop.f32.mrf.mxu0
        %3978 = vdwg.mxu0
        %v3979 = vrcp.pop %v3547
        %v3980 = vrcp.pop %v3552
        %v3981 = vrcp.pop %v3557
        %v3982 = vrcp.pop %v3562
        %v3983 = vrcp.pop %v3567
        %v3984 = vrcp.pop %v3572
        %v3985 = vrcp.pop %v3577
        %v3986 = vrcp.pop %v3582
        %v3987 = vrcp.pop %v3587
        %v3988 = vrcp.pop %v3592
        %v3989 = vrcp.pop %v3597
        %v3990 = vrcp.pop %v3602
        %v3991 = vrcp.pop %v3607
        %v3992 = vrcp.pop %v3612
        %v3993 = vrcp.pop %v3617
        %v3994 = vrcp.pop %v3622
        %v3995 = vmul.f32 %v3901, %v3979
        %v3996 = vmul.f32 %v3906, %v3980
        %v3997 = vmul.f32 %v3911, %v3981
        %v3998 = vmul.f32 %v3916, %v3982
        %v3999 = vmul.f32 %v3921, %v3983
        %v4000 = vmul.f32 %v3926, %v3984
        %v4001 = vmul.f32 %v3931, %v3985
        %v4002 = vmul.f32 %v3936, %v3986
        %v4003 = vmul.f32 %v3941, %v3987
        %v4004 = vmul.f32 %v3946, %v3988
        %v4005 = vmul.f32 %v3951, %v3989
        %v4006 = vmul.f32 %v3956, %v3990
        %v4007 = vmul.f32 %v3961, %v3991
        %v4008 = vmul.f32 %v3966, %v3992
        %v4009 = vmul.f32 %v3971, %v3993
        %v4010 = vmul.f32 %v3976, %v3994
        %v4011 = vld [vmem:[#allocation2] sm:$0xff]
        %v4012 = vld [vmem:[#allocation2 + $0x8] sm:$0xff]
        %v4013 = vld [vmem:[#allocation2 + $0x10] sm:$0xff]
        %v4014 = vld [vmem:[#allocation2 + $0x18] sm:$0xff]
        %v4015 = vld [vmem:[#allocation2 + $0x20] sm:$0xff]
        %v4016 = vld [vmem:[#allocation2 + $0x28] sm:$0xff]
        %v4017 = vld [vmem:[#allocation2 + $0x30] sm:$0xff]
        %v4018 = vld [vmem:[#allocation2 + $0x38] sm:$0xff]
        %v4019 = vld [vmem:[%s4] sm:$0x1]
        %v4021 = vlaneseq
        %v4022 = vshrl.u32 %v4021, 7
        %v4023 = vsub.s32 0, %v4022
        %v4024 = vrot.slane %v4019, %v4023
        %v4027 = vsel %vm395, %v3995, 0
        %v4030 = vsel %vm395, %v3996, 0
        %v4033 = vsel %vm395, %v3997, 0
        %v4036 = vsel %vm395, %v3998, 0
        %v4039 = vsel %vm395, %v3999, 0
        %v4042 = vsel %vm395, %v4000, 0
        %v4045 = vsel %vm395, %v4001, 0
        %v4048 = vsel %vm395, %v4002, 0
        %v4051 = vsel %vm395, %v4003, 0
        %v4054 = vsel %vm395, %v4004, 0
        %v4057 = vsel %vm395, %v4005, 0
        %v4060 = vsel %vm395, %v4006, 0
        %v4063 = vsel %vm395, %v4007, 0
        %v4066 = vsel %vm395, %v4008, 0
        %v4069 = vsel %vm395, %v4009, 0
        %v4072 = vsel %vm395, %v4010, 0
        %4074 = vmatprep.subr.mxu0 0.0
        %4075 = vmatpush1.msra.mxu0 0.0
        %4076 = vmatprep.subr.mxu0 0.0
        %4077 = vmatpush1.msra.mxu0 0.0
        %4078 = vmatprep.subr.mxu0 0.0
        %4079 = vmatpush1.msra.mxu0 0.0
        %4080 = vmatprep.subr.mxu0 0.0
        %4081 = vmatpush1.msra.mxu0 0.0
        %4082 = vmatprep.subr.mxu0 0.0
        %4083 = vmatpush1.msra.mxu0 0.0
        %4084 = vmatprep.subr.mxu0 0.0
        %4085 = vmatpush1.msra.mxu0 0.0
        %4086 = vmatprep.subr.mxu0 0.0
        %4087 = vmatpush1.msra.mxu0 0.0
        %4088 = vmatprep.subr.mxu0 0.0
        %4089 = vmatpush1.msra.mxu0 0.0
        %4090 = vmatprep.subr.mxu0 0.0
        %4091 = vmatpush1.msra.mxu0 %v4018
        %4092 = vmatprep.subr.mxu0 0.0
        %4093 = vmatpush1.msra.mxu0 %v4017
        %4094 = vmatprep.subr.mxu0 0.0
        %4095 = vmatpush1.msra.mxu0 %v4016
        %4096 = vmatprep.subr.mxu0 0.0
        %4097 = vmatpush1.msra.mxu0 %v4015
        %4098 = vmatprep.subr.mxu0 0.0
        %4099 = vmatpush1.msra.mxu0 %v4014
        %4100 = vmatprep.subr.mxu0 0.0
        %4101 = vmatpush1.msra.mxu0 %v4013
        %4102 = vmatprep.subr.mxu0 0.0
        %4103 = vmatpush1.msra.mxu0 %v4012
        %4104 = vmatprep.subr.mxu0 0.0
        %4105 = vmatpush1.msra.mxu0 %v4011
        %4106 = vmatprep.subr.mxu0 0.0
        %4107 = vmatpush2.msra.mxu0 0.0
        %4108 = vmatprep.subr.mxu0 0.0
        %4109 = vmatpush2.msra.mxu0 0.0
        %4110 = vmatprep.subr.mxu0 0.0
        %4111 = vmatpush2.msra.mxu0 0.0
        %4112 = vmatprep.subr.mxu0 0.0
        %4113 = vmatpush2.msra.mxu0 0.0
        %4114 = vmatprep.subr.mxu0 0.0
        %4115 = vmatpush2.msra.mxu0 0.0
        %4116 = vmatprep.subr.mxu0 0.0
        %4117 = vmatpush2.msra.mxu0 0.0
        %4118 = vmatprep.subr.mxu0 0.0
        %4119 = vmatpush2.msra.mxu0 0.0
        %4120 = vmatprep.subr.mxu0 0.0
        %4121 = vmatpush2.msra.mxu0 0.0
        %4122 = vmatprep.subr.mxu0 0.0
        %4123 = vmatpush2.msra.mxu0 0.0
        %4124 = vmatprep.subr.mxu0 0.0
        %4125 = vmatpush2.msra.mxu0 0.0
        %4126 = vmatprep.subr.mxu0 0.0
        %4127 = vmatpush2.msra.mxu0 0.0
        %4128 = vmatprep.subr.mxu0 0.0
        %4129 = vmatpush2.msra.mxu0 0.0
        %4130 = vmatprep.subr.mxu0 0.0
        %4131 = vmatpush2.msra.mxu0 0.0
        %4132 = vmatprep.subr.mxu0 0.0
        %4133 = vmatpush2.msra.mxu0 0.0
        %4134 = vmatprep.subr.mxu0 0.0
        %4135 = vmatpush2.msra.mxu0 0.0
        %4136 = vmatprep.subr.mxu0 0.0
        %4137 = vmatpush2.msra.mxu0 0.0
        %4138 = vmatprep.mubr.f32.mxu0 0.0
        %4139 = vmatmul.mubr.f32.gmra.mxu0 %v4027
        %v4140 = vpop.f32.mrf.mxu0
        %v4141 = vadd.f32 %v4024, %v4140
        %v4142 = vpop.f32.mrf.mxu0
        %4143 = vmatprep.mubr.f32.mxu0 0.0
        %4144 = vmatmul.mubr.f32.gmra.mxu0 %v4030
        %v4145 = vpop.f32.mrf.mxu0
        %v4146 = vadd.f32 %v4024, %v4145
        %v4147 = vpop.f32.mrf.mxu0
        %4148 = vmatprep.mubr.f32.mxu0 0.0
        %4149 = vmatmul.mubr.f32.gmra.mxu0 %v4033
        %v4150 = vpop.f32.mrf.mxu0
        %v4151 = vadd.f32 %v4024, %v4150
        %v4152 = vpop.f32.mrf.mxu0
        %4153 = vmatprep.mubr.f32.mxu0 0.0
        %4154 = vmatmul.mubr.f32.gmra.mxu0 %v4036
        %v4155 = vpop.f32.mrf.mxu0
        %v4156 = vadd.f32 %v4024, %v4155
        %v4157 = vpop.f32.mrf.mxu0
        %4158 = vmatprep.mubr.f32.mxu0 0.0
        %4159 = vmatmul.mubr.f32.gmra.mxu0 %v4039
        %v4160 = vpop.f32.mrf.mxu0
        %v4161 = vadd.f32 %v4024, %v4160
        %v4162 = vpop.f32.mrf.mxu0
        %4163 = vmatprep.mubr.f32.mxu0 0.0
        %4164 = vmatmul.mubr.f32.gmra.mxu0 %v4042
        %v4165 = vpop.f32.mrf.mxu0
        %v4166 = vadd.f32 %v4024, %v4165
        %v4167 = vpop.f32.mrf.mxu0
        %4168 = vmatprep.mubr.f32.mxu0 0.0
        %4169 = vmatmul.mubr.f32.gmra.mxu0 %v4045
        %v4170 = vpop.f32.mrf.mxu0
        %v4171 = vadd.f32 %v4024, %v4170
        %v4172 = vpop.f32.mrf.mxu0
        %4173 = vmatprep.mubr.f32.mxu0 0.0
        %4174 = vmatmul.mubr.f32.gmra.mxu0 %v4048
        %v4175 = vpop.f32.mrf.mxu0
        %v4176 = vadd.f32 %v4024, %v4175
        %v4177 = vpop.f32.mrf.mxu0
        %4178 = vmatprep.mubr.f32.mxu0 0.0
        %4179 = vmatmul.mubr.f32.gmra.mxu0 %v4051
        %v4180 = vpop.f32.mrf.mxu0
        %v4181 = vadd.f32 %v4024, %v4180
        %v4182 = vpop.f32.mrf.mxu0
        %4183 = vmatprep.mubr.f32.mxu0 0.0
        %4184 = vmatmul.mubr.f32.gmra.mxu0 %v4054
        %v4185 = vpop.f32.mrf.mxu0
        %v4186 = vadd.f32 %v4024, %v4185
        %v4187 = vpop.f32.mrf.mxu0
        %4188 = vmatprep.mubr.f32.mxu0 0.0
        %4189 = vmatmul.mubr.f32.gmra.mxu0 %v4057
        %v4190 = vpop.f32.mrf.mxu0
        %v4191 = vadd.f32 %v4024, %v4190
        %v4192 = vpop.f32.mrf.mxu0
        %4193 = vmatprep.mubr.f32.mxu0 0.0
        %4194 = vmatmul.mubr.f32.gmra.mxu0 %v4060
        %v4195 = vpop.f32.mrf.mxu0
        %v4196 = vadd.f32 %v4024, %v4195
        %v4197 = vpop.f32.mrf.mxu0
        %4198 = vmatprep.mubr.f32.mxu0 0.0
        %4199 = vmatmul.mubr.f32.gmra.mxu0 %v4063
        %v4200 = vpop.f32.mrf.mxu0
        %v4201 = vadd.f32 %v4024, %v4200
        %v4202 = vpop.f32.mrf.mxu0
        %4203 = vmatprep.mubr.f32.mxu0 0.0
        %4204 = vmatmul.mubr.f32.gmra.mxu0 %v4066
        %v4205 = vpop.f32.mrf.mxu0
        %v4206 = vadd.f32 %v4024, %v4205
        %v4207 = vpop.f32.mrf.mxu0
        %4208 = vmatprep.mubr.f32.mxu0 0.0
        %4209 = vmatmul.mubr.f32.gmra.mxu0 %v4069
        %v4210 = vpop.f32.mrf.mxu0
        %v4211 = vadd.f32 %v4024, %v4210
        %v4212 = vpop.f32.mrf.mxu0
        %4213 = vmatprep.mubr.f32.mxu0 0.0
        %4214 = vmatmul.mubr.f32.gmra.mxu0 %v4072
        %v4215 = vpop.f32.mrf.mxu0
        %v4216 = vadd.f32 %v4024, %v4215
        %v4217 = vpop.f32.mrf.mxu0
        %4218 = vdwg.mxu0
        %4219 = vst.msk [vmem:[%s349] sm:$0xff] %vm395, %v4141
        %4220 = vst.msk [vmem:[%s349 + $0x8] sm:$0xff] %vm395, %v4146
        %4221 = vst.msk [vmem:[%s349 + $0x10] sm:$0xff] %vm395, %v4151
        %4222 = vst.msk [vmem:[%s349 + $0x18] sm:$0xff] %vm395, %v4156
        %4223 = vst.msk [vmem:[%s349 + $0x20] sm:$0xff] %vm395, %v4161
        %4224 = vst.msk [vmem:[%s349 + $0x28] sm:$0xff] %vm395, %v4166
        %4225 = vst.msk [vmem:[%s349 + $0x30] sm:$0xff] %vm395, %v4171
        %4226 = vst.msk [vmem:[%s349 + $0x38] sm:$0xff] %vm395, %v4176
        %4227 = vst.msk [vmem:[%s349 + $0x40] sm:$0xff] %vm395, %v4181
        %4228 = vst.msk [vmem:[%s349 + $0x48] sm:$0xff] %vm395, %v4186
        %4229 = vst.msk [vmem:[%s349 + $0x50] sm:$0xff] %vm395, %v4191
        %4230 = vst.msk [vmem:[%s349 + $0x58] sm:$0xff] %vm395, %v4196
        %4231 = vst.msk [vmem:[%s349 + $0x60] sm:$0xff] %vm395, %v4201
        %4232 = vst.msk [vmem:[%s349 + $0x68] sm:$0xff] %vm395, %v4206
        %4233 = vst.msk [vmem:[%s349 + $0x70] sm:$0xff] %vm395, %v4211
        %4234 = vst.msk [vmem:[%s349 + $0x78] sm:$0xff] %vm395, %v4216
        %s4235 = smul.u32 16, %s21
        %p4236 = scmp.lt.s32.totalorder %s4235, 31
        %s4237 = scalar_select %p4236, %s4235, 31
        %s4238 = smul.addr %s4237, 8
        %s4239 = scalar_lea.vmem %s9, %s4238
        // Predicated region
        $region61: #{tpu_custom_call.1} parent=55 // pred_check
          %p4240 = pneg %p233
        $region62: #{tpu_custom_call.1} parent=55 // pred_check_branch
          %4242 = sbr.rel (%p4240) target = $region64
        $region63: #{tpu_custom_call.1} parent=55 // pred_region
          %s4243 = smul.u32 16, %s21
        $region64: #{tpu_custom_call.1} parent=55 // pred_fallthru
          _
      $region56: #{tpu_custom_call.1} parent=5 // pred_fallthru
        _
      %p4244 = scmp.le.s32.totalorder 2, %s16
      // Predicated region
      $region65: #{tpu_custom_call.1} parent=5 // pred_check
        %p4245 = pneg %p4244
      $region66: #{tpu_custom_call.1} parent=5 // pred_check_branch
        %4247 = sbr.rel (%p4245) target = $region68
      $region67: #{tpu_custom_call.1} parent=5 // pred_region
        %s4248 = ssub.s32 %s16, 2
        // Predicated region
        $region69: #{tpu_custom_call.1} parent=67 // pred_check
          %p4249 = pneg %p239
        $region70: #{tpu_custom_call.1} parent=67 // pred_check_branch
          %4251 = sbr.rel (%p4249) target = $region72
        $region71: #{tpu_custom_call.1} parent=67 // pred_region
          %s4252 = smul.u32 16, %s22
          %p4253 = scmp.lt.s32.totalorder %s4252, 31
          %s4254 = scalar_select %p4253, %s4252, 31
          %s4255 = smul.addr %s4254, 8
          %s4256 = scalar_lea.vmem %s9, %s4255
        $region72: #{tpu_custom_call.1} parent=67 // pred_fallthru
          _
      $region68: #{tpu_custom_call.1} parent=5 // pred_fallthru
        _
    $region6: #{tpu_custom_call.1} parent=1 // loop_footer
      %s20 = sadd.s32 1, %s16
    $region7: #{tpu_custom_call.1} parent=1 // loop_footer_branch
      %15 = sbr.rel target = $region3
    $region8: #{tpu_custom_call.1} parent=1 // loop_exit
      _
    %4257 = vsyncpa [#allocation3], 1
    %s4258 = scalar_lea.sflag [#allocation3], 1
    %4259 = vsyncpa %s4258, 1

</llo_original>
